<compile_context>
chip_gen: v5e
topology: v5e:2x2
jax: 0.10.0
libtpu: 0.0.40
codegen_flags: <defaults>
</compile_context>

<pallas_src>
import numpy as np
import jax
import jax.numpy as jnp
from jax.experimental import pallas as pl
from jax.experimental.pallas import tpu as pltpu

EPS = 1e-5  # nn.BatchNorm1d default eps


# ---------------------------------------------------------------------------
# in-kernel helpers
# ---------------------------------------------------------------------------
def _shift_left(a):
    """a[..., t] -> a[..., t+1], zero-padded at the end."""
    return jnp.concatenate([a[..., 1:], jnp.zeros_like(a[..., :1])], axis=-1)


def _shift_right(a):
    """a[..., t] -> a[..., t-1], zero-padded at the start."""
    return jnp.concatenate([jnp.zeros_like(a[..., :1]), a[..., :-1]], axis=-1)


def _batchnorm_train(h, gamma, beta):
    """BatchNorm1d in training mode (module default): batch statistics over
    (N, L), biased variance, computed in a single pass."""
    m = jnp.mean(h, axis=(0, 2), keepdims=True)
    m2 = jnp.mean(h * h, axis=(0, 2), keepdims=True)
    var = jnp.maximum(m2 - m * m, 0.0)
    inv = jax.lax.rsqrt(var + EPS)
    return gamma[None] * (h - m) * inv + beta[None]


def _maxpool2(h, sel):
    """MaxPool1d(2): pairwise max (shifted maximum), then even-column selection
    via a constant 0/1 matmul (keeps the lane dim dense, no lane reshapes)."""
    pairmax = jnp.maximum(h, _shift_left(h))   # pairmax[..., 2t] = max(h[2t], h[2t+1])
    return jax.lax.dot_general(pairmax, sel, (((2,), (0,)), ((), ())),
                               preferred_element_type=jnp.float32)


# ---------------------------------------------------------------------------
# fused kernel
# ---------------------------------------------------------------------------
def cnn1d_kernel(x_ref, w1_ref, b1_ref, g1_ref, be1_ref,
                 w2c_ref, b2_ref, g2_ref, be2_ref,
                 sel1_ref, sel2_ref,
                 wf1_ref, bf1_ref, wf2_ref, bf2_ref, out_ref):
    x = x_ref[...]                      # (N, 200); in_channels == 1, squeezed
    w1 = w1_ref[...]                    # (3, 10, 1): taps k=0,1,2 -> x[t-1], x[t], x[t+1]

    # ---- Conv1d(1, 10, k=3, padding='same') ----
    xl = _shift_right(x)                # x[t-1]
    xr = _shift_left(x)                 # x[t+1]
    h = (w1[0][None, :, :] * xl[:, None, :]
         + w1[1][None, :, :] * x[:, None, :]
         + w1[2][None, :, :] * xr[:, None, :]
         + b1_ref[...][None])           # (N, 10, 200)
    h = _batchnorm_train(h, g1_ref[...], be1_ref[...])
    h = jnp.tanh(h)
    h = _maxpool2(h, sel1_ref[...])     # (N, 10, 100)

    # ---- Conv1d(10, 20, k=3, padding='same') as one K=30 matmul ----
    hcat = jnp.concatenate([_shift_right(h), h, _shift_left(h)], axis=1)  # (N, 30, 100)
    h2 = jnp.einsum('oc,nct->not', w2c_ref[...], hcat,
                    preferred_element_type=jnp.float32) + b2_ref[...][None]  # (N, 20, 100)
    h2 = _batchnorm_train(h2, g2_ref[...], be2_ref[...])
    h2 = jnp.tanh(h2)
    h2 = _maxpool2(h2, sel2_ref[...])   # (N, 20, 50)

    # ---- Flatten(start_dim=1) + Linear(1000, 600) ----
    # flat[n, c*50 + t] = h2[n, c, t];  wf1 is pre-laid-out as (20, 50, 600) with
    # wf1[c, t, f] = W[f, c*50 + t], so Flatten+Linear is an exact channel-batched
    # contraction followed by a channel sum (no in-kernel flatten reshape, no
    # relayout of the 2.4 MB weight).
    pc = jnp.transpose(h2, (1, 0, 2))   # (20, N, 50)
    z = jnp.einsum('cnt,ctf->cnf', pc, wf1_ref[...],
                   preferred_element_type=jnp.float32)   # (20, N, 600)
    y1 = jnp.tanh(jnp.sum(z, axis=0) + bf1_ref[...])     # (N, 600)

    # ---- Linear(600, 1): VPU multiply + lane reduction (MXU not needed) ----
    y2 = jnp.sum(y1 * wf2_ref[...], axis=-1, keepdims=True) + bf2_ref[...]   # (N, 1)
    out_ref[...] = y2.astype(out_ref.dtype)


# ---------------------------------------------------------------------------
# wrapper
# ---------------------------------------------------------------------------
_VMEM = pl.BlockSpec(memory_space=pltpu.MemorySpace.VMEM)


def _pool_select(L):
    """(L, L//2) 0/1 selection matrix: sel[2t, t] = 1 (picks even columns)."""
    sel = np.zeros((L, L // 2), np.float32)
    sel[2 * np.arange(L // 2), np.arange(L // 2)] = 1.0
    return sel


@jax.jit
def cnn_1d_forward(x, params):
    """x: (N, 1, 200) float32, matching PyTorch's (N, C_in, L)."""
    N, c_in, L = x.shape
    assert c_in == 1 and L == 200, "Linear(1000, 600) requires L == 200"

    sel1 = jnp.asarray(_pool_select(L))        # (200, 100) constant
    sel2 = jnp.asarray(_pool_select(L // 2))   # (100, 50) constant

    operands = (x.reshape(N, L),
                params["w1"], params["b1"], params["g1"], params["be1"],
                params["w2"], params["b2"], params["g2"], params["be2"],
                sel1, sel2,
                params["wf1"], params["bf1"], params["wf2"], params["bf2"])

    flops = 2 * N * (3 * 10 * L + 10 * L * (L // 2) + 30 * 20 * (L // 2)
                     + 20 * (L // 2) * (L // 4) + 1000 * 600 + 600)
    transc = N * (10 * L + 20 * (L // 2) + 600)
    nbytes = sum(int(np.prod(o.shape)) * 4 for o in operands) + N * 4

    return pl.pallas_call(
        cnn1d_kernel,
        out_shape=jax.ShapeDtypeStruct((N, 1), jnp.float32),
        in_specs=[_VMEM] * len(operands),
        out_specs=_VMEM,
        cost_estimate=pl.CostEstimate(flops=flops, transcendentals=transc,
                                      bytes_accessed=nbytes),
    )(*operands)


def init_params(key):
    """Parameters in kernel-friendly layouts. Mapping from the PyTorch module:
      conv1.weight (10,1,3)   -> w1 (3,10,1):      w1[k, o, 0]   = weight[o, 0, k]
      conv2.weight (20,10,3)  -> w2 (20,30):       w2[o, k*10+i] = weight[o, i, k]
      fc1.weight   (600,1000) -> wf1 (20,50,600):  wf1[c, t, f]  = weight[f, c*50+t]
      fc2.weight   (1,600)    -> wf2 (1,600) unchanged
    (biases / BN affine params reshaped to broadcast-friendly column vectors)"""
    ks = jax.random.split(key, 6)
    return dict(
        w1=jax.random.normal(ks[0], (3, 10, 1), jnp.float32) * 0.5,
        b1=jax.random.normal(ks[1], (10, 1), jnp.float32) * 0.1,
        g1=jnp.ones((10, 1), jnp.float32),    # BatchNorm1d(10) gamma (default init)
        be1=jnp.zeros((10, 1), jnp.float32),  # BatchNorm1d(10) beta
        w2=jax.random.normal(ks[2], (20, 30), jnp.float32) * 0.2,
        b2=jax.random.normal(ks[3], (20, 1), jnp.float32) * 0.1,
        g2=jnp.ones((20, 1), jnp.float32),
        be2=jnp.zeros((20, 1), jnp.float32),
        wf1=jax.random.normal(ks[4], (20, 50, 600), jnp.float32) * 0.03,  # Linear(1000,600)
        bf1=jnp.zeros((1, 600), jnp.float32),
        wf2=jax.random.normal(ks[5], (1, 600), jnp.float32) * 0.04,       # Linear(600,1)
        bf2=jnp.zeros((1, 1), jnp.float32),
    )


if __name__ == "__main__":
    key = jax.random.PRNGKey(0)
    pkey, xkey = jax.random.split(key)
    params = init_params(pkey)

    # batch=2, in_channels=1, length=200 (forced by Linear(1000, 600))
    x = jax.random.normal(xkey, (2, 1, 200), jnp.float32)

    y = cnn_1d_forward(x, params)
    jax.block_until_ready(y)
    assert y.shape == (2, 1) and y.dtype == jnp.float32
    # TODO(synk): BatchNorm running_mean/running_var buffer updates (training-side
    # state mutation) are not reproduced; only the forward output is computed.
    print("KERNEL_OK")
</pallas_src>

<mosaic_0001>
module attributes {stable_mosaic.version = 11 : i64} {
  func.func @cnn1d_kernel(%arg0: memref<2x200xf32, #tpu.memory_space<vmem>>, %arg1: memref<3x10x1xf32, #tpu.memory_space<vmem>>, %arg2: memref<10x1xf32, #tpu.memory_space<vmem>>, %arg3: memref<10x1xf32, #tpu.memory_space<vmem>>, %arg4: memref<10x1xf32, #tpu.memory_space<vmem>>, %arg5: memref<20x30xf32, #tpu.memory_space<vmem>>, %arg6: memref<20x1xf32, #tpu.memory_space<vmem>>, %arg7: memref<20x1xf32, #tpu.memory_space<vmem>>, %arg8: memref<20x1xf32, #tpu.memory_space<vmem>>, %arg9: memref<200x100xf32, #tpu.memory_space<vmem>>, %arg10: memref<100x50xf32, #tpu.memory_space<vmem>>, %arg11: memref<20x50x600xf32, #tpu.memory_space<vmem>>, %arg12: memref<1x600xf32, #tpu.memory_space<vmem>>, %arg13: memref<1x600xf32, #tpu.memory_space<vmem>>, %arg14: memref<1x1xf32, #tpu.memory_space<vmem>>, %arg15: memref<2x1xf32, #tpu.memory_space<vmem>>) attributes {dimension_semantics = [], scalar_prefetch = 0 : i64, scratch_operands = 0 : i64, tpu.core_type = #tpu.core_type<tc>} {
    %c0 = arith.constant 0 : index
    %c0_0 = arith.constant 0 : index
    %0 = vector.load %arg0[%c0, %c0_0] : memref<2x200xf32, #tpu.memory_space<vmem>>, vector<2x200xf32>
    %c0_1 = arith.constant 0 : index
    %c0_2 = arith.constant 0 : index
    %c0_3 = arith.constant 0 : index
    %1 = vector.load %arg1[%c0_1, %c0_2, %c0_3] : memref<3x10x1xf32, #tpu.memory_space<vmem>>, vector<3x10x1xf32>
    %cst = arith.constant 0.000000e+00 : f32
    %2 = vector.broadcast %cst : f32 to vector<2x1xf32>
    %3 = vector.extract_strided_slice %0 {offsets = [0, 0], sizes = [2, 199], strides = [1, 1]} : vector<2x200xf32> to vector<2x199xf32>
    %4 = tpu.concatenate %2, %3 in 1 : vector<2x1xf32>, vector<2x199xf32> -> vector<2x200xf32>
    %5 = vector.extract_strided_slice %0 {offsets = [0, 1], sizes = [2, 199], strides = [1, 1]} : vector<2x200xf32> to vector<2x199xf32>
    %cst_4 = arith.constant 0.000000e+00 : f32
    %6 = vector.broadcast %cst_4 : f32 to vector<2x1xf32>
    %7 = tpu.concatenate %5, %6 in 1 : vector<2x199xf32>, vector<2x1xf32> -> vector<2x200xf32>
    %8 = vector.extract_strided_slice %1 {offsets = [0, 0, 0], sizes = [1, 10, 1], strides = [1, 1, 1]} : vector<3x10x1xf32> to vector<1x10x1xf32>
    %9 = vector.shape_cast %8 : vector<1x10x1xf32> to vector<10x1xf32>
    %10 = vector.shape_cast %9 : vector<10x1xf32> to vector<1x10x1xf32>
    %11 = vector.shape_cast %4 : vector<2x200xf32> to vector<2x1x200xf32>
    %12 = vector.broadcast %10 : vector<1x10x1xf32> to vector<2x10x200xf32>
    %13 = vector.broadcast %11 : vector<2x1x200xf32> to vector<2x10x200xf32>
    %14 = arith.mulf %12, %13 : vector<2x10x200xf32>
    %15 = vector.extract_strided_slice %1 {offsets = [1, 0, 0], sizes = [1, 10, 1], strides = [1, 1, 1]} : vector<3x10x1xf32> to vector<1x10x1xf32>
    %16 = vector.shape_cast %15 : vector<1x10x1xf32> to vector<10x1xf32>
    %17 = vector.shape_cast %16 : vector<10x1xf32> to vector<1x10x1xf32>
    %18 = vector.shape_cast %0 : vector<2x200xf32> to vector<2x1x200xf32>
    %19 = vector.broadcast %17 : vector<1x10x1xf32> to vector<2x10x200xf32>
    %20 = vector.broadcast %18 : vector<2x1x200xf32> to vector<2x10x200xf32>
    %21 = arith.mulf %19, %20 : vector<2x10x200xf32>
    %22 = arith.addf %14, %21 : vector<2x10x200xf32>
    %23 = vector.extract_strided_slice %1 {offsets = [2, 0, 0], sizes = [1, 10, 1], strides = [1, 1, 1]} : vector<3x10x1xf32> to vector<1x10x1xf32>
    %24 = vector.shape_cast %23 : vector<1x10x1xf32> to vector<10x1xf32>
    %25 = vector.shape_cast %24 : vector<10x1xf32> to vector<1x10x1xf32>
    %26 = vector.shape_cast %7 : vector<2x200xf32> to vector<2x1x200xf32>
    %27 = vector.broadcast %25 : vector<1x10x1xf32> to vector<2x10x200xf32>
    %28 = vector.broadcast %26 : vector<2x1x200xf32> to vector<2x10x200xf32>
    %29 = arith.mulf %27, %28 : vector<2x10x200xf32>
    %30 = arith.addf %22, %29 : vector<2x10x200xf32>
    %c0_5 = arith.constant 0 : index
    %c0_6 = arith.constant 0 : index
    %31 = vector.load %arg2[%c0_5, %c0_6] : memref<10x1xf32, #tpu.memory_space<vmem>>, vector<10x1xf32>
    %32 = vector.shape_cast %31 : vector<10x1xf32> to vector<1x10x1xf32>
    %33 = vector.broadcast %32 : vector<1x10x1xf32> to vector<2x10x200xf32>
    %34 = arith.addf %30, %33 : vector<2x10x200xf32>
    %c0_7 = arith.constant 0 : index
    %c0_8 = arith.constant 0 : index
    %35 = vector.load %arg3[%c0_7, %c0_8] : memref<10x1xf32, #tpu.memory_space<vmem>>, vector<10x1xf32>
    %c0_9 = arith.constant 0 : index
    %c0_10 = arith.constant 0 : index
    %36 = vector.load %arg4[%c0_9, %c0_10] : memref<10x1xf32, #tpu.memory_space<vmem>>, vector<10x1xf32>
    %cst_11 = arith.constant dense<0.000000e+00> : vector<10xf32>
    %37 = vector.multi_reduction <add>, %34, %cst_11 [0, 2] : vector<2x10x200xf32> to vector<10xf32>
    %38 = vector.shape_cast %37 : vector<10xf32> to vector<1x10x1xf32>
    %cst_12 = arith.constant 4.000000e+02 : f32
    %39 = vector.broadcast %cst_12 : f32 to vector<1x10x1xf32>
    %40 = arith.divf %38, %39 : vector<1x10x1xf32>
    %41 = arith.mulf %34, %34 : vector<2x10x200xf32>
    %cst_13 = arith.constant dense<0.000000e+00> : vector<10xf32>
    %42 = vector.multi_reduction <add>, %41, %cst_13 [0, 2] : vector<2x10x200xf32> to vector<10xf32>
    %43 = vector.shape_cast %42 : vector<10xf32> to vector<1x10x1xf32>
    %cst_14 = arith.constant 4.000000e+02 : f32
    %44 = vector.broadcast %cst_14 : f32 to vector<1x10x1xf32>
    %45 = arith.divf %43, %44 : vector<1x10x1xf32>
    %46 = arith.mulf %40, %40 : vector<1x10x1xf32>
    %47 = arith.subf %45, %46 : vector<1x10x1xf32>
    %cst_15 = arith.constant 0.000000e+00 : f32
    %48 = vector.broadcast %cst_15 : f32 to vector<1x10x1xf32>
    %49 = arith.maximumf %47, %48 : vector<1x10x1xf32>
    %cst_16 = arith.constant 9.99999974E-6 : f32
    %50 = vector.broadcast %cst_16 : f32 to vector<1x10x1xf32>
    %51 = arith.addf %49, %50 : vector<1x10x1xf32>
    %52 = math.rsqrt %51 : vector<1x10x1xf32>
    %53 = vector.shape_cast %35 : vector<10x1xf32> to vector<1x10x1xf32>
    %54 = vector.broadcast %40 : vector<1x10x1xf32> to vector<2x10x200xf32>
    %55 = arith.subf %34, %54 : vector<2x10x200xf32>
    %56 = vector.broadcast %53 : vector<1x10x1xf32> to vector<2x10x200xf32>
    %57 = arith.mulf %56, %55 : vector<2x10x200xf32>
    %58 = vector.broadcast %52 : vector<1x10x1xf32> to vector<2x10x200xf32>
    %59 = arith.mulf %57, %58 : vector<2x10x200xf32>
    %60 = vector.shape_cast %36 : vector<10x1xf32> to vector<1x10x1xf32>
    %61 = vector.broadcast %60 : vector<1x10x1xf32> to vector<2x10x200xf32>
    %62 = arith.addf %59, %61 : vector<2x10x200xf32>
    %63 = math.tanh %62 : vector<2x10x200xf32>
    %c0_17 = arith.constant 0 : index
    %c0_18 = arith.constant 0 : index
    %64 = vector.load %arg9[%c0_17, %c0_18] : memref<200x100xf32, #tpu.memory_space<vmem>>, vector<200x100xf32>
    %65 = vector.extract_strided_slice %63 {offsets = [0, 0, 1], sizes = [2, 10, 199], strides = [1, 1, 1]} : vector<2x10x200xf32> to vector<2x10x199xf32>
    %cst_19 = arith.constant 0.000000e+00 : f32
    %66 = vector.broadcast %cst_19 : f32 to vector<2x10x1xf32>
    %67 = tpu.concatenate %65, %66 in 2 : vector<2x10x199xf32>, vector<2x10x1xf32> -> vector<2x10x200xf32>
    %68 = arith.maximumf %63, %67 : vector<2x10x200xf32>
    %cst_20 = arith.constant dense<0.000000e+00> : vector<2x10x100xf32>
    %69 = tpu.matmul %68, %64, %cst_20 {dimension_numbers = #tpu.dot_dimension_numbers<[2], [0], [0, 1], [1], [0, 0, 0, 1, 1, 1], [], []>} : vector<2x10x200xf32>, vector<200x100xf32>, vector<2x10x100xf32> -> vector<2x10x100xf32>
    %cst_21 = arith.constant 0.000000e+00 : f32
    %70 = vector.broadcast %cst_21 : f32 to vector<2x10x1xf32>
    %71 = vector.extract_strided_slice %69 {offsets = [0, 0, 0], sizes = [2, 10, 99], strides = [1, 1, 1]} : vector<2x10x100xf32> to vector<2x10x99xf32>
    %72 = tpu.concatenate %70, %71 in 2 : vector<2x10x1xf32>, vector<2x10x99xf32> -> vector<2x10x100xf32>
    %73 = vector.extract_strided_slice %69 {offsets = [0, 0, 1], sizes = [2, 10, 99], strides = [1, 1, 1]} : vector<2x10x100xf32> to vector<2x10x99xf32>
    %cst_22 = arith.constant 0.000000e+00 : f32
    %74 = vector.broadcast %cst_22 : f32 to vector<2x10x1xf32>
    %75 = tpu.concatenate %73, %74 in 2 : vector<2x10x99xf32>, vector<2x10x1xf32> -> vector<2x10x100xf32>
    %76 = tpu.concatenate %72, %69, %75 in 1 : vector<2x10x100xf32>, vector<2x10x100xf32>, vector<2x10x100xf32> -> vector<2x30x100xf32>
    %c0_23 = arith.constant 0 : index
    %c0_24 = arith.constant 0 : index
    %77 = vector.load %arg5[%c0_23, %c0_24] : memref<20x30xf32, #tpu.memory_space<vmem>>, vector<20x30xf32>
    "tpu.trace_start"() <{level = 10 : i32, message = "oc,nct->not"}> : () -> ()
    %cst_25 = arith.constant dense<0.000000e+00> : vector<2x100x20xf32>
    %78 = tpu.matmul %76, %77, %cst_25 {dimension_numbers = #tpu.dot_dimension_numbers<[1], [1], [0, 2], [0], [0, 0, 0, 2, 1, 0], [], []>} : vector<2x30x100xf32>, vector<20x30xf32>, vector<2x100x20xf32> -> vector<2x100x20xf32>
    %79 = tpu.transpose %78, [0, 2, 1] : vector<2x100x20xf32> -> vector<2x20x100xf32>
    "tpu.trace_stop"() : () -> ()
    %c0_26 = arith.constant 0 : index
    %c0_27 = arith.constant 0 : index
    %80 = vector.load %arg6[%c0_26, %c0_27] : memref<20x1xf32, #tpu.memory_space<vmem>>, vector<20x1xf32>
    %81 = vector.shape_cast %80 : vector<20x1xf32> to vector<1x20x1xf32>
    %82 = vector.broadcast %81 : vector<1x20x1xf32> to vector<2x20x100xf32>
    %83 = arith.addf %79, %82 : vector<2x20x100xf32>
    %c0_28 = arith.constant 0 : index
    %c0_29 = arith.constant 0 : index
    %84 = vector.load %arg7[%c0_28, %c0_29] : memref<20x1xf32, #tpu.memory_space<vmem>>, vector<20x1xf32>
    %c0_30 = arith.constant 0 : index
    %c0_31 = arith.constant 0 : index
    %85 = vector.load %arg8[%c0_30, %c0_31] : memref<20x1xf32, #tpu.memory_space<vmem>>, vector<20x1xf32>
    %cst_32 = arith.constant dense<0.000000e+00> : vector<20xf32>
    %86 = vector.multi_reduction <add>, %83, %cst_32 [0, 2] : vector<2x20x100xf32> to vector<20xf32>
    %87 = vector.shape_cast %86 : vector<20xf32> to vector<1x20x1xf32>
    %cst_33 = arith.constant 2.000000e+02 : f32
    %88 = vector.broadcast %cst_33 : f32 to vector<1x20x1xf32>
    %89 = arith.divf %87, %88 : vector<1x20x1xf32>
    %90 = arith.mulf %83, %83 : vector<2x20x100xf32>
    %cst_34 = arith.constant dense<0.000000e+00> : vector<20xf32>
    %91 = vector.multi_reduction <add>, %90, %cst_34 [0, 2] : vector<2x20x100xf32> to vector<20xf32>
    %92 = vector.shape_cast %91 : vector<20xf32> to vector<1x20x1xf32>
    %cst_35 = arith.constant 2.000000e+02 : f32
    %93 = vector.broadcast %cst_35 : f32 to vector<1x20x1xf32>
    %94 = arith.divf %92, %93 : vector<1x20x1xf32>
    %95 = arith.mulf %89, %89 : vector<1x20x1xf32>
    %96 = arith.subf %94, %95 : vector<1x20x1xf32>
    %cst_36 = arith.constant 0.000000e+00 : f32
    %97 = vector.broadcast %cst_36 : f32 to vector<1x20x1xf32>
    %98 = arith.maximumf %96, %97 : vector<1x20x1xf32>
    %cst_37 = arith.constant 9.99999974E-6 : f32
    %99 = vector.broadcast %cst_37 : f32 to vector<1x20x1xf32>
    %100 = arith.addf %98, %99 : vector<1x20x1xf32>
    %101 = math.rsqrt %100 : vector<1x20x1xf32>
    %102 = vector.shape_cast %84 : vector<20x1xf32> to vector<1x20x1xf32>
    %103 = vector.broadcast %89 : vector<1x20x1xf32> to vector<2x20x100xf32>
    %104 = arith.subf %83, %103 : vector<2x20x100xf32>
    %105 = vector.broadcast %102 : vector<1x20x1xf32> to vector<2x20x100xf32>
    %106 = arith.mulf %105, %104 : vector<2x20x100xf32>
    %107 = vector.broadcast %101 : vector<1x20x1xf32> to vector<2x20x100xf32>
    %108 = arith.mulf %106, %107 : vector<2x20x100xf32>
    %109 = vector.shape_cast %85 : vector<20x1xf32> to vector<1x20x1xf32>
    %110 = vector.broadcast %109 : vector<1x20x1xf32> to vector<2x20x100xf32>
    %111 = arith.addf %108, %110 : vector<2x20x100xf32>
    %112 = math.tanh %111 : vector<2x20x100xf32>
    %c0_38 = arith.constant 0 : index
    %c0_39 = arith.constant 0 : index
    %113 = vector.load %arg10[%c0_38, %c0_39] : memref<100x50xf32, #tpu.memory_space<vmem>>, vector<100x50xf32>
    %114 = vector.extract_strided_slice %112 {offsets = [0, 0, 1], sizes = [2, 20, 99], strides = [1, 1, 1]} : vector<2x20x100xf32> to vector<2x20x99xf32>
    %cst_40 = arith.constant 0.000000e+00 : f32
    %115 = vector.broadcast %cst_40 : f32 to vector<2x20x1xf32>
    %116 = tpu.concatenate %114, %115 in 2 : vector<2x20x99xf32>, vector<2x20x1xf32> -> vector<2x20x100xf32>
    %117 = arith.maximumf %112, %116 : vector<2x20x100xf32>
    %cst_41 = arith.constant dense<0.000000e+00> : vector<2x20x50xf32>
    %118 = tpu.matmul %117, %113, %cst_41 {dimension_numbers = #tpu.dot_dimension_numbers<[2], [0], [0, 1], [1], [0, 0, 0, 1, 1, 1], [], []>} : vector<2x20x100xf32>, vector<100x50xf32>, vector<2x20x50xf32> -> vector<2x20x50xf32>
    %119 = tpu.transpose %118, [1, 0, 2] : vector<2x20x50xf32> -> vector<20x2x50xf32>
    %c0_42 = arith.constant 0 : index
    %c0_43 = arith.constant 0 : index
    %c0_44 = arith.constant 0 : index
    %120 = vector.load %arg11[%c0_42, %c0_43, %c0_44] : memref<20x50x600xf32, #tpu.memory_space<vmem>>, vector<20x50x600xf32>
    "tpu.trace_start"() <{level = 10 : i32, message = "cnt,ctf->cnf"}> : () -> ()
    %cst_45 = arith.constant dense<0.000000e+00> : vector<20x2x600xf32>
    %121 = tpu.matmul %119, %120, %cst_45 {dimension_numbers = #tpu.dot_dimension_numbers<[2], [1], [1], [2], [0, 0, 0, 1, 1, 2], [0], [0]>} : vector<20x2x50xf32>, vector<20x50x600xf32>, vector<20x2x600xf32> -> vector<20x2x600xf32>
    "tpu.trace_stop"() : () -> ()
    %cst_46 = arith.constant dense<0.000000e+00> : vector<2x600xf32>
    %122 = vector.multi_reduction <add>, %121, %cst_46 [0] : vector<20x2x600xf32> to vector<2x600xf32>
    %c0_47 = arith.constant 0 : index
    %c0_48 = arith.constant 0 : index
    %123 = vector.load %arg12[%c0_47, %c0_48] : memref<1x600xf32, #tpu.memory_space<vmem>>, vector<1x600xf32>
    %124 = vector.broadcast %123 : vector<1x600xf32> to vector<2x600xf32>
    %125 = arith.addf %122, %124 : vector<2x600xf32>
    %126 = math.tanh %125 : vector<2x600xf32>
    %c0_49 = arith.constant 0 : index
    %c0_50 = arith.constant 0 : index
    %127 = vector.load %arg13[%c0_49, %c0_50] : memref<1x600xf32, #tpu.memory_space<vmem>>, vector<1x600xf32>
    %128 = vector.broadcast %127 : vector<1x600xf32> to vector<2x600xf32>
    %129 = arith.mulf %126, %128 : vector<2x600xf32>
    %cst_51 = arith.constant dense<0.000000e+00> : vector<2xf32>
    %130 = vector.multi_reduction <add>, %129, %cst_51 [1] : vector<2x600xf32> to vector<2xf32>
    %131 = vector.shape_cast %130 : vector<2xf32> to vector<2x1xf32>
    %c0_52 = arith.constant 0 : index
    %c0_53 = arith.constant 0 : index
    %132 = vector.load %arg14[%c0_52, %c0_53] : memref<1x1xf32, #tpu.memory_space<vmem>>, vector<1x1xf32>
    %133 = vector.broadcast %132 : vector<1x1xf32> to vector<2x1xf32>
    %134 = arith.addf %131, %133 : vector<2x1xf32>
    %c0_54 = arith.constant 0 : index
    %c0_55 = arith.constant 0 : index
    %135 = vector.load %arg15[%c0_54, %c0_55] : memref<2x1xf32, #tpu.memory_space<vmem>>, vector<2x1xf32>
    tpu.vector_store %arg15[%c0_54, %c0_55], %134 {strides = array<i32>} : memref<2x1xf32, #tpu.memory_space<vmem>>, vector<2x1xf32>,
    return
  }
}

</mosaic_0001>

<llo_original>
// kernel: cnn_1d_forward.1
$region0: #{cnn_1d_forward.1}
  #allocation0 [shape = 'u32[]', space=smem, size = 0x4, offset = 0x4, fixed_abs, tag = 'smem constant byte address 0x4 - core index']
  #allocation1 [shape = 'u32[72,128]{1,0:T(1,128)}', space=vmem, size = 0x9000, scoped, tag = 'internal scratch']
  #allocation2 [shape = 'f32[1,1]{1,0:T(1,128)S(1)}', space=vmem, size = 0x200, scoped, tag = 'scoped memory for cnn_1d_forward.1']
  %s0 = inlined_call_operand.vmem [shape: f32[2,200], index: 0, kind: input, shape index: {}]
  %s1 = inlined_call_operand.vmem [shape: f32[3,10,1], index: 1, kind: input, shape index: {}]
  %s2 = inlined_call_operand.vmem [shape: f32[10,1], index: 2, kind: input, shape index: {}]
  %s3 = inlined_call_operand.vmem [shape: f32[10,1], index: 3, kind: input, shape index: {}]
  %s4 = inlined_call_operand.vmem [shape: f32[10,1], index: 4, kind: input, shape index: {}]
  %s5 = inlined_call_operand.hbm [shape: f32[20,30], index: 5, kind: input, shape index: {}]
  %s6 = inlined_call_operand.vmem [shape: f32[20,1], index: 6, kind: input, shape index: {}]
  %s7 = inlined_call_operand.vmem [shape: f32[20,1], index: 7, kind: input, shape index: {}]
  %s8 = inlined_call_operand.vmem [shape: f32[20,1], index: 8, kind: input, shape index: {}]
  %s9 = inlined_call_operand.hbm [shape: f32[200,100], index: 9, kind: input, shape index: {}]
  %s10 = inlined_call_operand.hbm [shape: f32[100,50], index: 10, kind: input, shape index: {}]
  %s11 = inlined_call_operand.hbm [shape: f32[20,50,600], index: 11, kind: input, shape index: {}]
  %s12 = inlined_call_operand.hbm [shape: f32[1,600], index: 12, kind: input, shape index: {}]
  %s13 = inlined_call_operand.hbm [shape: f32[1,600], index: 13, kind: input, shape index: {}]
  %s14 = inlined_call_operand.<no memory space> [shape: f32[1,1], index: 14, kind: input, shape index: {}]
  %s15 = inlined_call_operand.vmem [shape: f32[2,1], index: 15, kind: output, shape index: {}]
  %s16 = sld [smem:[#allocation0]]
  $region94: #{cnn_1d_forward.1} parent=0
    _
  %s18 = ssub.s32 1, %s16
  %s19 = scalar_select 0, %s18, %s16
  %v20 = vstv %s14
  %21 = vst [vmem:[#allocation2] sm:$0x1] %v20
  $region1: #{cnn_1d_forward.1} parent=0
    #allocation3 [shape = 'u8[12288]{0}', space=vmem, size = 0x3000, scoped, tag = 'input window, operand 5, single buffered']
    #allocation4 [shape = 's32[1]{0}', space=sflag, size = 0x4, scoped, tag = 'scoped memory for cnn_1d_forward.1']
    #allocation5 [shape = 'u8[102400]{0}', space=vmem, size = 0x19000, scoped, tag = 'input window, operand 9, single buffered']
    #allocation6 [shape = 's32[1]{0}', space=sflag, size = 0x4, scoped, tag = 'scoped memory for cnn_1d_forward.1']
    #allocation7 [shape = 'u8[53248]{0}', space=vmem, size = 0xd000, scoped, tag = 'input window, operand 10, single buffered']
    #allocation8 [shape = 'u8[2867200]{0}', space=vmem, size = 0x2bc000, scoped, tag = 'input window, operand 11, single buffered']
    #allocation9 [shape = 's32[1]{0}', space=sflag, size = 0x4, scoped, tag = 'scoped memory for cnn_1d_forward.1']
    #allocation10 [shape = 'u8[2560]{0}', space=vmem, size = 0xc00, scoped, tag = 'input window, operand 12, single buffered']
    #allocation11 [shape = 'u8[2560]{0}', space=vmem, size = 0xc00, scoped, tag = 'input window, operand 13, single buffered']
    #allocation12 [shape = 's32[1]{0}', space=sflag, size = 0x4, scoped, tag = 'scoped memory for cnn_1d_forward.1']
    %22 = vsyncpa [#allocation4], 0
    %23 = vsyncpa [#allocation6], 0
    %24 = vsyncpa [#allocation9], 0
    %25 = vsyncpa [#allocation12], 0
    // Predicated region
    $region2: #{cnn_1d_forward.1} parent=1 // pred_check
      _
    $region3: #{cnn_1d_forward.1} parent=1 // pred_check_branch
      %27 = sbr.rel (0) target = $region5
    $region4: #{cnn_1d_forward.1} parent=1 // pred_region
      _
    $region5: #{cnn_1d_forward.1} parent=1 // pred_fallthru
      _
    // Predicated region
    $region6: #{cnn_1d_forward.1} parent=1 // pred_check
      _
    $region7: #{cnn_1d_forward.1} parent=1 // pred_check_branch
      %29 = sbr.rel (0) target = $region9
    $region8: #{cnn_1d_forward.1} parent=1 // pred_region
      _
    $region9: #{cnn_1d_forward.1} parent=1 // pred_fallthru
      _
    // Predicated region
    $region10: #{cnn_1d_forward.1} parent=1 // pred_check
      _
    $region11: #{cnn_1d_forward.1} parent=1 // pred_check_branch
      %31 = sbr.rel (0) target = $region13
    $region12: #{cnn_1d_forward.1} parent=1 // pred_region
      _
    $region13: #{cnn_1d_forward.1} parent=1 // pred_fallthru
      _
    // Predicated region
    $region14: #{cnn_1d_forward.1} parent=1 // pred_check
      _
    $region15: #{cnn_1d_forward.1} parent=1 // pred_check_branch
      %33 = sbr.rel (0) target = $region17
    $region16: #{cnn_1d_forward.1} parent=1 // pred_region
      _
    $region17: #{cnn_1d_forward.1} parent=1 // pred_fallthru
      _
    // Predicated region
    $region18: #{cnn_1d_forward.1} parent=1 // pred_check
      _
    $region19: #{cnn_1d_forward.1} parent=1 // pred_check_branch
      %35 = sbr.rel (0) target = $region21
    $region20: #{cnn_1d_forward.1} parent=1 // pred_region
      _
    $region21: #{cnn_1d_forward.1} parent=1 // pred_fallthru
      _
    // Predicated region
    $region22: #{cnn_1d_forward.1} parent=1 // pred_check
      _
    $region23: #{cnn_1d_forward.1} parent=1 // pred_check_branch
      %37 = sbr.rel (0) target = $region25
    $region24: #{cnn_1d_forward.1} parent=1 // pred_region
      %39 = vsyncadd [#allocation4], 0
      %s40 = sshll.u32 %s5, 4
      %s41 = int_to_ptr.hbm [resolvable:$true] %s40
      %s42 = sshll.u32 [#allocation3], 4
      %s43 = int_to_ptr.vmem [resolvable:$true] %s42
      %48 = dma.hbm_to_vmem [thread:$0]  %s41, 384, %s43, [#allocation4], 128, 128, 8
    $region25: #{cnn_1d_forward.1} parent=1 // pred_fallthru
      _
    // Predicated region
    $region26: #{cnn_1d_forward.1} parent=1 // pred_check
      _
    $region27: #{cnn_1d_forward.1} parent=1 // pred_check_branch
      %50 = sbr.rel (0) target = $region29
    $region28: #{cnn_1d_forward.1} parent=1 // pred_region
      _
    $region29: #{cnn_1d_forward.1} parent=1 // pred_fallthru
      _
    // Predicated region
    $region30: #{cnn_1d_forward.1} parent=1 // pred_check
      _
    $region31: #{cnn_1d_forward.1} parent=1 // pred_check_branch
      %52 = sbr.rel (0) target = $region33
    $region32: #{cnn_1d_forward.1} parent=1 // pred_region
      _
    $region33: #{cnn_1d_forward.1} parent=1 // pred_fallthru
      _
    // Predicated region
    $region34: #{cnn_1d_forward.1} parent=1 // pred_check
      _
    $region35: #{cnn_1d_forward.1} parent=1 // pred_check_branch
      %54 = sbr.rel (0) target = $region37
    $region36: #{cnn_1d_forward.1} parent=1 // pred_region
      _
    $region37: #{cnn_1d_forward.1} parent=1 // pred_fallthru
      _
    // Predicated region
    $region38: #{cnn_1d_forward.1} parent=1 // pred_check
      _
    $region39: #{cnn_1d_forward.1} parent=1 // pred_check_branch
      %56 = sbr.rel (0) target = $region41
    $region40: #{cnn_1d_forward.1} parent=1 // pred_region
      %58 = vsyncadd [#allocation6], 0
      %s59 = sshll.u32 %s9, 4
      %s60 = int_to_ptr.hbm [resolvable:$true] %s59
      %s61 = sshll.u32 [#allocation5], 4
      %s62 = int_to_ptr.vmem [resolvable:$true] %s61
      %67 = dma.hbm_to_vmem [thread:$0]  %s60, 3200, %s62, [#allocation6], 128, 128, 8
    $region41: #{cnn_1d_forward.1} parent=1 // pred_fallthru
      _
    // Predicated region
    $region42: #{cnn_1d_forward.1} parent=1 // pred_check
      _
    $region43: #{cnn_1d_forward.1} parent=1 // pred_check_branch
      %69 = sbr.rel (0) target = $region45
    $region44: #{cnn_1d_forward.1} parent=1 // pred_region
      %71 = vsyncadd [#allocation6], 0
      %s72 = sshll.u32 %s10, 4
      %s73 = int_to_ptr.hbm [resolvable:$true] %s72
      %s74 = sshll.u32 [#allocation7], 4
      %s75 = int_to_ptr.vmem [resolvable:$true] %s74
      %80 = dma.hbm_to_vmem [thread:$0]  %s73, 1664, %s75, [#allocation6], 128, 128, 8
    $region45: #{cnn_1d_forward.1} parent=1 // pred_fallthru
      _
    // Predicated region
    $region46: #{cnn_1d_forward.1} parent=1 // pred_check
      _
    $region47: #{cnn_1d_forward.1} parent=1 // pred_check_branch
      %82 = sbr.rel (0) target = $region49
    $region48: #{cnn_1d_forward.1} parent=1 // pred_region
      %84 = vsyncadd [#allocation9], 0
      %s85 = sshll.u32 %s11, 4
      %s86 = int_to_ptr.hbm [resolvable:$true] %s85
      %s87 = sshll.u32 [#allocation8], 4
      %s88 = int_to_ptr.vmem [resolvable:$true] %s87
      %93 = dma.hbm_to_vmem [thread:$0]  %s86, 89600, %s88, [#allocation9], 640, 640, 40
    $region49: #{cnn_1d_forward.1} parent=1 // pred_fallthru
      _
    // Predicated region
    $region50: #{cnn_1d_forward.1} parent=1 // pred_check
      _
    $region51: #{cnn_1d_forward.1} parent=1 // pred_check_branch
      %95 = sbr.rel (0) target = $region53
    $region52: #{cnn_1d_forward.1} parent=1 // pred_region
      %97 = vsyncadd [#allocation9], 0
      %s99 = sshll.u32 %s12, 4
      %s100 = int_to_ptr.hbm [resolvable:$true] %s99
      %s101 = sshll.u32 [#allocation10], 4
      %s102 = int_to_ptr.vmem [resolvable:$true] %s101
      %104 = dma.hbm_to_vmem [thread:$0]  %s100, 80, %s102, [#allocation9]
    $region53: #{cnn_1d_forward.1} parent=1 // pred_fallthru
      _
    // Predicated region
    $region54: #{cnn_1d_forward.1} parent=1 // pred_check
      _
    $region55: #{cnn_1d_forward.1} parent=1 // pred_check_branch
      %106 = sbr.rel (0) target = $region57
    $region56: #{cnn_1d_forward.1} parent=1 // pred_region
      %108 = vsyncadd [#allocation12], 0
      %s110 = sshll.u32 %s13, 4
      %s111 = int_to_ptr.hbm [resolvable:$true] %s110
      %s112 = sshll.u32 [#allocation11], 4
      %s113 = int_to_ptr.vmem [resolvable:$true] %s112
      %115 = dma.hbm_to_vmem [thread:$0]  %s111, 80, %s113, [#allocation12]
    $region57: #{cnn_1d_forward.1} parent=1 // pred_fallthru
      _
    // Predicated region
    $region58: #{cnn_1d_forward.1} parent=1 // pred_check
      _
    $region59: #{cnn_1d_forward.1} parent=1 // pred_check_branch
      %117 = sbr.rel (0) target = $region61
    $region60: #{cnn_1d_forward.1} parent=1 // pred_region
      _
    $region61: #{cnn_1d_forward.1} parent=1 // pred_fallthru
      _
    // Predicated region
    $region62: #{cnn_1d_forward.1} parent=1 // pred_check
      _
    $region63: #{cnn_1d_forward.1} parent=1 // pred_check_branch
      %119 = sbr.rel (0) target = $region65
    $region64: #{cnn_1d_forward.1} parent=1 // pred_region
      %121 = dma.done [#allocation4], 384
    $region65: #{cnn_1d_forward.1} parent=1 // pred_fallthru
      _
    // Predicated region
    $region66: #{cnn_1d_forward.1} parent=1 // pred_check
      _
    $region67: #{cnn_1d_forward.1} parent=1 // pred_check_branch
      %123 = sbr.rel (0) target = $region69
    $region68: #{cnn_1d_forward.1} parent=1 // pred_region
      %125 = dma.done [#allocation6], 3200
    $region69: #{cnn_1d_forward.1} parent=1 // pred_fallthru
      _
    // Predicated region
    $region70: #{cnn_1d_forward.1} parent=1 // pred_check
      _
    $region71: #{cnn_1d_forward.1} parent=1 // pred_check_branch
      %127 = sbr.rel (0) target = $region73
    $region72: #{cnn_1d_forward.1} parent=1 // pred_region
      %129 = dma.done [#allocation6], 1664
    $region73: #{cnn_1d_forward.1} parent=1 // pred_fallthru
      _
    // Predicated region
    $region74: #{cnn_1d_forward.1} parent=1 // pred_check
      _
    $region75: #{cnn_1d_forward.1} parent=1 // pred_check_branch
      %131 = sbr.rel (0) target = $region77
    $region76: #{cnn_1d_forward.1} parent=1 // pred_region
      %133 = dma.done [#allocation9], 89600
    $region77: #{cnn_1d_forward.1} parent=1 // pred_fallthru
      _
    // Predicated region
    $region78: #{cnn_1d_forward.1} parent=1 // pred_check
      _
    $region79: #{cnn_1d_forward.1} parent=1 // pred_check_branch
      %135 = sbr.rel (0) target = $region81
    $region80: #{cnn_1d_forward.1} parent=1 // pred_region
      %137 = dma.done [#allocation9], 80
    $region81: #{cnn_1d_forward.1} parent=1 // pred_fallthru
      _
    // Predicated region
    $region82: #{cnn_1d_forward.1} parent=1 // pred_check
      _
    $region83: #{cnn_1d_forward.1} parent=1 // pred_check_branch
      %139 = sbr.rel (0) target = $region85
    $region84: #{cnn_1d_forward.1} parent=1 // pred_region
      %141 = dma.done [#allocation12], 80
    $region85: #{cnn_1d_forward.1} parent=1 // pred_fallthru
      _
    %v142 = vld [vmem:[%s0] sm:$0xf]
    %v143 = vld [vmem:[%s1] sm:$0xff]
    %v144 = vld [vmem:[%s1 + $0x8] sm:$0x3]
    %v145 = vld [vmem:[%s1 + $0x10] sm:$0xff]
    %v146 = vld [vmem:[%s1 + $0x18] sm:$0x3]
    %v147 = vld [vmem:[%s1 + $0x20] sm:$0xff]
    %v148 = vld [vmem:[%s1 + $0x28] sm:$0x3]
    %150 = vst [vmem:[#allocation1] ss:$4 sm:$0xff] %v142
    %v151 = vld.sshfl [vmem:[#allocation1] sm:$0xff pattern:$0x73625140]
    %v152 = vld.sshfl [vmem:[#allocation1 + $0x8] sm:$0xff pattern:$0x73625140]
    %153 = vrot.lane.b32.xlu0 %v151, 1
    %v154 = vpop.permute.xlu0 %153
    %155 = vrot.lane.b32.xlu0 %v152, 1
    %v156 = vpop.permute.xlu0 %155
    %vm157 = vcmask 7168
    %v158 = vsel %vm157, %v154, %v156
    %v160 = vsel %vm157, 0.0, %v154
    %161 = vst [vmem:[#allocation1] ss:$4 sm:$0xff] %v142
    %v162 = vld.sshfl [vmem:[#allocation1] sm:$0xff pattern:$0x73625140]
    %v163 = vld.sshfl [vmem:[#allocation1 + $0x8] sm:$0xff pattern:$0x73625140]
    %164 = vrot.lane.b32.xlu0 %v162, 127
    %v165 = vpop.permute.xlu0 %164
    %166 = vrot.lane.b32.xlu0 %v163, 127
    %v167 = vpop.permute.xlu0 %166
    %vm168 = vcmask 1039360
    %v169 = vsel %vm168, %v165, %v167
    %vm171 = vcmask 580608
    %v172 = vsel %vm171, %v167, 0.0
    %v174 = vrot.slane %v158, 7
    %vm175 = vcmask 1040384
    %v176 = vsel %vm175, %v160, %v174
    %vm177 = vcmask 1041409
    %v178 = vsel %vm177, %v160, %v174
    %v179 = vrot.slane %v178, 1
    %181 = vset.pattern.permute.xlu0 0
    %182 = vperm.xlu0 %181, %v143
    %v183 = vpop.permute.xlu0 %182
    %186 = vset.pattern.permute.xlu0 0
    %187 = vperm.xlu0 %186, %v144
    %v188 = vpop.permute.xlu0 %187
    %v190 = vperm.slane %v176, 0
    %v191 = vperm.slane %v176, 1
    %v192 = vperm.slane %v179, 0
    %v193 = vperm.slane %v179, 1
    %v198 = vmul.f32 %v183, %v190
    %v199 = vmul.f32 %v183, %v191
    %v200 = vmul.f32 %v188, %v190
    %v201 = vmul.f32 %v188, %v191
    %v202 = vmul.f32 %v183, %v192
    %v203 = vmul.f32 %v183, %v193
    %v204 = vmul.f32 %v188, %v192
    %v205 = vmul.f32 %v188, %v193
    %v206 = vrot.slane %v142, 1
    %v207 = vrot.slane %v142, 2
    %v208 = vrot.slane %v142, 3
    %v209 = vsel %vm175, %v142, %v206
    %vm210 = vcmask 1042434
    %v211 = vsel %vm210, %v207, %v208
    %vm212 = vcmask 1041408
    %v213 = vsel %vm212, %v209, %v211
    %v214 = vsel %vm177, %v142, %v206
    %vm215 = vcmask 1043459
    %v216 = vsel %vm215, %v207, %v208
    %vm217 = vcmask 1042433
    %v218 = vsel %vm217, %v214, %v216
    %v219 = vrot.slane %v218, 1
    %221 = vset.pattern.permute.xlu0 0
    %222 = vperm.xlu0 %221, %v145
    %v223 = vpop.permute.xlu0 %222
    %226 = vset.pattern.permute.xlu0 0
    %227 = vperm.xlu0 %226, %v146
    %v228 = vpop.permute.xlu0 %227
    %v230 = vperm.slane %v213, 0
    %v231 = vperm.slane %v213, 1
    %v232 = vperm.slane %v219, 0
    %v233 = vperm.slane %v219, 1
    %v238 = vmul.f32 %v223, %v230
    %v239 = vmul.f32 %v223, %v231
    %v240 = vmul.f32 %v228, %v230
    %v241 = vmul.f32 %v228, %v231
    %v242 = vmul.f32 %v223, %v232
    %v243 = vmul.f32 %v223, %v233
    %v244 = vmul.f32 %v228, %v232
    %v245 = vmul.f32 %v228, %v233
    %v246 = vadd.f32 %v198, %v238
    %v247 = vadd.f32 %v199, %v239
    %v248 = vadd.f32 %v200, %v240
    %v249 = vadd.f32 %v201, %v241
    %v250 = vadd.f32 %v202, %v242
    %v251 = vadd.f32 %v203, %v243
    %v252 = vadd.f32 %v204, %v244
    %v253 = vadd.f32 %v205, %v245
    %v255 = vrot.slane %v172, 7
    %v256 = vsel %vm175, %v169, %v255
    %v257 = vsel %vm177, %v169, %v255
    %v258 = vrot.slane %v257, 1
    %260 = vset.pattern.permute.xlu0 0
    %261 = vperm.xlu0 %260, %v147
    %v262 = vpop.permute.xlu0 %261
    %265 = vset.pattern.permute.xlu0 0
    %266 = vperm.xlu0 %265, %v148
    %v267 = vpop.permute.xlu0 %266
    %v269 = vperm.slane %v256, 0
    %v270 = vperm.slane %v256, 1
    %v271 = vperm.slane %v258, 0
    %v272 = vperm.slane %v258, 1
    %v277 = vmul.f32 %v262, %v269
    %v278 = vmul.f32 %v262, %v270
    %v279 = vmul.f32 %v267, %v269
    %v280 = vmul.f32 %v267, %v270
    %v281 = vmul.f32 %v262, %v271
    %v282 = vmul.f32 %v262, %v272
    %v283 = vmul.f32 %v267, %v271
    %v284 = vmul.f32 %v267, %v272
    %v285 = vadd.f32 %v246, %v277
    %v286 = vadd.f32 %v247, %v278
    %v287 = vadd.f32 %v248, %v279
    %v288 = vadd.f32 %v249, %v280
    %v289 = vadd.f32 %v250, %v281
    %v290 = vadd.f32 %v251, %v282
    %v291 = vadd.f32 %v252, %v283
    %v292 = vadd.f32 %v253, %v284
    %v293 = vld [vmem:[%s2] sm:$0xff]
    %v294 = vld [vmem:[%s2 + $0x8] sm:$0x3]
    %296 = vset.pattern.permute.xlu0 0
    %297 = vperm.xlu0 %296, %v293
    %v298 = vpop.permute.xlu0 %297
    %301 = vset.pattern.permute.xlu0 0
    %302 = vperm.xlu0 %301, %v294
    %v303 = vpop.permute.xlu0 %302
    %v305 = vadd.f32 %v285, %v298
    %v306 = vadd.f32 %v286, %v298
    %v307 = vadd.f32 %v287, %v303
    %v308 = vadd.f32 %v288, %v303
    %v309 = vadd.f32 %v289, %v298
    %v310 = vadd.f32 %v290, %v298
    %v311 = vadd.f32 %v291, %v303
    %v312 = vadd.f32 %v292, %v303
    %v313 = vld [vmem:[%s3] sm:$0xff]
    %v314 = vld [vmem:[%s3 + $0x8] sm:$0x3]
    %v315 = vld [vmem:[%s4] sm:$0xff]
    %v316 = vld [vmem:[%s4 + $0x8] sm:$0x3]
    %vm317 = vcmask 588800
    %v318 = vsel %vm317, %v306, 0.0
    %v319 = vadd.f32 %v305, %v318
    %v320 = vadd.f32 %v319, %v309
    %v321 = vsel %vm317, %v310, 0.0
    %v322 = vadd.f32 %v320, %v321
    %323 = vadd.xlane.f32.xlu0 %v322
    %v324 = vpop.xlane.xlu0 %323
    %v325 = vsel %vm212, %v307, 0.0
    %vm326 = vcmask 582656
    %v327 = vsel %vm326, %v308, 0.0
    %v328 = vadd.f32 %v325, %v327
    %v329 = vsel %vm212, %v311, 0.0
    %v330 = vadd.f32 %v328, %v329
    %v331 = vsel %vm326, %v312, 0.0
    %v332 = vadd.f32 %v330, %v331
    %333 = vadd.xlane.f32.xlu0 %v332
    %v334 = vpop.xlane.xlu0 %333
    %v335 = vrcp.pop 400.0
    %v336 = vmul.f32 400.0, %v335
    %v337 = vsub.f32 1.0, %v336
    %v338 = vmul.f32 %v335, %v337
    %v339 = vadd.f32 %v335, %v338
    %vm340 = vweird.f32 %v335
    %v341 = vsel %vm340, %v335, %v339
    %v342 = vmul.f32 %v324, %v341
    %v343 = vmul.f32 %v334, %v341
    %v344 = vmul.f32 %v305, %v305
    %v345 = vmul.f32 %v306, %v306
    %v346 = vmul.f32 %v307, %v307
    %v347 = vmul.f32 %v308, %v308
    %v348 = vmul.f32 %v309, %v309
    %v349 = vmul.f32 %v310, %v310
    %v350 = vmul.f32 %v311, %v311
    %v351 = vmul.f32 %v312, %v312
    %v352 = vsel %vm317, %v345, 0.0
    %v353 = vadd.f32 %v344, %v352
    %v354 = vadd.f32 %v353, %v348
    %v355 = vsel %vm317, %v349, 0.0
    %v356 = vadd.f32 %v354, %v355
    %357 = vadd.xlane.f32.xlu0 %v356
    %v358 = vpop.xlane.xlu0 %357
    %v359 = vsel %vm212, %v346, 0.0
    %v360 = vsel %vm326, %v347, 0.0
    %v361 = vadd.f32 %v359, %v360
    %v362 = vsel %vm212, %v350, 0.0
    %v363 = vadd.f32 %v361, %v362
    %v364 = vsel %vm326, %v351, 0.0
    %v365 = vadd.f32 %v363, %v364
    %366 = vadd.xlane.f32.xlu0 %v365
    %v367 = vpop.xlane.xlu0 %366
    %v368 = vmul.f32 %v358, %v341
    %v369 = vmul.f32 %v367, %v341
    %v370 = vmul.f32 %v342, %v342
    %v371 = vmul.f32 %v343, %v343
    %v372 = vsub.f32 %v368, %v370
    %v373 = vsub.f32 %v369, %v371
    %v374 = vmax.f32 %v372, 0.0
    %v375 = vmax.f32 %v373, 0.0
    %v376 = vadd.f32 %v374, 1e-05
    %v377 = vadd.f32 %v375, 1e-05
    %v378 = vrsqrt.pop %v376
    %v379 = vmul.f32 %v378, %v376
    %v380 = vmul.f32 %v379, %v378
    %v381 = vmul.f32 0.5, %v380
    %v382 = vsub.f32 1.5, %v381
    %v383 = vmul.f32 %v378, %v382
    %vm384 = vweird.f32 %v376
    %vm385 = vweird.f32 %v378
    %vm386 = vmor %vm384, %vm385
    %v387 = vsel %vm386, %v378, %v383
    %v388 = vrsqrt.pop %v377
    %v389 = vmul.f32 %v388, %v377
    %v390 = vmul.f32 %v389, %v388
    %v391 = vmul.f32 0.5, %v390
    %v392 = vsub.f32 1.5, %v391
    %v393 = vmul.f32 %v388, %v392
    %vm394 = vweird.f32 %v377
    %vm395 = vweird.f32 %v388
    %vm396 = vmor %vm394, %vm395
    %v397 = vsel %vm396, %v388, %v393
    %v398 = vsub.f32 %v305, %v342
    %v399 = vsub.f32 %v306, %v342
    %v400 = vsub.f32 %v307, %v343
    %v401 = vsub.f32 %v308, %v343
    %v402 = vsub.f32 %v309, %v342
    %v403 = vsub.f32 %v310, %v342
    %v404 = vsub.f32 %v311, %v343
    %v405 = vsub.f32 %v312, %v343
    %407 = vset.pattern.permute.xlu0 0
    %408 = vperm.xlu0 %407, %v313
    %v409 = vpop.permute.xlu0 %408
    %412 = vset.pattern.permute.xlu0 0
    %413 = vperm.xlu0 %412, %v314
    %v414 = vpop.permute.xlu0 %413
    %v416 = vmul.f32 %v409, %v398
    %v417 = vmul.f32 %v409, %v399
    %v418 = vmul.f32 %v414, %v400
    %v419 = vmul.f32 %v414, %v401
    %v420 = vmul.f32 %v409, %v402
    %v421 = vmul.f32 %v409, %v403
    %v422 = vmul.f32 %v414, %v404
    %v423 = vmul.f32 %v414, %v405
    %v424 = vmul.f32 %v416, %v387
    %v425 = vmul.f32 %v417, %v387
    %v426 = vmul.f32 %v418, %v397
    %v427 = vmul.f32 %v419, %v397
    %v428 = vmul.f32 %v420, %v387
    %v429 = vmul.f32 %v421, %v387
    %v430 = vmul.f32 %v422, %v397
    %v431 = vmul.f32 %v423, %v397
    %433 = vset.pattern.permute.xlu0 0
    %434 = vperm.xlu0 %433, %v315
    %v435 = vpop.permute.xlu0 %434
    %438 = vset.pattern.permute.xlu0 0
    %439 = vperm.xlu0 %438, %v316
    %v440 = vpop.permute.xlu0 %439
    %v442 = vadd.f32 %v424, %v435
    %v443 = vadd.f32 %v425, %v435
    %v444 = vadd.f32 %v426, %v440
    %v445 = vadd.f32 %v427, %v440
    %v446 = vadd.f32 %v428, %v435
    %v447 = vadd.f32 %v429, %v435
    %v448 = vadd.f32 %v430, %v440
    %v449 = vadd.f32 %v431, %v440
    %v450 = vtanh.pop %v442
    %v451 = vtanh.pop %v443
    %v452 = vtanh.pop %v444
    %v453 = vtanh.pop %v445
    %v454 = vtanh.pop %v446
    %v455 = vtanh.pop %v447
    %v456 = vtanh.pop %v448
    %v457 = vtanh.pop %v449
    %v458 = vld [vmem:[#allocation5] sm:$0xff]
    %v459 = vld [vmem:[#allocation5 + $0x8] sm:$0xff]
    %v460 = vld [vmem:[#allocation5 + $0x10] sm:$0xff]
    %v461 = vld [vmem:[#allocation5 + $0x18] sm:$0xff]
    %v462 = vld [vmem:[#allocation5 + $0x20] sm:$0xff]
    %v463 = vld [vmem:[#allocation5 + $0x28] sm:$0xff]
    %v464 = vld [vmem:[#allocation5 + $0x30] sm:$0xff]
    %v465 = vld [vmem:[#allocation5 + $0x38] sm:$0xff]
    %v466 = vld [vmem:[#allocation5 + $0x40] sm:$0xff]
    %v467 = vld [vmem:[#allocation5 + $0x48] sm:$0xff]
    %v468 = vld [vmem:[#allocation5 + $0x50] sm:$0xff]
    %v469 = vld [vmem:[#allocation5 + $0x58] sm:$0xff]
    %v470 = vld [vmem:[#allocation5 + $0x60] sm:$0xff]
    %v471 = vld [vmem:[#allocation5 + $0x68] sm:$0xff]
    %v472 = vld [vmem:[#allocation5 + $0x70] sm:$0xff]
    %v473 = vld [vmem:[#allocation5 + $0x78] sm:$0xff]
    %v474 = vld [vmem:[#allocation5 + $0x80] sm:$0xff]
    %v475 = vld [vmem:[#allocation5 + $0x88] sm:$0xff]
    %v476 = vld [vmem:[#allocation5 + $0x90] sm:$0xff]
    %v477 = vld [vmem:[#allocation5 + $0x98] sm:$0xff]
    %v478 = vld [vmem:[#allocation5 + $0xa0] sm:$0xff]
    %v479 = vld [vmem:[#allocation5 + $0xa8] sm:$0xff]
    %v480 = vld [vmem:[#allocation5 + $0xb0] sm:$0xff]
    %v481 = vld [vmem:[#allocation5 + $0xb8] sm:$0xff]
    %v482 = vld [vmem:[#allocation5 + $0xc0] sm:$0xff]
    %491 = vrot.lane.b32.xlu0 %v450, 127
    %v492 = vpop.permute.xlu0 %491
    %493 = vrot.lane.b32.xlu0 %v451, 127
    %v494 = vpop.permute.xlu0 %493
    %495 = vrot.lane.b32.xlu0 %v452, 127
    %v496 = vpop.permute.xlu0 %495
    %497 = vrot.lane.b32.xlu0 %v453, 127
    %v498 = vpop.permute.xlu0 %497
    %499 = vrot.lane.b32.xlu0 %v454, 127
    %v500 = vpop.permute.xlu0 %499
    %501 = vrot.lane.b32.xlu0 %v455, 127
    %v502 = vpop.permute.xlu0 %501
    %503 = vrot.lane.b32.xlu0 %v456, 127
    %v504 = vpop.permute.xlu0 %503
    %505 = vrot.lane.b32.xlu0 %v457, 127
    %v506 = vpop.permute.xlu0 %505
    %v507 = vsel %vm168, %v492, %v494
    %v508 = vsel %vm168, %v496, %v498
    %v509 = vsel %vm168, %v500, %v502
    %v510 = vsel %vm168, %v504, %v506
    %v519 = vsel %vm171, %v494, 0.0
    %v520 = vsel %vm171, %v498, 0.0
    %v521 = vsel %vm171, %v502, 0.0
    %v522 = vsel %vm171, %v506, 0.0
    %v523 = vmax.f32 %v450, %v507
    %v524 = vmax.f32 %v451, %v519
    %v525 = vmax.f32 %v452, %v508
    %v526 = vmax.f32 %v453, %v520
    %v527 = vmax.f32 %v454, %v509
    %v528 = vmax.f32 %v455, %v521
    %v529 = vmax.f32 %v456, %v510
    %v530 = vmax.f32 %v457, %v522
    %v539 = vrot.slane %v524, 6
    %v540 = vrot.slane %v526, 6
    %v541 = vrot.slane %v528, 6
    %v542 = vrot.slane %v530, 6
    %v543 = vsel %vm212, %v523, %v539
    %vm544 = vcmask 1043458
    %v545 = vsel %vm544, %v523, %v539
    %v546 = vrot.slane %v545, 2
    %vm547 = vcmask 1045508
    %v548 = vsel %vm547, %v523, %v539
    %v549 = vrot.slane %v548, 4
    %vm550 = vcmask 1045504
    %v551 = vsel %vm550, %v539, %v523
    %v552 = vrot.slane %v551, 6
    %v553 = vsel %vm212, %v525, %v540
    %v554 = vsel %vm212, %v527, %v541
    %v555 = vsel %vm544, %v527, %v541
    %v556 = vrot.slane %v555, 2
    %v557 = vsel %vm547, %v527, %v541
    %v558 = vrot.slane %v557, 4
    %v559 = vsel %vm550, %v541, %v527
    %v560 = vrot.slane %v559, 6
    %v561 = vsel %vm212, %v529, %v542
    %562 = vst [vmem:[#allocation1] ss:$4 sm:$0xff] %v543
    %s563 = scalar_lea.vmem [#allocation1], 1
    %564 = vst [vmem:[%s563] ss:$4 sm:$0xff] %v546
    %s565 = scalar_lea.vmem [#allocation1], 2
    %566 = vst [vmem:[%s565] ss:$4 sm:$0xff] %v549
    %s567 = scalar_lea.vmem [#allocation1], 3
    %568 = vst [vmem:[%s567] ss:$4 sm:$0xff] %v552
    %s569 = scalar_lea.vmem [#allocation1], 32
    %570 = vst [vmem:[%s569] ss:$4 sm:$0xff] %v553
    %s571 = scalar_lea.vmem [#allocation1], 33
    %572 = vst [vmem:[%s571] ss:$4 sm:$0xff] %v554
    %s573 = scalar_lea.vmem [#allocation1], 34
    %574 = vst [vmem:[%s573] ss:$4 sm:$0xff] %v556
    %s575 = scalar_lea.vmem [#allocation1], 35
    %576 = vst [vmem:[%s575] ss:$4 sm:$0xff] %v558
    %v577 = vld.sshfl [vmem:[#allocation1] sm:$0xff pattern:$0x73625140]
    %v578 = vld.sshfl [vmem:[#allocation1 + $0x8] sm:$0xff pattern:$0x73625140]
    %v579 = vld.sshfl [vmem:[#allocation1 + $0x20] sm:$0xff pattern:$0x73625140]
    %v580 = vld.sshfl [vmem:[#allocation1 + $0x28] sm:$0xff pattern:$0x73625140]
    %581 = vst [vmem:[#allocation1] ss:$4 sm:$0xff] %v560
    %582 = vst [vmem:[%s563] ss:$4 sm:$0xff] %v561
    %v583 = vld.sshfl [vmem:[#allocation1] sm:$0xff pattern:$0x73625140]
    %v584 = vld.sshfl [vmem:[#allocation1 + $0x8] sm:$0xff pattern:$0x73625140]
    %v588 = vsel %vm317, %v578, 0
    %v590 = vsel %vm317, %v580, 0
    %v592 = vsel %vm317, %v584, 0
    %594 = vmatpush.msra.mxu0 %v473
    %595 = vmatpush.msra.mxu0 %v472
    %596 = vmatpush.msra.mxu0 %v471
    %597 = vmatpush.msra.mxu0 %v470
    %598 = vmatpush.msra.mxu0 %v469
    %599 = vmatpush.msra.mxu0 %v468
    %600 = vmatpush.msra.mxu0 %v467
    %601 = vmatpush.msra.mxu0 %v466
    %602 = vmatpush.msra.mxu0 %v465
    %603 = vmatpush.msra.mxu0 %v464
    %604 = vmatpush.msra.mxu0 %v463
    %605 = vmatpush.msra.mxu0 %v462
    %606 = vmatpush.msra.mxu0 %v461
    %607 = vmatpush.msra.mxu0 %v460
    %608 = vmatpush.msra.mxu0 %v459
    %609 = vmatpush.msra.mxu0 %v458
    %610 = vmatmul.f32.gmra.mxu0 %v577
    %v611 = vpop.f32.mrf.mxu0
    %v612 = vadd.f32 0.0, %v611
    %613 = vmatmul.f32.gmra.mxu0 %v579
    %v614 = vpop.f32.mrf.mxu0
    %v615 = vadd.f32 0.0, %v614
    %616 = vmatmul.f32.gmra.mxu0 %v583
    %v617 = vpop.f32.mrf.mxu0
    %v618 = vadd.f32 0.0, %v617
    %619 = vdwg.mxu0
    %620 = vmatpush.msra.mxu0 0.0
    %621 = vmatpush.msra.mxu0 0.0
    %622 = vmatpush.msra.mxu0 0.0
    %623 = vmatpush.msra.mxu0 0.0
    %624 = vmatpush.msra.mxu0 0.0
    %625 = vmatpush.msra.mxu0 0.0
    %626 = vmatpush.msra.mxu0 0.0
    %627 = vmatpush.msra.mxu0 %v482
    %628 = vmatpush.msra.mxu0 %v481
    %629 = vmatpush.msra.mxu0 %v480
    %630 = vmatpush.msra.mxu0 %v479
    %631 = vmatpush.msra.mxu0 %v478
    %632 = vmatpush.msra.mxu0 %v477
    %633 = vmatpush.msra.mxu0 %v476
    %634 = vmatpush.msra.mxu0 %v475
    %635 = vmatpush.msra.mxu0 %v474
    %636 = vmatmul.f32.gmra.mxu0 %v588
    %v637 = vpop.f32.mrf.mxu0
    %v638 = vadd.f32 %v612, %v637
    %639 = vmatmul.f32.gmra.mxu0 %v590
    %v640 = vpop.f32.mrf.mxu0
    %v641 = vadd.f32 %v615, %v640
    %642 = vmatmul.f32.gmra.mxu0 %v592
    %v643 = vpop.f32.mrf.mxu0
    %v644 = vadd.f32 %v618, %v643
    %645 = vdwg.mxu0
    %v649 = vrot.slane %v638, 2
    %v650 = vrot.slane %v638, 4
    %v651 = vrot.slane %v638, 6
    %v652 = vrot.slane %v641, 2
    %v653 = vrot.slane %v641, 4
    %v654 = vrot.slane %v641, 6
    %v655 = vrot.slane %v644, 2
    %656 = vst [vmem:[#allocation1] ss:$4 sm:$0xff] %v638
    %s657 = scalar_lea.vmem [#allocation1], 1
    %658 = vst [vmem:[%s657] ss:$4 sm:$0xff] %v649
    %s659 = scalar_lea.vmem [#allocation1], 2
    %660 = vst [vmem:[%s659] ss:$4 sm:$0xff] %v650
    %s661 = scalar_lea.vmem [#allocation1], 3
    %662 = vst [vmem:[%s661] ss:$4 sm:$0xff] %v651
    %s663 = scalar_lea.vmem [#allocation1], 32
    %664 = vst [vmem:[%s663] ss:$4 sm:$0xff] %v641
    %v665 = vld.sshfl [vmem:[#allocation1] sm:$0xff pattern:$0x73625140]
    %v666 = vld.sshfl [vmem:[#allocation1 + $0x20] sm:$0xff pattern:$0x73625140]
    %667 = vst [vmem:[#allocation1] ss:$4 sm:$0xff] %v652
    %668 = vst [vmem:[%s657] ss:$4 sm:$0xff] %v653
    %669 = vst [vmem:[%s659] ss:$4 sm:$0xff] %v654
    %670 = vst [vmem:[%s661] ss:$4 sm:$0xff] %v644
    %671 = vst [vmem:[%s663] ss:$4 sm:$0xff] %v655
    %v672 = vld.sshfl [vmem:[#allocation1] sm:$0xff pattern:$0x73625140]
    %v673 = vld.sshfl [vmem:[#allocation1 + $0x20] sm:$0xff pattern:$0x73625140]
    %674 = vrot.lane.b32.xlu0 %v665, 1
    %v675 = vpop.permute.xlu0 %674
    %676 = vrot.lane.b32.xlu0 %v666, 1
    %v677 = vpop.permute.xlu0 %676
    %678 = vrot.lane.b32.xlu0 %v672, 1
    %v679 = vpop.permute.xlu0 %678
    %680 = vrot.lane.b32.xlu0 %v673, 1
    %v681 = vpop.permute.xlu0 %680
    %v686 = vsel %vm157, 0.0, %v675
    %v687 = vsel %vm157, 0.0, %v677
    %v688 = vsel %vm157, 0.0, %v679
    %v689 = vsel %vm157, 0.0, %v681
    %690 = vst [vmem:[#allocation1] ss:$4 sm:$0xff] %v638
    %s691 = scalar_lea.vmem [#allocation1], 1
    %692 = vst [vmem:[%s691] ss:$4 sm:$0xff] %v649
    %s693 = scalar_lea.vmem [#allocation1], 2
    %694 = vst [vmem:[%s693] ss:$4 sm:$0xff] %v650
    %s695 = scalar_lea.vmem [#allocation1], 3
    %696 = vst [vmem:[%s695] ss:$4 sm:$0xff] %v651
    %s697 = scalar_lea.vmem [#allocation1], 32
    %698 = vst [vmem:[%s697] ss:$4 sm:$0xff] %v641
    %v699 = vld.sshfl [vmem:[#allocation1] sm:$0xff pattern:$0x73625140]
    %v700 = vld.sshfl [vmem:[#allocation1 + $0x20] sm:$0xff pattern:$0x73625140]
    %701 = vst [vmem:[#allocation1] ss:$4 sm:$0xff] %v652
    %702 = vst [vmem:[%s691] ss:$4 sm:$0xff] %v653
    %703 = vst [vmem:[%s693] ss:$4 sm:$0xff] %v654
    %704 = vst [vmem:[%s695] ss:$4 sm:$0xff] %v644
    %705 = vst [vmem:[%s697] ss:$4 sm:$0xff] %v655
    %v706 = vld.sshfl [vmem:[#allocation1] sm:$0xff pattern:$0x73625140]
    %v707 = vld.sshfl [vmem:[#allocation1 + $0x20] sm:$0xff pattern:$0x73625140]
    %708 = vrot.lane.b32.xlu0 %v699, 127
    %v709 = vpop.permute.xlu0 %708
    %710 = vrot.lane.b32.xlu0 %v700, 127
    %v711 = vpop.permute.xlu0 %710
    %712 = vrot.lane.b32.xlu0 %v706, 127
    %v713 = vpop.permute.xlu0 %712
    %714 = vrot.lane.b32.xlu0 %v707, 127
    %v715 = vpop.permute.xlu0 %714
    %vm720 = vcmask 809984
    %v721 = vsel %vm720, %v709, 0.0
    %v722 = vsel %vm720, %v711, 0.0
    %v723 = vsel %vm720, %v713, 0.0
    %v724 = vsel %vm720, %v715, 0.0
    %s725 = scalar_lea.vmem [#allocation1], 1
    %726 = vst [vmem:[%s725] ss:$4 sm:$0xff] %v638
    %s727 = scalar_lea.vmem [#allocation1], 2
    %728 = vst [vmem:[%s727] ss:$4 sm:$0xff] %v649
    %s729 = scalar_lea.vmem [#allocation1], 3
    %730 = vst [vmem:[%s729] ss:$4 sm:$0xff] %v650
    %s731 = scalar_lea.vmem [#allocation1], 32
    %732 = vst [vmem:[%s731] ss:$4 sm:$0xff] %v651
    %s733 = scalar_lea.vmem [#allocation1], 33
    %734 = vst [vmem:[%s733] ss:$4 sm:$0xff] %v641
    %v735 = vld.sshfl [vmem:[#allocation1] sm:$0xff pattern:$0x73625140]
    %v736 = vld.sshfl [vmem:[#allocation1 + $0x20] sm:$0xff pattern:$0x73625140]
    %737 = vst [vmem:[%s725] ss:$4 sm:$0xff] %v652
    %738 = vst [vmem:[%s727] ss:$4 sm:$0xff] %v653
    %739 = vst [vmem:[%s729] ss:$4 sm:$0xff] %v654
    %740 = vst [vmem:[%s731] ss:$4 sm:$0xff] %v644
    %741 = vst [vmem:[%s733] ss:$4 sm:$0xff] %v655
    %v742 = vld.sshfl [vmem:[#allocation1] sm:$0xff pattern:$0x73625140]
    %v743 = vld.sshfl [vmem:[#allocation1 + $0x20] sm:$0xff pattern:$0x73625140]
    %vm752 = vcmask 1043456
    %v753 = vrot.slane %v721, 4
    %v754 = vrot.slane %v722, 4
    %v755 = vsel %vm752, %v753, %v754
    %v756 = vrot.slane %v723, 4
    %v757 = vrot.slane %v724, 4
    %v758 = vsel %vm752, %v756, %v757
    %v763 = vsel %vm212, %v687, %v735
    %v764 = vsel %vm212, %v689, %v742
    %v765 = vsel %vm752, %v736, %v753
    %v766 = vsel %vm752, %v743, %v756
    %v767 = vld [vmem:[#allocation3] sm:$0xff]
    %v768 = vld [vmem:[#allocation3 + $0x8] sm:$0xff]
    %v769 = vld [vmem:[#allocation3 + $0x10] sm:$0xf]
    %770 = vxpose.xlu0.b32.start [1/16] %v686, 128
    %771 = vxpose.xlu0.b32.cont [2/16] %v763, 128
    %772 = vxpose.xlu0.b32.cont [3/16] %v765, 128
    %773 = vxpose.xlu0.b32.cont [4/16] %v755, 128
    %774 = vxpose.xlu0.b32.cont [5/16] 0.0, 128
    %775 = vxpose.xlu0.b32.cont [6/16] 0.0, 128
    %776 = vxpose.xlu0.b32.cont [7/16] 0.0, 128
    %777 = vxpose.xlu0.b32.cont [8/16] 0.0, 128
    %778 = vxpose.xlu0.b32.cont [9/16] 0.0, 128
    %779 = vxpose.xlu0.b32.cont [10/16] 0.0, 128
    %780 = vxpose.xlu0.b32.cont [11/16] 0.0, 128
    %781 = vxpose.xlu0.b32.cont [12/16] 0.0, 128
    %782 = vxpose.xlu0.b32.cont [13/16] 0.0, 128
    %783 = vxpose.xlu0.b32.cont [14/16] 0.0, 128
    %784 = vxpose.xlu0.b32.cont [15/16] 0.0, 128
    %785 = vxpose.xlu0.b32.end [16/16] 0.0, 128
    %v786 = vpop.trf.xlu0
    %v787 = vpop.trf.xlu0
    %v788 = vpop.trf.xlu0
    %v789 = vpop.trf.xlu0
    %v790 = vpop.trf.xlu0
    %v791 = vpop.trf.xlu0
    %v792 = vpop.trf.xlu0
    %v793 = vpop.trf.xlu0
    %v794 = vpop.trf.xlu0
    %v795 = vpop.trf.xlu0
    %v796 = vpop.trf.xlu0
    %v797 = vpop.trf.xlu0
    %v798 = vpop.trf.xlu0
    %v799 = vpop.trf.xlu0
    %v800 = vpop.trf.xlu0
    %v801 = vpop.trf.xlu0
    %802 = vxpose.xlu0.b32.start [1/16] %v688, 128
    %803 = vxpose.xlu0.b32.cont [2/16] %v764, 128
    %804 = vxpose.xlu0.b32.cont [3/16] %v766, 128
    %805 = vxpose.xlu0.b32.cont [4/16] %v758, 128
    %806 = vxpose.xlu0.b32.cont [5/16] 0.0, 128
    %807 = vxpose.xlu0.b32.cont [6/16] 0.0, 128
    %808 = vxpose.xlu0.b32.cont [7/16] 0.0, 128
    %809 = vxpose.xlu0.b32.cont [8/16] 0.0, 128
    %810 = vxpose.xlu0.b32.cont [9/16] 0.0, 128
    %811 = vxpose.xlu0.b32.cont [10/16] 0.0, 128
    %812 = vxpose.xlu0.b32.cont [11/16] 0.0, 128
    %813 = vxpose.xlu0.b32.cont [12/16] 0.0, 128
    %814 = vxpose.xlu0.b32.cont [13/16] 0.0, 128
    %815 = vxpose.xlu0.b32.cont [14/16] 0.0, 128
    %816 = vxpose.xlu0.b32.cont [15/16] 0.0, 128
    %817 = vxpose.xlu0.b32.end [16/16] 0.0, 128
    %v818 = vpop.trf.xlu0
    %v819 = vpop.trf.xlu0
    %v820 = vpop.trf.xlu0
    %v821 = vpop.trf.xlu0
    %v822 = vpop.trf.xlu0
    %v823 = vpop.trf.xlu0
    %v824 = vpop.trf.xlu0
    %v825 = vpop.trf.xlu0
    %v826 = vpop.trf.xlu0
    %v827 = vpop.trf.xlu0
    %v828 = vpop.trf.xlu0
    %v829 = vpop.trf.xlu0
    %v830 = vpop.trf.xlu0
    %v831 = vpop.trf.xlu0
    %v832 = vpop.trf.xlu0
    %v833 = vpop.trf.xlu0
    %v860 = vrot.slane %v786, 4
    %v861 = vrot.slane %v787, 4
    %v862 = vrot.slane %v788, 4
    %v863 = vrot.slane %v789, 4
    %v864 = vrot.slane %v790, 4
    %v865 = vrot.slane %v791, 4
    %v866 = vrot.slane %v792, 4
    %v867 = vrot.slane %v793, 4
    %v868 = vrot.slane %v794, 4
    %v869 = vrot.slane %v795, 4
    %v870 = vrot.slane %v796, 4
    %v871 = vrot.slane %v797, 4
    %v872 = vrot.slane %v818, 4
    %v873 = vrot.slane %v819, 4
    %v874 = vrot.slane %v820, 4
    %v875 = vrot.slane %v821, 4
    %v876 = vrot.slane %v822, 4
    %v877 = vrot.slane %v823, 4
    %v878 = vrot.slane %v824, 4
    %v879 = vrot.slane %v825, 4
    %v880 = vrot.slane %v826, 4
    %v881 = vrot.slane %v827, 4
    %v882 = vrot.slane %v828, 4
    %v883 = vrot.slane %v829, 4
    %884 = vst [vmem:[#allocation1] ss:$2 sm:$0xff] %v786
    %s885 = scalar_lea.vmem [#allocation1], 1
    %886 = vst [vmem:[%s885] ss:$2 sm:$0xff] %v860
    %s887 = scalar_lea.vmem [#allocation1], 16
    %888 = vst [vmem:[%s887] ss:$2 sm:$0xff] %v787
    %s889 = scalar_lea.vmem [#allocation1], 17
    %890 = vst [vmem:[%s889] ss:$2 sm:$0xff] %v861
    %s891 = scalar_lea.vmem [#allocation1], 32
    %892 = vst [vmem:[%s891] ss:$2 sm:$0xff] %v788
    %s893 = scalar_lea.vmem [#allocation1], 33
    %894 = vst [vmem:[%s893] ss:$2 sm:$0xff] %v862
    %s895 = scalar_lea.vmem [#allocation1], 48
    %896 = vst [vmem:[%s895] ss:$2 sm:$0xff] %v789
    %s897 = scalar_lea.vmem [#allocation1], 49
    %898 = vst [vmem:[%s897] ss:$2 sm:$0xff] %v863
    %v899 = vld.sshfl [vmem:[#allocation1] sm:$0xff pattern:$0x75316420]
    %v900 = vld.sshfl [vmem:[#allocation1 + $0x10] sm:$0xff pattern:$0x75316420]
    %v901 = vld.sshfl [vmem:[#allocation1 + $0x20] sm:$0xff pattern:$0x75316420]
    %v902 = vld.sshfl [vmem:[#allocation1 + $0x30] sm:$0xff pattern:$0x75316420]
    %903 = vst [vmem:[#allocation1] ss:$2 sm:$0xff] %v790
    %904 = vst [vmem:[%s885] ss:$2 sm:$0xff] %v864
    %905 = vst [vmem:[%s887] ss:$2 sm:$0xff] %v791
    %906 = vst [vmem:[%s889] ss:$2 sm:$0xff] %v865
    %907 = vst [vmem:[%s891] ss:$2 sm:$0xff] %v792
    %908 = vst [vmem:[%s893] ss:$2 sm:$0xff] %v866
    %909 = vst [vmem:[%s895] ss:$2 sm:$0xff] %v793
    %910 = vst [vmem:[%s897] ss:$2 sm:$0xff] %v867
    %v911 = vld.sshfl [vmem:[#allocation1] sm:$0xff pattern:$0x75316420]
    %v912 = vld.sshfl [vmem:[#allocation1 + $0x10] sm:$0xff pattern:$0x75316420]
    %v913 = vld.sshfl [vmem:[#allocation1 + $0x20] sm:$0xff pattern:$0x75316420]
    %v914 = vld.sshfl [vmem:[#allocation1 + $0x30] sm:$0xff pattern:$0x75316420]
    %915 = vst [vmem:[#allocation1] ss:$2 sm:$0xff] %v794
    %916 = vst [vmem:[%s885] ss:$2 sm:$0xff] %v868
    %917 = vst [vmem:[%s887] ss:$2 sm:$0xff] %v795
    %918 = vst [vmem:[%s889] ss:$2 sm:$0xff] %v869
    %919 = vst [vmem:[%s891] ss:$2 sm:$0xff] %v796
    %920 = vst [vmem:[%s893] ss:$2 sm:$0xff] %v870
    %921 = vst [vmem:[%s895] ss:$2 sm:$0xff] %v797
    %922 = vst [vmem:[%s897] ss:$2 sm:$0xff] %v871
    %v923 = vld.sshfl [vmem:[#allocation1] sm:$0xff pattern:$0x75316420]
    %v924 = vld.sshfl [vmem:[#allocation1 + $0x10] sm:$0xff pattern:$0x75316420]
    %v925 = vld.sshfl [vmem:[#allocation1 + $0x20] sm:$0xff pattern:$0x75316420]
    %v926 = vld.sshfl [vmem:[#allocation1 + $0x30] sm:$0xff pattern:$0x75316420]
    %927 = vst [vmem:[#allocation1] ss:$2 sm:$0xff] %v798
    %928 = vst [vmem:[%s885] ss:$2 sm:$0xff] %v818
    %929 = vst [vmem:[%s887] ss:$2 sm:$0xff] %v872
    %930 = vst [vmem:[%s889] ss:$2 sm:$0xff] %v819
    %931 = vst [vmem:[%s891] ss:$2 sm:$0xff] %v873
    %932 = vst [vmem:[%s893] ss:$2 sm:$0xff] %v820
    %933 = vst [vmem:[%s895] ss:$2 sm:$0xff] %v874
    %934 = vst [vmem:[%s897] ss:$2 sm:$0xff] %v821
    %v935 = vld.sshfl [vmem:[#allocation1] sm:$0xff pattern:$0x75316420]
    %v936 = vld.sshfl [vmem:[#allocation1 + $0x10] sm:$0xff pattern:$0x75316420]
    %v937 = vld.sshfl [vmem:[#allocation1 + $0x20] sm:$0xff pattern:$0x75316420]
    %v938 = vld.sshfl [vmem:[#allocation1 + $0x30] sm:$0xff pattern:$0x75316420]
    %939 = vst [vmem:[#allocation1] ss:$2 sm:$0xff] %v875
    %940 = vst [vmem:[%s885] ss:$2 sm:$0xff] %v822
    %941 = vst [vmem:[%s887] ss:$2 sm:$0xff] %v876
    %942 = vst [vmem:[%s889] ss:$2 sm:$0xff] %v823
    %943 = vst [vmem:[%s891] ss:$2 sm:$0xff] %v877
    %944 = vst [vmem:[%s893] ss:$2 sm:$0xff] %v824
    %945 = vst [vmem:[%s895] ss:$2 sm:$0xff] %v878
    %946 = vst [vmem:[%s897] ss:$2 sm:$0xff] %v825
    %v947 = vld.sshfl [vmem:[#allocation1] sm:$0xff pattern:$0x75316420]
    %v948 = vld.sshfl [vmem:[#allocation1 + $0x10] sm:$0xff pattern:$0x75316420]
    %v949 = vld.sshfl [vmem:[#allocation1 + $0x20] sm:$0xff pattern:$0x75316420]
    %v950 = vld.sshfl [vmem:[#allocation1 + $0x30] sm:$0xff pattern:$0x75316420]
    %951 = vst [vmem:[#allocation1] ss:$2 sm:$0xff] %v879
    %952 = vst [vmem:[%s885] ss:$2 sm:$0xff] %v826
    %953 = vst [vmem:[%s887] ss:$2 sm:$0xff] %v880
    %954 = vst [vmem:[%s889] ss:$2 sm:$0xff] %v827
    %955 = vst [vmem:[%s891] ss:$2 sm:$0xff] %v881
    %956 = vst [vmem:[%s893] ss:$2 sm:$0xff] %v828
    %957 = vst [vmem:[%s895] ss:$2 sm:$0xff] %v882
    %958 = vst [vmem:[%s897] ss:$2 sm:$0xff] %v829
    %v959 = vld.sshfl [vmem:[#allocation1] sm:$0xff pattern:$0x75316420]
    %v960 = vld.sshfl [vmem:[#allocation1 + $0x10] sm:$0xff pattern:$0x75316420]
    %v961 = vld.sshfl [vmem:[#allocation1 + $0x20] sm:$0xff pattern:$0x75316420]
    %v962 = vld.sshfl [vmem:[#allocation1 + $0x30] sm:$0xff pattern:$0x75316420]
    %963 = vst [vmem:[#allocation1] ss:$2 sm:$0xff] %v883
    %964 = vst [vmem:[%s885] ss:$2 sm:$0xff] %v830
    %v965 = vld.sshfl [vmem:[#allocation1] sm:$0xff pattern:$0x75316420]
    %vm966 = vcmask 244736
    %v967 = vsel %vm966, %v899, 0
    %v969 = vsel %vm966, %v900, 0
    %v971 = vsel %vm966, %v901, 0
    %v973 = vsel %vm966, %v902, 0
    %v975 = vsel %vm966, %v911, 0
    %v977 = vsel %vm966, %v912, 0
    %v979 = vsel %vm966, %v913, 0
    %v981 = vsel %vm966, %v914, 0
    %v983 = vsel %vm966, %v923, 0
    %v985 = vsel %vm966, %v924, 0
    %v987 = vsel %vm966, %v925, 0
    %v989 = vsel %vm966, %v926, 0
    %v991 = vsel %vm966, %v935, 0
    %v993 = vsel %vm966, %v936, 0
    %v995 = vsel %vm966, %v937, 0
    %v997 = vsel %vm966, %v938, 0
    %v999 = vsel %vm966, %v947, 0
    %v1001 = vsel %vm966, %v948, 0
    %v1003 = vsel %vm966, %v949, 0
    %v1005 = vsel %vm966, %v950, 0
    %v1007 = vsel %vm966, %v959, 0
    %v1009 = vsel %vm966, %v960, 0
    %v1011 = vsel %vm966, %v961, 0
    %v1013 = vsel %vm966, %v962, 0
    %v1015 = vsel %vm966, %v965, 0
    %v1018 = vsel %vm966, %v767, 0
    %v1021 = vsel %vm966, %v768, 0
    %v1024 = vsel %vm966, %v769, 0
    %1026 = vmatpush.xpose.msra.mxu0 0.0
    %1027 = vmatpush.xpose.msra.mxu0 0.0
    %1028 = vmatpush.xpose.msra.mxu0 0.0
    %1029 = vmatpush.xpose.msra.mxu0 0.0
    %1030 = vmatpush.xpose.msra.mxu0 0.0
    %1031 = vmatpush.xpose.msra.mxu0 0.0
    %1032 = vmatpush.xpose.msra.mxu0 0.0
    %1033 = vmatpush.xpose.msra.mxu0 0.0
    %1034 = vmatpush.xpose.msra.mxu0 0.0
    %1035 = vmatpush.xpose.msra.mxu0 0.0
    %1036 = vmatpush.xpose.msra.mxu0 0.0
    %1037 = vmatpush.xpose.msra.mxu0 0.0
    %1038 = vmatpush.xpose.msra.mxu0 0.0
    %1039 = vmatpush.xpose.msra.mxu0 %v1024
    %1040 = vmatpush.xpose.msra.mxu0 %v1021
    %1041 = vmatpush.xpose.msra.mxu0 %v1018
    %1042 = vmatmul.f32.gmra.mxu0 %v967
    %v1043 = vpop.f32.mrf.mxu0
    %v1044 = vadd.f32 0.0, %v1043
    %1045 = vmatmul.f32.gmra.mxu0 %v969
    %v1046 = vpop.f32.mrf.mxu0
    %v1047 = vadd.f32 0.0, %v1046
    %1048 = vmatmul.f32.gmra.mxu0 %v971
    %v1049 = vpop.f32.mrf.mxu0
    %v1050 = vadd.f32 0.0, %v1049
    %1051 = vmatmul.f32.gmra.mxu0 %v973
    %v1052 = vpop.f32.mrf.mxu0
    %v1053 = vadd.f32 0.0, %v1052
    %1054 = vmatmul.f32.gmra.mxu0 %v975
    %v1055 = vpop.f32.mrf.mxu0
    %v1056 = vadd.f32 0.0, %v1055
    %1057 = vmatmul.f32.gmra.mxu0 %v977
    %v1058 = vpop.f32.mrf.mxu0
    %v1059 = vadd.f32 0.0, %v1058
    %1060 = vmatmul.f32.gmra.mxu0 %v979
    %v1061 = vpop.f32.mrf.mxu0
    %v1062 = vadd.f32 0.0, %v1061
    %1063 = vmatmul.f32.gmra.mxu0 %v981
    %v1064 = vpop.f32.mrf.mxu0
    %v1065 = vadd.f32 0.0, %v1064
    %1066 = vmatmul.f32.gmra.mxu0 %v983
    %v1067 = vpop.f32.mrf.mxu0
    %v1068 = vadd.f32 0.0, %v1067
    %1069 = vmatmul.f32.gmra.mxu0 %v985
    %v1070 = vpop.f32.mrf.mxu0
    %v1071 = vadd.f32 0.0, %v1070
    %1072 = vmatmul.f32.gmra.mxu0 %v987
    %v1073 = vpop.f32.mrf.mxu0
    %v1074 = vadd.f32 0.0, %v1073
    %1075 = vmatmul.f32.gmra.mxu0 %v989
    %v1076 = vpop.f32.mrf.mxu0
    %v1077 = vadd.f32 0.0, %v1076
    %1078 = vmatmul.f32.gmra.mxu0 %v991
    %v1079 = vpop.f32.mrf.mxu0
    %v1080 = vadd.f32 0.0, %v1079
    %1081 = vmatmul.f32.gmra.mxu0 %v993
    %v1082 = vpop.f32.mrf.mxu0
    %v1083 = vadd.f32 0.0, %v1082
    %1084 = vmatmul.f32.gmra.mxu0 %v995
    %v1085 = vpop.f32.mrf.mxu0
    %v1086 = vadd.f32 0.0, %v1085
    %1087 = vmatmul.f32.gmra.mxu0 %v997
    %v1088 = vpop.f32.mrf.mxu0
    %v1089 = vadd.f32 0.0, %v1088
    %1090 = vmatmul.f32.gmra.mxu0 %v999
    %v1091 = vpop.f32.mrf.mxu0
    %v1092 = vadd.f32 0.0, %v1091
    %1093 = vmatmul.f32.gmra.mxu0 %v1001
    %v1094 = vpop.f32.mrf.mxu0
    %v1095 = vadd.f32 0.0, %v1094
    %1096 = vmatmul.f32.gmra.mxu0 %v1003
    %v1097 = vpop.f32.mrf.mxu0
    %v1098 = vadd.f32 0.0, %v1097
    %1099 = vmatmul.f32.gmra.mxu0 %v1005
    %v1100 = vpop.f32.mrf.mxu0
    %v1101 = vadd.f32 0.0, %v1100
    %1102 = vmatmul.f32.gmra.mxu0 %v1007
    %v1103 = vpop.f32.mrf.mxu0
    %v1104 = vadd.f32 0.0, %v1103
    %1105 = vmatmul.f32.gmra.mxu0 %v1009
    %v1106 = vpop.f32.mrf.mxu0
    %v1107 = vadd.f32 0.0, %v1106
    %1108 = vmatmul.f32.gmra.mxu0 %v1011
    %v1109 = vpop.f32.mrf.mxu0
    %v1110 = vadd.f32 0.0, %v1109
    %1111 = vmatmul.f32.gmra.mxu0 %v1013
    %v1112 = vpop.f32.mrf.mxu0
    %v1113 = vadd.f32 0.0, %v1112
    %1114 = vmatmul.f32.gmra.mxu0 %v1015
    %v1115 = vpop.f32.mrf.mxu0
    %v1116 = vadd.f32 0.0, %v1115
    %1117 = vdwg.mxu0
    %v1143 = vrot.slane %v1044, 4
    %v1144 = vrot.slane %v1047, 4
    %v1145 = vrot.slane %v1050, 4
    %v1146 = vrot.slane %v1053, 4
    %v1147 = vrot.slane %v1056, 4
    %v1148 = vrot.slane %v1059, 4
    %v1149 = vrot.slane %v1062, 4
    %v1150 = vrot.slane %v1065, 4
    %v1151 = vrot.slane %v1068, 4
    %v1152 = vrot.slane %v1071, 4
    %v1153 = vrot.slane %v1074, 4
    %v1154 = vrot.slane %v1077, 4
    %v1155 = vrot.slane %v1080, 4
    %v1156 = vrot.slane %v1083, 4
    %v1157 = vrot.slane %v1086, 4
    %v1158 = vrot.slane %v1089, 4
    %v1159 = vrot.slane %v1092, 4
    %v1160 = vrot.slane %v1095, 4
    %v1161 = vrot.slane %v1098, 4
    %v1162 = vrot.slane %v1101, 4
    %v1163 = vrot.slane %v1104, 4
    %v1164 = vrot.slane %v1107, 4
    %v1165 = vrot.slane %v1110, 4
    %v1166 = vrot.slane %v1113, 4
    %v1167 = vrot.slane %v1116, 4
    %1168 = vst [vmem:[#allocation1] ss:$2 sm:$0xff] %v1044
    %s1169 = scalar_lea.vmem [#allocation1], 1
    %1170 = vst [vmem:[%s1169] ss:$2 sm:$0xff] %v1143
    %s1171 = scalar_lea.vmem [#allocation1], 16
    %1172 = vst [vmem:[%s1171] ss:$2 sm:$0xff] %v1047
    %s1173 = scalar_lea.vmem [#allocation1], 17
    %1174 = vst [vmem:[%s1173] ss:$2 sm:$0xff] %v1144
    %s1175 = scalar_lea.vmem [#allocation1], 32
    %1176 = vst [vmem:[%s1175] ss:$2 sm:$0xff] %v1050
    %s1177 = scalar_lea.vmem [#allocation1], 33
    %1178 = vst [vmem:[%s1177] ss:$2 sm:$0xff] %v1145
    %s1179 = scalar_lea.vmem [#allocation1], 48
    %1180 = vst [vmem:[%s1179] ss:$2 sm:$0xff] %v1053
    %s1181 = scalar_lea.vmem [#allocation1], 49
    %1182 = vst [vmem:[%s1181] ss:$2 sm:$0xff] %v1146
    %v1183 = vld.sshfl [vmem:[#allocation1] sm:$0xff pattern:$0x75316420]
    %v1184 = vld.sshfl [vmem:[#allocation1 + $0x10] sm:$0xff pattern:$0x75316420]
    %v1185 = vld.sshfl [vmem:[#allocation1 + $0x20] sm:$0xff pattern:$0x75316420]
    %v1186 = vld.sshfl [vmem:[#allocation1 + $0x30] sm:$0xff pattern:$0x75316420]
    %1187 = vst [vmem:[#allocation1] ss:$2 sm:$0xff] %v1056
    %1188 = vst [vmem:[%s1169] ss:$2 sm:$0xff] %v1147
    %1189 = vst [vmem:[%s1171] ss:$2 sm:$0xff] %v1059
    %1190 = vst [vmem:[%s1173] ss:$2 sm:$0xff] %v1148
    %1191 = vst [vmem:[%s1175] ss:$2 sm:$0xff] %v1062
    %1192 = vst [vmem:[%s1177] ss:$2 sm:$0xff] %v1149
    %1193 = vst [vmem:[%s1179] ss:$2 sm:$0xff] %v1065
    %1194 = vst [vmem:[%s1181] ss:$2 sm:$0xff] %v1150
    %v1195 = vld.sshfl [vmem:[#allocation1] sm:$0xff pattern:$0x75316420]
    %v1196 = vld.sshfl [vmem:[#allocation1 + $0x10] sm:$0xff pattern:$0x75316420]
    %v1197 = vld.sshfl [vmem:[#allocation1 + $0x20] sm:$0xff pattern:$0x75316420]
    %v1198 = vld.sshfl [vmem:[#allocation1 + $0x30] sm:$0xff pattern:$0x75316420]
    %1199 = vst [vmem:[#allocation1] ss:$2 sm:$0xff] %v1068
    %1200 = vst [vmem:[%s1169] ss:$2 sm:$0xff] %v1151
    %1201 = vst [vmem:[%s1171] ss:$2 sm:$0xff] %v1071
    %1202 = vst [vmem:[%s1173] ss:$2 sm:$0xff] %v1152
    %1203 = vst [vmem:[%s1175] ss:$2 sm:$0xff] %v1074
    %1204 = vst [vmem:[%s1177] ss:$2 sm:$0xff] %v1153
    %1205 = vst [vmem:[%s1179] ss:$2 sm:$0xff] %v1077
    %1206 = vst [vmem:[%s1181] ss:$2 sm:$0xff] %v1154
    %v1207 = vld.sshfl [vmem:[#allocation1] sm:$0xff pattern:$0x75316420]
    %v1208 = vld.sshfl [vmem:[#allocation1 + $0x10] sm:$0xff pattern:$0x75316420]
    %v1209 = vld.sshfl [vmem:[#allocation1 + $0x20] sm:$0xff pattern:$0x75316420]
    %v1210 = vld.sshfl [vmem:[#allocation1 + $0x30] sm:$0xff pattern:$0x75316420]
    %1211 = vst [vmem:[#allocation1] ss:$2 sm:$0xff] %v1080
    %v1212 = vld.sshfl [vmem:[#allocation1] sm:$0xff pattern:$0x75316420]
    %1213 = vst [vmem:[%s1171] ss:$2 sm:$0xff] %v1155
    %1214 = vst [vmem:[%s1173] ss:$2 sm:$0xff] %v1083
    %1215 = vst [vmem:[%s1175] ss:$2 sm:$0xff] %v1156
    %1216 = vst [vmem:[%s1177] ss:$2 sm:$0xff] %v1086
    %1217 = vst [vmem:[%s1179] ss:$2 sm:$0xff] %v1157
    %1218 = vst [vmem:[%s1181] ss:$2 sm:$0xff] %v1089
    %v1219 = vld.sshfl [vmem:[#allocation1 + $0x10] sm:$0xff pattern:$0x75316420]
    %v1220 = vld.sshfl [vmem:[#allocation1 + $0x20] sm:$0xff pattern:$0x75316420]
    %v1221 = vld.sshfl [vmem:[#allocation1 + $0x30] sm:$0xff pattern:$0x75316420]
    %1222 = vst [vmem:[#allocation1] ss:$2 sm:$0xff] %v1158
    %1223 = vst [vmem:[%s1169] ss:$2 sm:$0xff] %v1092
    %1224 = vst [vmem:[%s1171] ss:$2 sm:$0xff] %v1159
    %1225 = vst [vmem:[%s1173] ss:$2 sm:$0xff] %v1095
    %1226 = vst [vmem:[%s1175] ss:$2 sm:$0xff] %v1160
    %1227 = vst [vmem:[%s1177] ss:$2 sm:$0xff] %v1098
    %1228 = vst [vmem:[%s1179] ss:$2 sm:$0xff] %v1161
    %1229 = vst [vmem:[%s1181] ss:$2 sm:$0xff] %v1101
    %v1230 = vld.sshfl [vmem:[#allocation1] sm:$0xff pattern:$0x75316420]
    %v1231 = vld.sshfl [vmem:[#allocation1 + $0x10] sm:$0xff pattern:$0x75316420]
    %v1232 = vld.sshfl [vmem:[#allocation1 + $0x20] sm:$0xff pattern:$0x75316420]
    %v1233 = vld.sshfl [vmem:[#allocation1 + $0x30] sm:$0xff pattern:$0x75316420]
    %1234 = vst [vmem:[#allocation1] ss:$2 sm:$0xff] %v1162
    %1235 = vst [vmem:[%s1169] ss:$2 sm:$0xff] %v1104
    %1236 = vst [vmem:[%s1171] ss:$2 sm:$0xff] %v1163
    %1237 = vst [vmem:[%s1173] ss:$2 sm:$0xff] %v1107
    %1238 = vst [vmem:[%s1175] ss:$2 sm:$0xff] %v1164
    %1239 = vst [vmem:[%s1177] ss:$2 sm:$0xff] %v1110
    %1240 = vst [vmem:[%s1179] ss:$2 sm:$0xff] %v1165
    %1241 = vst [vmem:[%s1181] ss:$2 sm:$0xff] %v1113
    %v1242 = vld.sshfl [vmem:[#allocation1] sm:$0xff pattern:$0x75316420]
    %v1243 = vld.sshfl [vmem:[#allocation1 + $0x10] sm:$0xff pattern:$0x75316420]
    %v1244 = vld.sshfl [vmem:[#allocation1 + $0x20] sm:$0xff pattern:$0x75316420]
    %v1245 = vld.sshfl [vmem:[#allocation1 + $0x30] sm:$0xff pattern:$0x75316420]
    %1246 = vst [vmem:[#allocation1] ss:$2 sm:$0xff] %v1166
    %1247 = vst [vmem:[%s1169] ss:$2 sm:$0xff] %v1116
    %1248 = vst [vmem:[%s1171] ss:$2 sm:$0xff] %v1167
    %v1249 = vld.sshfl [vmem:[#allocation1] sm:$0xff pattern:$0x75316420]
    %v1250 = vld.sshfl [vmem:[#allocation1 + $0x10] sm:$0xff pattern:$0x75316420]
    %1277 = vxpose.xlu0.b32.start [1/16] %v1183, 128
    %1278 = vxpose.xlu0.b32.cont [2/16] %v1184, 128
    %1279 = vxpose.xlu0.b32.cont [3/16] %v1185, 128
    %1280 = vxpose.xlu0.b32.cont [4/16] %v1186, 128
    %1281 = vxpose.xlu0.b32.cont [5/16] %v1195, 128
    %1282 = vxpose.xlu0.b32.cont [6/16] %v1196, 128
    %1283 = vxpose.xlu0.b32.cont [7/16] %v1197, 128
    %1284 = vxpose.xlu0.b32.cont [8/16] %v1198, 128
    %1285 = vxpose.xlu0.b32.cont [9/16] %v1207, 128
    %1286 = vxpose.xlu0.b32.cont [10/16] %v1208, 128
    %1287 = vxpose.xlu0.b32.cont [11/16] %v1209, 128
    %1288 = vxpose.xlu0.b32.cont [12/16] %v1210, 128
    %1289 = vxpose.xlu0.b32.cont [13/16] %v1212, 128
    %1290 = vxpose.xlu0.b32.cont [14/16] 0.0, 128
    %1291 = vxpose.xlu0.b32.cont [15/16] 0.0, 128
    %1292 = vxpose.xlu0.b32.end [16/16] 0.0, 128
    %v1293 = vpop.trf.xlu0
    %v1294 = vpop.trf.xlu0
    %v1295 = vpop.trf.xlu0
    %v1296 = vpop.trf.xlu0
    %v1297 = vpop.trf.xlu0
    %v1298 = vpop.trf.xlu0
    %v1299 = vpop.trf.xlu0
    %v1300 = vpop.trf.xlu0
    %v1301 = vpop.trf.xlu0
    %v1302 = vpop.trf.xlu0
    %v1303 = vpop.trf.xlu0
    %v1304 = vpop.trf.xlu0
    %v1305 = vpop.trf.xlu0
    %v1306 = vpop.trf.xlu0
    %v1307 = vpop.trf.xlu0
    %v1308 = vpop.trf.xlu0
    %1309 = vxpose.xlu0.b32.start [1/16] %v1219, 128
    %1310 = vxpose.xlu0.b32.cont [2/16] %v1220, 128
    %1311 = vxpose.xlu0.b32.cont [3/16] %v1221, 128
    %1312 = vxpose.xlu0.b32.cont [4/16] %v1230, 128
    %1313 = vxpose.xlu0.b32.cont [5/16] %v1231, 128
    %1314 = vxpose.xlu0.b32.cont [6/16] %v1232, 128
    %1315 = vxpose.xlu0.b32.cont [7/16] %v1233, 128
    %1316 = vxpose.xlu0.b32.cont [8/16] %v1242, 128
    %1317 = vxpose.xlu0.b32.cont [9/16] %v1243, 128
    %1318 = vxpose.xlu0.b32.cont [10/16] %v1244, 128
    %1319 = vxpose.xlu0.b32.cont [11/16] %v1245, 128
    %1320 = vxpose.xlu0.b32.cont [12/16] %v1249, 128
    %1321 = vxpose.xlu0.b32.cont [13/16] %v1250, 128
    %1322 = vxpose.xlu0.b32.cont [14/16] 0.0, 128
    %1323 = vxpose.xlu0.b32.cont [15/16] 0.0, 128
    %1324 = vxpose.xlu0.b32.end [16/16] 0.0, 128
    %v1325 = vpop.trf.xlu0
    %v1326 = vpop.trf.xlu0
    %v1327 = vpop.trf.xlu0
    %v1328 = vpop.trf.xlu0
    %v1329 = vpop.trf.xlu0
    %v1330 = vpop.trf.xlu0
    %v1331 = vpop.trf.xlu0
    %v1332 = vpop.trf.xlu0
    %v1333 = vpop.trf.xlu0
    %v1334 = vpop.trf.xlu0
    %v1335 = vpop.trf.xlu0
    %v1336 = vpop.trf.xlu0
    %v1337 = vpop.trf.xlu0
    %v1338 = vpop.trf.xlu0
    %v1339 = vpop.trf.xlu0
    %v1340 = vpop.trf.xlu0
    %v1341 = vld [vmem:[%s6] sm:$0xff]
    %v1342 = vld [vmem:[%s6 + $0x8] sm:$0xff]
    %v1343 = vld [vmem:[%s6 + $0x10] sm:$0xf]
    %1345 = vset.pattern.permute.xlu0 0
    %1346 = vperm.xlu0 %1345, %v1341
    %v1347 = vpop.permute.xlu0 %1346
    %1350 = vset.pattern.permute.xlu0 0
    %1351 = vperm.xlu0 %1350, %v1342
    %v1352 = vpop.permute.xlu0 %1351
    %1355 = vset.pattern.permute.xlu0 0
    %1356 = vperm.xlu0 %1355, %v1343
    %v1357 = vpop.permute.xlu0 %1356
    %v1359 = vadd.f32 %v1293, %v1347
    %v1360 = vadd.f32 %v1294, %v1352
    %v1361 = vadd.f32 %v1295, %v1357
    %v1362 = vadd.f32 %v1325, %v1347
    %v1363 = vadd.f32 %v1326, %v1352
    %v1364 = vadd.f32 %v1327, %v1357
    %v1365 = vld [vmem:[%s7] sm:$0xff]
    %v1366 = vld [vmem:[%s7 + $0x8] sm:$0xff]
    %v1367 = vld [vmem:[%s7 + $0x10] sm:$0xf]
    %v1368 = vld [vmem:[%s8] sm:$0xff]
    %v1369 = vld [vmem:[%s8 + $0x8] sm:$0xff]
    %v1370 = vld [vmem:[%s8 + $0x10] sm:$0xf]
    %vm1371 = vcmask 818176
    %v1372 = vsel %vm1371, %v1359, 0.0
    %v1373 = vsel %vm1371, %v1362, 0.0
    %v1374 = vadd.f32 %v1372, %v1373
    %1375 = vadd.xlane.f32.xlu0 %v1374
    %v1376 = vpop.xlane.xlu0 %1375
    %v1377 = vsel %vm1371, %v1360, 0.0
    %v1378 = vsel %vm1371, %v1363, 0.0
    %v1379 = vadd.f32 %v1377, %v1378
    %1380 = vadd.xlane.f32.xlu0 %v1379
    %v1381 = vpop.xlane.xlu0 %1380
    %vm1382 = vcmask 814080
    %v1383 = vsel %vm1382, %v1361, 0.0
    %v1384 = vsel %vm1382, %v1364, 0.0
    %v1385 = vadd.f32 %v1383, %v1384
    %1386 = vadd.xlane.f32.xlu0 %v1385
    %v1387 = vpop.xlane.xlu0 %1386
    %v1388 = vrcp.pop 200.0
    %v1389 = vmul.f32 200.0, %v1388
    %v1390 = vsub.f32 1.0, %v1389
    %v1391 = vmul.f32 %v1388, %v1390
    %v1392 = vadd.f32 %v1388, %v1391
    %vm1393 = vweird.f32 %v1388
    %v1394 = vsel %vm1393, %v1388, %v1392
    %v1395 = vmul.f32 %v1376, %v1394
    %v1396 = vmul.f32 %v1381, %v1394
    %v1397 = vmul.f32 %v1387, %v1394
    %v1398 = vmul.f32 %v1359, %v1359
    %v1399 = vmul.f32 %v1360, %v1360
    %v1400 = vmul.f32 %v1361, %v1361
    %v1401 = vmul.f32 %v1362, %v1362
    %v1402 = vmul.f32 %v1363, %v1363
    %v1403 = vmul.f32 %v1364, %v1364
    %v1404 = vsel %vm1371, %v1398, 0.0
    %v1405 = vsel %vm1371, %v1401, 0.0
    %v1406 = vadd.f32 %v1404, %v1405
    %1407 = vadd.xlane.f32.xlu0 %v1406
    %v1408 = vpop.xlane.xlu0 %1407
    %v1409 = vsel %vm1371, %v1399, 0.0
    %v1410 = vsel %vm1371, %v1402, 0.0
    %v1411 = vadd.f32 %v1409, %v1410
    %1412 = vadd.xlane.f32.xlu0 %v1411
    %v1413 = vpop.xlane.xlu0 %1412
    %v1414 = vsel %vm1382, %v1400, 0.0
    %v1415 = vsel %vm1382, %v1403, 0.0
    %v1416 = vadd.f32 %v1414, %v1415
    %1417 = vadd.xlane.f32.xlu0 %v1416
    %v1418 = vpop.xlane.xlu0 %1417
    %v1419 = vmul.f32 %v1408, %v1394
    %v1420 = vmul.f32 %v1413, %v1394
    %v1421 = vmul.f32 %v1418, %v1394
    %v1422 = vmul.f32 %v1395, %v1395
    %v1423 = vmul.f32 %v1396, %v1396
    %v1424 = vmul.f32 %v1397, %v1397
    %v1425 = vsub.f32 %v1419, %v1422
    %v1426 = vsub.f32 %v1420, %v1423
    %v1427 = vsub.f32 %v1421, %v1424
    %v1428 = vmax.f32 %v1425, 0.0
    %v1429 = vmax.f32 %v1426, 0.0
    %v1430 = vmax.f32 %v1427, 0.0
    %v1431 = vadd.f32 %v1428, 1e-05
    %v1432 = vadd.f32 %v1429, 1e-05
    %v1433 = vadd.f32 %v1430, 1e-05
    %v1434 = vrsqrt.pop %v1431
    %v1435 = vmul.f32 %v1434, %v1431
    %v1436 = vmul.f32 %v1435, %v1434
    %v1437 = vmul.f32 0.5, %v1436
    %v1438 = vsub.f32 1.5, %v1437
    %v1439 = vmul.f32 %v1434, %v1438
    %vm1440 = vweird.f32 %v1431
    %vm1441 = vweird.f32 %v1434
    %vm1442 = vmor %vm1440, %vm1441
    %v1443 = vsel %vm1442, %v1434, %v1439
    %v1444 = vrsqrt.pop %v1432
    %v1445 = vmul.f32 %v1444, %v1432
    %v1446 = vmul.f32 %v1445, %v1444
    %v1447 = vmul.f32 0.5, %v1446
    %v1448 = vsub.f32 1.5, %v1447
    %v1449 = vmul.f32 %v1444, %v1448
    %vm1450 = vweird.f32 %v1432
    %vm1451 = vweird.f32 %v1444
    %vm1452 = vmor %vm1450, %vm1451
    %v1453 = vsel %vm1452, %v1444, %v1449
    %v1454 = vrsqrt.pop %v1433
    %v1455 = vmul.f32 %v1454, %v1433
    %v1456 = vmul.f32 %v1455, %v1454
    %v1457 = vmul.f32 0.5, %v1456
    %v1458 = vsub.f32 1.5, %v1457
    %v1459 = vmul.f32 %v1454, %v1458
    %vm1460 = vweird.f32 %v1433
    %vm1461 = vweird.f32 %v1454
    %vm1462 = vmor %vm1460, %vm1461
    %v1463 = vsel %vm1462, %v1454, %v1459
    %v1464 = vsub.f32 %v1359, %v1395
    %v1465 = vsub.f32 %v1360, %v1396
    %v1466 = vsub.f32 %v1361, %v1397
    %v1467 = vsub.f32 %v1362, %v1395
    %v1468 = vsub.f32 %v1363, %v1396
    %v1469 = vsub.f32 %v1364, %v1397
    %1471 = vset.pattern.permute.xlu0 0
    %1472 = vperm.xlu0 %1471, %v1365
    %v1473 = vpop.permute.xlu0 %1472
    %1476 = vset.pattern.permute.xlu0 0
    %1477 = vperm.xlu0 %1476, %v1366
    %v1478 = vpop.permute.xlu0 %1477
    %1481 = vset.pattern.permute.xlu0 0
    %1482 = vperm.xlu0 %1481, %v1367
    %v1483 = vpop.permute.xlu0 %1482
    %v1485 = vmul.f32 %v1473, %v1464
    %v1486 = vmul.f32 %v1478, %v1465
    %v1487 = vmul.f32 %v1483, %v1466
    %v1488 = vmul.f32 %v1473, %v1467
    %v1489 = vmul.f32 %v1478, %v1468
    %v1490 = vmul.f32 %v1483, %v1469
    %v1491 = vmul.f32 %v1485, %v1443
    %v1492 = vmul.f32 %v1486, %v1453
    %v1493 = vmul.f32 %v1487, %v1463
    %v1494 = vmul.f32 %v1488, %v1443
    %v1495 = vmul.f32 %v1489, %v1453
    %v1496 = vmul.f32 %v1490, %v1463
    %1498 = vset.pattern.permute.xlu0 0
    %1499 = vperm.xlu0 %1498, %v1368
    %v1500 = vpop.permute.xlu0 %1499
    %1503 = vset.pattern.permute.xlu0 0
    %1504 = vperm.xlu0 %1503, %v1369
    %v1505 = vpop.permute.xlu0 %1504
    %1508 = vset.pattern.permute.xlu0 0
    %1509 = vperm.xlu0 %1508, %v1370
    %v1510 = vpop.permute.xlu0 %1509
    %v1512 = vadd.f32 %v1491, %v1500
    %v1513 = vadd.f32 %v1492, %v1505
    %v1514 = vadd.f32 %v1493, %v1510
    %v1515 = vadd.f32 %v1494, %v1500
    %v1516 = vadd.f32 %v1495, %v1505
    %v1517 = vadd.f32 %v1496, %v1510
    %v1518 = vtanh.pop %v1512
    %v1519 = vtanh.pop %v1513
    %v1520 = vtanh.pop %v1514
    %v1521 = vtanh.pop %v1515
    %v1522 = vtanh.pop %v1516
    %v1523 = vtanh.pop %v1517
    %v1524 = vld [vmem:[#allocation7] sm:$0xff]
    %v1525 = vld [vmem:[#allocation7 + $0x8] sm:$0xff]
    %v1526 = vld [vmem:[#allocation7 + $0x10] sm:$0xff]
    %v1527 = vld [vmem:[#allocation7 + $0x18] sm:$0xff]
    %v1528 = vld [vmem:[#allocation7 + $0x20] sm:$0xff]
    %v1529 = vld [vmem:[#allocation7 + $0x28] sm:$0xff]
    %v1530 = vld [vmem:[#allocation7 + $0x30] sm:$0xff]
    %v1531 = vld [vmem:[#allocation7 + $0x38] sm:$0xff]
    %v1532 = vld [vmem:[#allocation7 + $0x40] sm:$0xff]
    %v1533 = vld [vmem:[#allocation7 + $0x48] sm:$0xff]
    %v1534 = vld [vmem:[#allocation7 + $0x50] sm:$0xff]
    %v1535 = vld [vmem:[#allocation7 + $0x58] sm:$0xff]
    %v1536 = vld [vmem:[#allocation7 + $0x60] sm:$0xf]
    %1543 = vrot.lane.b32.xlu0 %v1518, 127
    %v1544 = vpop.permute.xlu0 %1543
    %1545 = vrot.lane.b32.xlu0 %v1519, 127
    %v1546 = vpop.permute.xlu0 %1545
    %1547 = vrot.lane.b32.xlu0 %v1520, 127
    %v1548 = vpop.permute.xlu0 %1547
    %1549 = vrot.lane.b32.xlu0 %v1521, 127
    %v1550 = vpop.permute.xlu0 %1549
    %1551 = vrot.lane.b32.xlu0 %v1522, 127
    %v1552 = vpop.permute.xlu0 %1551
    %1553 = vrot.lane.b32.xlu0 %v1523, 127
    %v1554 = vpop.permute.xlu0 %1553
    %v1561 = vsel %vm720, %v1544, 0.0
    %v1562 = vsel %vm720, %v1546, 0.0
    %v1563 = vsel %vm720, %v1548, 0.0
    %v1564 = vsel %vm720, %v1550, 0.0
    %v1565 = vsel %vm720, %v1552, 0.0
    %v1566 = vsel %vm720, %v1554, 0.0
    %v1567 = vmax.f32 %v1518, %v1561
    %v1568 = vmax.f32 %v1519, %v1562
    %v1569 = vmax.f32 %v1520, %v1563
    %v1570 = vmax.f32 %v1521, %v1564
    %v1571 = vmax.f32 %v1522, %v1565
    %v1572 = vmax.f32 %v1523, %v1566
    %v1579 = vrot.slane %v1567, 4
    %v1580 = vrot.slane %v1568, 4
    %v1581 = vrot.slane %v1570, 4
    %v1582 = vrot.slane %v1571, 4
    %1583 = vst [vmem:[#allocation1] ss:$2 sm:$0xff] %v1567
    %s1584 = scalar_lea.vmem [#allocation1], 1
    %1585 = vst [vmem:[%s1584] ss:$2 sm:$0xff] %v1579
    %s1586 = scalar_lea.vmem [#allocation1], 16
    %1587 = vst [vmem:[%s1586] ss:$2 sm:$0xff] %v1568
    %s1588 = scalar_lea.vmem [#allocation1], 17
    %1589 = vst [vmem:[%s1588] ss:$2 sm:$0xff] %v1580
    %s1590 = scalar_lea.vmem [#allocation1], 32
    %1591 = vst [vmem:[%s1590] ss:$2 sm:$0xff] %v1569
    %s1592 = scalar_lea.vmem [#allocation1], 33
    %1593 = vst [vmem:[%s1592] ss:$2 sm:$0xff] %v1570
    %s1594 = scalar_lea.vmem [#allocation1], 48
    %1595 = vst [vmem:[%s1594] ss:$2 sm:$0xff] %v1581
    %s1596 = scalar_lea.vmem [#allocation1], 49
    %1597 = vst [vmem:[%s1596] ss:$2 sm:$0xff] %v1571
    %v1598 = vld.sshfl [vmem:[#allocation1] sm:$0xff pattern:$0x75316420]
    %v1599 = vld.sshfl [vmem:[#allocation1 + $0x10] sm:$0xff pattern:$0x75316420]
    %v1600 = vld.sshfl [vmem:[#allocation1 + $0x20] sm:$0xff pattern:$0x75316420]
    %v1601 = vld.sshfl [vmem:[#allocation1 + $0x30] sm:$0xff pattern:$0x75316420]
    %1602 = vst [vmem:[#allocation1] ss:$2 sm:$0xff] %v1582
    %1603 = vst [vmem:[%s1584] ss:$2 sm:$0xff] %v1572
    %v1604 = vld.sshfl [vmem:[#allocation1] sm:$0xff pattern:$0x75316420]
    %v1605 = vsel %vm1371, %v1598, 0
    %v1607 = vsel %vm1371, %v1599, 0
    %v1609 = vsel %vm1371, %v1600, 0
    %v1611 = vsel %vm1371, %v1601, 0
    %v1613 = vsel %vm1371, %v1604, 0
    %v1616 = vsel %vm752, %v1536, 0
    %1618 = vmatpush.msra.mxu0 0.0
    %1619 = vmatpush.msra.mxu0 0.0
    %1620 = vmatpush.msra.mxu0 0.0
    %1621 = vmatpush.msra.mxu0 %v1616
    %1622 = vmatpush.msra.mxu0 %v1535
    %1623 = vmatpush.msra.mxu0 %v1534
    %1624 = vmatpush.msra.mxu0 %v1533
    %1625 = vmatpush.msra.mxu0 %v1532
    %1626 = vmatpush.msra.mxu0 %v1531
    %1627 = vmatpush.msra.mxu0 %v1530
    %1628 = vmatpush.msra.mxu0 %v1529
    %1629 = vmatpush.msra.mxu0 %v1528
    %1630 = vmatpush.msra.mxu0 %v1527
    %1631 = vmatpush.msra.mxu0 %v1526
    %1632 = vmatpush.msra.mxu0 %v1525
    %1633 = vmatpush.msra.mxu0 %v1524
    %1634 = vmatmul.f32.gmra.mxu0 %v1605
    %v1635 = vpop.f32.mrf.mxu0
    %v1636 = vadd.f32 0.0, %v1635
    %1637 = vmatmul.f32.gmra.mxu0 %v1607
    %v1638 = vpop.f32.mrf.mxu0
    %v1639 = vadd.f32 0.0, %v1638
    %1640 = vmatmul.f32.gmra.mxu0 %v1609
    %v1641 = vpop.f32.mrf.mxu0
    %v1642 = vadd.f32 0.0, %v1641
    %1643 = vmatmul.f32.gmra.mxu0 %v1611
    %v1644 = vpop.f32.mrf.mxu0
    %v1645 = vadd.f32 0.0, %v1644
    %1646 = vmatmul.f32.gmra.mxu0 %v1613
    %v1647 = vpop.f32.mrf.mxu0
    %v1648 = vadd.f32 0.0, %v1647
    %1649 = vdwg.mxu0
    %v1655 = vrot.slane %v1636, 4
    %v1656 = vrot.slane %v1639, 4
    %v1657 = vrot.slane %v1642, 4
    %v1658 = vrot.slane %v1645, 4
    %v1659 = vrot.slane %v1648, 4
    %v1661 = vunpack.c.l.s4 1983009808
    %v1662 = vunpack.c.0.s8 %v1661
    %v1663 = vperm.slane %v1636, %v1662
    %v1666 = vunpack.c.l.s4 1983009808
    %v1667 = vunpack.c.0.s8 %v1666
    %v1668 = vperm.slane %v1657, %v1667
    %v1669 = vrot.slane %v1668, 4
    %vm1670 = vcmask 1047556
    %v1671 = vsel %vm1670, %v1669, %v1663
    %v1672 = vrot.slane %v1663, 4
    %v1673 = vsel %vm1670, %v1668, %v1672
    %v1675 = vunpack.c.l.s4 1934713408
    %v1676 = vunpack.c.0.s8 %v1675
    %v1677 = vperm.slane %v1671, %v1676
    %v1679 = vunpack.c.l.s4 1934713408
    %v1680 = vunpack.c.0.s8 %v1679
    %v1681 = vperm.slane %v1673, %v1680
    %v1682 = vrot.slane %v1677, 4
    %v1683 = vsel %vm1670, 0.0, %v1682
    %v1684 = vrot.slane %v1681, 4
    %v1685 = vsel %vm1670, 0.0, %v1684
    %v1688 = vunpack.c.l.s4 1983009808
    %v1689 = vunpack.c.0.s8 %v1688
    %v1690 = vperm.slane %v1655, %v1689
    %v1692 = vunpack.c.l.s4 1983009808
    %v1693 = vunpack.c.0.s8 %v1692
    %v1694 = vperm.slane %v1645, %v1693
    %v1695 = vrot.slane %v1694, 4
    %v1696 = vsel %vm1670, %v1695, %v1690
    %v1697 = vrot.slane %v1690, 4
    %v1698 = vsel %vm1670, %v1694, %v1697
    %v1700 = vunpack.c.l.s4 1934713408
    %v1701 = vunpack.c.0.s8 %v1700
    %v1702 = vperm.slane %v1696, %v1701
    %v1704 = vunpack.c.l.s4 1934713408
    %v1705 = vunpack.c.0.s8 %v1704
    %v1706 = vperm.slane %v1698, %v1705
    %v1707 = vrot.slane %v1702, 4
    %v1708 = vsel %vm1670, 0.0, %v1707
    %v1709 = vrot.slane %v1706, 4
    %v1710 = vsel %vm1670, 0.0, %v1709
    %v1712 = vunpack.c.l.s4 1983009808
    %v1713 = vunpack.c.0.s8 %v1712
    %v1714 = vperm.slane %v1639, %v1713
    %v1717 = vunpack.c.l.s4 1983009808
    %v1718 = vunpack.c.0.s8 %v1717
    %v1719 = vperm.slane %v1658, %v1718
    %v1720 = vrot.slane %v1719, 4
    %v1721 = vsel %vm1670, %v1720, %v1714
    %v1722 = vrot.slane %v1714, 4
    %v1723 = vsel %vm1670, %v1719, %v1722
    %v1725 = vunpack.c.l.s4 1934713408
    %v1726 = vunpack.c.0.s8 %v1725
    %v1727 = vperm.slane %v1721, %v1726
    %v1729 = vunpack.c.l.s4 1934713408
    %v1730 = vunpack.c.0.s8 %v1729
    %v1731 = vperm.slane %v1723, %v1730
    %v1732 = vrot.slane %v1727, 4
    %v1733 = vsel %vm1670, 0.0, %v1732
    %v1734 = vrot.slane %v1731, 4
    %v1735 = vsel %vm1670, 0.0, %v1734
    %v1738 = vunpack.c.l.s4 1983009808
    %v1739 = vunpack.c.0.s8 %v1738
    %v1740 = vperm.slane %v1656, %v1739
    %v1742 = vunpack.c.l.s4 1983009808
    %v1743 = vunpack.c.0.s8 %v1742
    %v1744 = vperm.slane %v1648, %v1743
    %v1745 = vrot.slane %v1744, 4
    %v1746 = vsel %vm1670, %v1745, %v1740
    %v1747 = vrot.slane %v1740, 4
    %v1748 = vsel %vm1670, %v1744, %v1747
    %v1750 = vunpack.c.l.s4 1934713408
    %v1751 = vunpack.c.0.s8 %v1750
    %v1752 = vperm.slane %v1746, %v1751
    %v1754 = vunpack.c.l.s4 1934713408
    %v1755 = vunpack.c.0.s8 %v1754
    %v1756 = vperm.slane %v1748, %v1755
    %v1757 = vrot.slane %v1752, 4
    %v1758 = vsel %vm1670, 0.0, %v1757
    %v1759 = vrot.slane %v1756, 4
    %v1760 = vsel %vm1670, 0.0, %v1759
    %v1762 = vunpack.c.l.s4 1983009808
    %v1763 = vunpack.c.0.s8 %v1762
    %v1764 = vperm.slane %v1642, %v1763
    %v1767 = vunpack.c.l.s4 1983009808
    %v1768 = vunpack.c.0.s8 %v1767
    %v1769 = vperm.slane %v1659, %v1768
    %v1770 = vrot.slane %v1769, 4
    %v1771 = vsel %vm1670, %v1770, %v1764
    %v1772 = vrot.slane %v1764, 4
    %v1773 = vsel %vm1670, %v1769, %v1772
    %v1775 = vunpack.c.l.s4 1934713408
    %v1776 = vunpack.c.0.s8 %v1775
    %v1777 = vperm.slane %v1771, %v1776
    %v1779 = vunpack.c.l.s4 1934713408
    %v1780 = vunpack.c.0.s8 %v1779
    %v1781 = vperm.slane %v1773, %v1780
    %v1782 = vrot.slane %v1777, 4
    %v1783 = vsel %vm1670, 0.0, %v1782
    %v1784 = vrot.slane %v1781, 4
    %v1785 = vsel %vm1670, 0.0, %v1784
    %v1786 = vld [vmem:[#allocation8] sm:$0xff]
    %v1787 = vld [vmem:[#allocation8 + $0x8] sm:$0xff]
    %v1788 = vld [vmem:[#allocation8 + $0x10] sm:$0xff]
    %v1789 = vld [vmem:[#allocation8 + $0x18] sm:$0xff]
    %v1790 = vld [vmem:[#allocation8 + $0x20] sm:$0xff]
    %v1791 = vld [vmem:[#allocation8 + $0x28] sm:$0xff]
    %v1792 = vld [vmem:[#allocation8 + $0x30] sm:$0xff]
    %v1793 = vld [vmem:[#allocation8 + $0x38] sm:$0xff]
    %v1794 = vld [vmem:[#allocation8 + $0x40] sm:$0xff]
    %v1795 = vld [vmem:[#allocation8 + $0x48] sm:$0xff]
    %v1796 = vld [vmem:[#allocation8 + $0x50] sm:$0xff]
    %v1797 = vld [vmem:[#allocation8 + $0x58] sm:$0xff]
    %v1798 = vld [vmem:[#allocation8 + $0x60] sm:$0xff]
    %v1799 = vld [vmem:[#allocation8 + $0x68] sm:$0xff]
    %v1800 = vld [vmem:[#allocation8 + $0x70] sm:$0xff]
    %v1801 = vld [vmem:[#allocation8 + $0x78] sm:$0xff]
    %v1802 = vld [vmem:[#allocation8 + $0x80] sm:$0xff]
    %v1803 = vld [vmem:[#allocation8 + $0x88] sm:$0xff]
    %v1804 = vld [vmem:[#allocation8 + $0x90] sm:$0xff]
    %v1805 = vld [vmem:[#allocation8 + $0x98] sm:$0xff]
    %v1806 = vld [vmem:[#allocation8 + $0xa0] sm:$0xff]
    %v1807 = vld [vmem:[#allocation8 + $0xa8] sm:$0xff]
    %v1808 = vld [vmem:[#allocation8 + $0xb0] sm:$0xff]
    %v1809 = vld [vmem:[#allocation8 + $0xb8] sm:$0xff]
    %v1810 = vld [vmem:[#allocation8 + $0xc0] sm:$0xff]
    %v1811 = vld [vmem:[#allocation8 + $0xc8] sm:$0xff]
    %v1812 = vld [vmem:[#allocation8 + $0xd0] sm:$0xff]
    %v1813 = vld [vmem:[#allocation8 + $0xd8] sm:$0xff]
    %v1814 = vld [vmem:[#allocation8 + $0xe0] sm:$0xff]
    %v1815 = vld [vmem:[#allocation8 + $0xe8] sm:$0xff]
    %v1816 = vld [vmem:[#allocation8 + $0xf0] sm:$0x3]
    %v1817 = vld [vmem:[#allocation8 + $0xf8] sm:$0x3]
    %v1818 = vld [vmem:[#allocation8 + $0x100] sm:$0x3]
    %v1819 = vld [vmem:[#allocation8 + $0x108] sm:$0x3]
    %v1820 = vld [vmem:[#allocation8 + $0x110] sm:$0x3]
    %v1821 = vld [vmem:[#allocation8 + $0x118] sm:$0xff]
    %v1822 = vld [vmem:[#allocation8 + $0x120] sm:$0xff]
    %v1823 = vld [vmem:[#allocation8 + $0x128] sm:$0xff]
    %v1824 = vld [vmem:[#allocation8 + $0x130] sm:$0xff]
    %v1825 = vld [vmem:[#allocation8 + $0x138] sm:$0xff]
    %v1826 = vld [vmem:[#allocation8 + $0x140] sm:$0xff]
    %v1827 = vld [vmem:[#allocation8 + $0x148] sm:$0xff]
    %v1828 = vld [vmem:[#allocation8 + $0x150] sm:$0xff]
    %v1829 = vld [vmem:[#allocation8 + $0x158] sm:$0xff]
    %v1830 = vld [vmem:[#allocation8 + $0x160] sm:$0xff]
    %v1831 = vld [vmem:[#allocation8 + $0x168] sm:$0xff]
    %v1832 = vld [vmem:[#allocation8 + $0x170] sm:$0xff]
    %v1833 = vld [vmem:[#allocation8 + $0x178] sm:$0xff]
    %v1834 = vld [vmem:[#allocation8 + $0x180] sm:$0xff]
    %v1835 = vld [vmem:[#allocation8 + $0x188] sm:$0xff]
    %v1836 = vld [vmem:[#allocation8 + $0x190] sm:$0xff]
    %v1837 = vld [vmem:[#allocation8 + $0x198] sm:$0xff]
    %v1838 = vld [vmem:[#allocation8 + $0x1a0] sm:$0xff]
    %v1839 = vld [vmem:[#allocation8 + $0x1a8] sm:$0xff]
    %v1840 = vld [vmem:[#allocation8 + $0x1b0] sm:$0xff]
    %v1841 = vld [vmem:[#allocation8 + $0x1b8] sm:$0xff]
    %v1842 = vld [vmem:[#allocation8 + $0x1c0] sm:$0xff]
    %v1843 = vld [vmem:[#allocation8 + $0x1c8] sm:$0xff]
    %v1844 = vld [vmem:[#allocation8 + $0x1d0] sm:$0xff]
    %v1845 = vld [vmem:[#allocation8 + $0x1d8] sm:$0xff]
    %v1846 = vld [vmem:[#allocation8 + $0x1e0] sm:$0xff]
    %v1847 = vld [vmem:[#allocation8 + $0x1e8] sm:$0xff]
    %v1848 = vld [vmem:[#allocation8 + $0x1f0] sm:$0xff]
    %v1849 = vld [vmem:[#allocation8 + $0x1f8] sm:$0xff]
    %v1850 = vld [vmem:[#allocation8 + $0x200] sm:$0xff]
    %v1851 = vld [vmem:[#allocation8 + $0x208] sm:$0x3]
    %v1852 = vld [vmem:[#allocation8 + $0x210] sm:$0x3]
    %v1853 = vld [vmem:[#allocation8 + $0x218] sm:$0x3]
    %v1854 = vld [vmem:[#allocation8 + $0x220] sm:$0x3]
    %v1855 = vld [vmem:[#allocation8 + $0x228] sm:$0x3]
    %v1856 = vld [vmem:[#allocation8 + $0x230] sm:$0xff]
    %v1857 = vld [vmem:[#allocation8 + $0x238] sm:$0xff]
    %v1858 = vld [vmem:[#allocation8 + $0x240] sm:$0xff]
    %v1859 = vld [vmem:[#allocation8 + $0x248] sm:$0xff]
    %v1860 = vld [vmem:[#allocation8 + $0x250] sm:$0xff]
    %v1861 = vld [vmem:[#allocation8 + $0x258] sm:$0xff]
    %v1862 = vld [vmem:[#allocation8 + $0x260] sm:$0xff]
    %v1863 = vld [vmem:[#allocation8 + $0x268] sm:$0xff]
    %v1864 = vld [vmem:[#allocation8 + $0x270] sm:$0xff]
    %v1865 = vld [vmem:[#allocation8 + $0x278] sm:$0xff]
    %v1866 = vld [vmem:[#allocation8 + $0x280] sm:$0xff]
    %v1867 = vld [vmem:[#allocation8 + $0x288] sm:$0xff]
    %v1868 = vld [vmem:[#allocation8 + $0x290] sm:$0xff]
    %v1869 = vld [vmem:[#allocation8 + $0x298] sm:$0xff]
    %v1870 = vld [vmem:[#allocation8 + $0x2a0] sm:$0xff]
    %v1871 = vld [vmem:[#allocation8 + $0x2a8] sm:$0xff]
    %v1872 = vld [vmem:[#allocation8 + $0x2b0] sm:$0xff]
    %v1873 = vld [vmem:[#allocation8 + $0x2b8] sm:$0xff]
    %v1874 = vld [vmem:[#allocation8 + $0x2c0] sm:$0xff]
    %v1875 = vld [vmem:[#allocation8 + $0x2c8] sm:$0xff]
    %v1876 = vld [vmem:[#allocation8 + $0x2d0] sm:$0xff]
    %v1877 = vld [vmem:[#allocation8 + $0x2d8] sm:$0xff]
    %v1878 = vld [vmem:[#allocation8 + $0x2e0] sm:$0xff]
    %v1879 = vld [vmem:[#allocation8 + $0x2e8] sm:$0xff]
    %v1880 = vld [vmem:[#allocation8 + $0x2f0] sm:$0xff]
    %v1881 = vld [vmem:[#allocation8 + $0x2f8] sm:$0xff]
    %v1882 = vld [vmem:[#allocation8 + $0x300] sm:$0xff]
    %v1883 = vld [vmem:[#allocation8 + $0x308] sm:$0xff]
    %v1884 = vld [vmem:[#allocation8 + $0x310] sm:$0xff]
    %v1885 = vld [vmem:[#allocation8 + $0x318] sm:$0xff]
    %v1886 = vld [vmem:[#allocation8 + $0x320] sm:$0x3]
    %v1887 = vld [vmem:[#allocation8 + $0x328] sm:$0x3]
    %v1888 = vld [vmem:[#allocation8 + $0x330] sm:$0x3]
    %v1889 = vld [vmem:[#allocation8 + $0x338] sm:$0x3]
    %v1890 = vld [vmem:[#allocation8 + $0x340] sm:$0x3]
    %v1891 = vld [vmem:[#allocation8 + $0x348] sm:$0xff]
    %v1892 = vld [vmem:[#allocation8 + $0x350] sm:$0xff]
    %v1893 = vld [vmem:[#allocation8 + $0x358] sm:$0xff]
    %v1894 = vld [vmem:[#allocation8 + $0x360] sm:$0xff]
    %v1895 = vld [vmem:[#allocation8 + $0x368] sm:$0xff]
    %v1896 = vld [vmem:[#allocation8 + $0x370] sm:$0xff]
    %v1897 = vld [vmem:[#allocation8 + $0x378] sm:$0xff]
    %v1898 = vld [vmem:[#allocation8 + $0x380] sm:$0xff]
    %v1899 = vld [vmem:[#allocation8 + $0x388] sm:$0xff]
    %v1900 = vld [vmem:[#allocation8 + $0x390] sm:$0xff]
    %v1901 = vld [vmem:[#allocation8 + $0x398] sm:$0xff]
    %v1902 = vld [vmem:[#allocation8 + $0x3a0] sm:$0xff]
    %v1903 = vld [vmem:[#allocation8 + $0x3a8] sm:$0xff]
    %v1904 = vld [vmem:[#allocation8 + $0x3b0] sm:$0xff]
    %v1905 = vld [vmem:[#allocation8 + $0x3b8] sm:$0xff]
    %v1906 = vld [vmem:[#allocation8 + $0x3c0] sm:$0xff]
    %v1907 = vld [vmem:[#allocation8 + $0x3c8] sm:$0xff]
    %v1908 = vld [vmem:[#allocation8 + $0x3d0] sm:$0xff]
    %v1909 = vld [vmem:[#allocation8 + $0x3d8] sm:$0xff]
    %v1910 = vld [vmem:[#allocation8 + $0x3e0] sm:$0xff]
    %v1911 = vld [vmem:[#allocation8 + $0x3e8] sm:$0xff]
    %v1912 = vld [vmem:[#allocation8 + $0x3f0] sm:$0xff]
    %v1913 = vld [vmem:[#allocation8 + $0x3f8] sm:$0xff]
    %v1914 = vld [vmem:[#allocation8 + $0x400] sm:$0xff]
    %v1915 = vld [vmem:[#allocation8 + $0x408] sm:$0xff]
    %v1916 = vld [vmem:[#allocation8 + $0x410] sm:$0xff]
    %v1917 = vld [vmem:[#allocation8 + $0x418] sm:$0xff]
    %v1918 = vld [vmem:[#allocation8 + $0x420] sm:$0xff]
    %v1919 = vld [vmem:[#allocation8 + $0x428] sm:$0xff]
    %v1920 = vld [vmem:[#allocation8 + $0x430] sm:$0xff]
    %v1921 = vld [vmem:[#allocation8 + $0x438] sm:$0x3]
    %v1922 = vld [vmem:[#allocation8 + $0x440] sm:$0x3]
    %v1923 = vld [vmem:[#allocation8 + $0x448] sm:$0x3]
    %v1924 = vld [vmem:[#allocation8 + $0x450] sm:$0x3]
    %v1925 = vld [vmem:[#allocation8 + $0x458] sm:$0x3]
    %v1926 = vld [vmem:[#allocation8 + $0x460] sm:$0xff]
    %v1927 = vld [vmem:[#allocation8 + $0x468] sm:$0xff]
    %v1928 = vld [vmem:[#allocation8 + $0x470] sm:$0xff]
    %v1929 = vld [vmem:[#allocation8 + $0x478] sm:$0xff]
    %v1930 = vld [vmem:[#allocation8 + $0x480] sm:$0xff]
    %v1931 = vld [vmem:[#allocation8 + $0x488] sm:$0xff]
    %v1932 = vld [vmem:[#allocation8 + $0x490] sm:$0xff]
    %v1933 = vld [vmem:[#allocation8 + $0x498] sm:$0xff]
    %v1934 = vld [vmem:[#allocation8 + $0x4a0] sm:$0xff]
    %v1935 = vld [vmem:[#allocation8 + $0x4a8] sm:$0xff]
    %v1936 = vld [vmem:[#allocation8 + $0x4b0] sm:$0xff]
    %v1937 = vld [vmem:[#allocation8 + $0x4b8] sm:$0xff]
    %v1938 = vld [vmem:[#allocation8 + $0x4c0] sm:$0xff]
    %v1939 = vld [vmem:[#allocation8 + $0x4c8] sm:$0xff]
    %v1940 = vld [vmem:[#allocation8 + $0x4d0] sm:$0xff]
    %v1941 = vld [vmem:[#allocation8 + $0x4d8] sm:$0xff]
    %v1942 = vld [vmem:[#allocation8 + $0x4e0] sm:$0xff]
    %v1943 = vld [vmem:[#allocation8 + $0x4e8] sm:$0xff]
    %v1944 = vld [vmem:[#allocation8 + $0x4f0] sm:$0xff]
    %v1945 = vld [vmem:[#allocation8 + $0x4f8] sm:$0xff]
    %v1946 = vld [vmem:[#allocation8 + $0x500] sm:$0xff]
    %v1947 = vld [vmem:[#allocation8 + $0x508] sm:$0xff]
    %v1948 = vld [vmem:[#allocation8 + $0x510] sm:$0xff]
    %v1949 = vld [vmem:[#allocation8 + $0x518] sm:$0xff]
    %v1950 = vld [vmem:[#allocation8 + $0x520] sm:$0xff]
    %v1951 = vld [vmem:[#allocation8 + $0x528] sm:$0xff]
    %v1952 = vld [vmem:[#allocation8 + $0x530] sm:$0xff]
    %v1953 = vld [vmem:[#allocation8 + $0x538] sm:$0xff]
    %v1954 = vld [vmem:[#allocation8 + $0x540] sm:$0xff]
    %v1955 = vld [vmem:[#allocation8 + $0x548] sm:$0xff]
    %v1956 = vld [vmem:[#allocation8 + $0x550] sm:$0x3]
    %v1957 = vld [vmem:[#allocation8 + $0x558] sm:$0x3]
    %v1958 = vld [vmem:[#allocation8 + $0x560] sm:$0x3]
    %v1959 = vld [vmem:[#allocation8 + $0x568] sm:$0x3]
    %v1960 = vld [vmem:[#allocation8 + $0x570] sm:$0x3]
    %v1961 = vld [vmem:[#allocation8 + $0x578] sm:$0xff]
    %v1962 = vld [vmem:[#allocation8 + $0x580] sm:$0xff]
    %v1963 = vld [vmem:[#allocation8 + $0x588] sm:$0xff]
    %v1964 = vld [vmem:[#allocation8 + $0x590] sm:$0xff]
    %v1965 = vld [vmem:[#allocation8 + $0x598] sm:$0xff]
    %v1966 = vld [vmem:[#allocation8 + $0x5a0] sm:$0xff]
    %v1967 = vld [vmem:[#allocation8 + $0x5a8] sm:$0xff]
    %v1968 = vld [vmem:[#allocation8 + $0x5b0] sm:$0xff]
    %v1969 = vld [vmem:[#allocation8 + $0x5b8] sm:$0xff]
    %v1970 = vld [vmem:[#allocation8 + $0x5c0] sm:$0xff]
    %v1971 = vld [vmem:[#allocation8 + $0x5c8] sm:$0xff]
    %v1972 = vld [vmem:[#allocation8 + $0x5d0] sm:$0xff]
    %v1973 = vld [vmem:[#allocation8 + $0x5d8] sm:$0xff]
    %v1974 = vld [vmem:[#allocation8 + $0x5e0] sm:$0xff]
    %v1975 = vld [vmem:[#allocation8 + $0x5e8] sm:$0xff]
    %v1976 = vld [vmem:[#allocation8 + $0x5f0] sm:$0xff]
    %v1977 = vld [vmem:[#allocation8 + $0x5f8] sm:$0xff]
    %v1978 = vld [vmem:[#allocation8 + $0x600] sm:$0xff]
    %v1979 = vld [vmem:[#allocation8 + $0x608] sm:$0xff]
    %v1980 = vld [vmem:[#allocation8 + $0x610] sm:$0xff]
    %v1981 = vld [vmem:[#allocation8 + $0x618] sm:$0xff]
    %v1982 = vld [vmem:[#allocation8 + $0x620] sm:$0xff]
    %v1983 = vld [vmem:[#allocation8 + $0x628] sm:$0xff]
    %v1984 = vld [vmem:[#allocation8 + $0x630] sm:$0xff]
    %v1985 = vld [vmem:[#allocation8 + $0x638] sm:$0xff]
    %v1986 = vld [vmem:[#allocation8 + $0x640] sm:$0xff]
    %v1987 = vld [vmem:[#allocation8 + $0x648] sm:$0xff]
    %v1988 = vld [vmem:[#allocation8 + $0x650] sm:$0xff]
    %v1989 = vld [vmem:[#allocation8 + $0x658] sm:$0xff]
    %v1990 = vld [vmem:[#allocation8 + $0x660] sm:$0xff]
    %v1991 = vld [vmem:[#allocation8 + $0x668] sm:$0x3]
    %v1992 = vld [vmem:[#allocation8 + $0x670] sm:$0x3]
    %v1993 = vld [vmem:[#allocation8 + $0x678] sm:$0x3]
    %v1994 = vld [vmem:[#allocation8 + $0x680] sm:$0x3]
    %v1995 = vld [vmem:[#allocation8 + $0x688] sm:$0x3]
    %v1996 = vld [vmem:[#allocation8 + $0x690] sm:$0xff]
    %v1997 = vld [vmem:[#allocation8 + $0x698] sm:$0xff]
    %v1998 = vld [vmem:[#allocation8 + $0x6a0] sm:$0xff]
    %v1999 = vld [vmem:[#allocation8 + $0x6a8] sm:$0xff]
    %v2000 = vld [vmem:[#allocation8 + $0x6b0] sm:$0xff]
    %v2001 = vld [vmem:[#allocation8 + $0x6b8] sm:$0xff]
    %v2002 = vld [vmem:[#allocation8 + $0x6c0] sm:$0xff]
    %v2003 = vld [vmem:[#allocation8 + $0x6c8] sm:$0xff]
    %v2004 = vld [vmem:[#allocation8 + $0x6d0] sm:$0xff]
    %v2005 = vld [vmem:[#allocation8 + $0x6d8] sm:$0xff]
    %v2006 = vld [vmem:[#allocation8 + $0x6e0] sm:$0xff]
    %v2007 = vld [vmem:[#allocation8 + $0x6e8] sm:$0xff]
    %v2008 = vld [vmem:[#allocation8 + $0x6f0] sm:$0xff]
    %v2009 = vld [vmem:[#allocation8 + $0x6f8] sm:$0xff]
    %v2010 = vld [vmem:[#allocation8 + $0x700] sm:$0xff]
    %v2011 = vld [vmem:[#allocation8 + $0x708] sm:$0xff]
    %v2012 = vld [vmem:[#allocation8 + $0x710] sm:$0xff]
    %v2013 = vld [vmem:[#allocation8 + $0x718] sm:$0xff]
    %v2014 = vld [vmem:[#allocation8 + $0x720] sm:$0xff]
    %v2015 = vld [vmem:[#allocation8 + $0x728] sm:$0xff]
    %v2016 = vld [vmem:[#allocation8 + $0x730] sm:$0xff]
    %v2017 = vld [vmem:[#allocation8 + $0x738] sm:$0xff]
    %v2018 = vld [vmem:[#allocation8 + $0x740] sm:$0xff]
    %v2019 = vld [vmem:[#allocation8 + $0x748] sm:$0xff]
    %v2020 = vld [vmem:[#allocation8 + $0x750] sm:$0xff]
    %v2021 = vld [vmem:[#allocation8 + $0x758] sm:$0xff]
    %v2022 = vld [vmem:[#allocation8 + $0x760] sm:$0xff]
    %v2023 = vld [vmem:[#allocation8 + $0x768] sm:$0xff]
    %v2024 = vld [vmem:[#allocation8 + $0x770] sm:$0xff]
    %v2025 = vld [vmem:[#allocation8 + $0x778] sm:$0xff]
    %v2026 = vld [vmem:[#allocation8 + $0x780] sm:$0x3]
    %v2027 = vld [vmem:[#allocation8 + $0x788] sm:$0x3]
    %v2028 = vld [vmem:[#allocation8 + $0x790] sm:$0x3]
    %v2029 = vld [vmem:[#allocation8 + $0x798] sm:$0x3]
    %v2030 = vld [vmem:[#allocation8 + $0x7a0] sm:$0x3]
    %v2031 = vld [vmem:[#allocation8 + $0x7a8] sm:$0xff]
    %v2032 = vld [vmem:[#allocation8 + $0x7b0] sm:$0xff]
    %v2033 = vld [vmem:[#allocation8 + $0x7b8] sm:$0xff]
    %v2034 = vld [vmem:[#allocation8 + $0x7c0] sm:$0xff]
    %v2035 = vld [vmem:[#allocation8 + $0x7c8] sm:$0xff]
    %v2036 = vld [vmem:[#allocation8 + $0x7d0] sm:$0xff]
    %v2037 = vld [vmem:[#allocation8 + $0x7d8] sm:$0xff]
    %v2038 = vld [vmem:[#allocation8 + $0x7e0] sm:$0xff]
    %v2039 = vld [vmem:[#allocation8 + $0x7e8] sm:$0xff]
    %v2040 = vld [vmem:[#allocation8 + $0x7f0] sm:$0xff]
    %v2041 = vld [vmem:[#allocation8 + $0x7f8] sm:$0xff]
    %v2042 = vld [vmem:[#allocation8 + $0x800] sm:$0xff]
    %v2043 = vld [vmem:[#allocation8 + $0x808] sm:$0xff]
    %v2044 = vld [vmem:[#allocation8 + $0x810] sm:$0xff]
    %v2045 = vld [vmem:[#allocation8 + $0x818] sm:$0xff]
    %v2046 = vld [vmem:[#allocation8 + $0x820] sm:$0xff]
    %v2047 = vld [vmem:[#allocation8 + $0x828] sm:$0xff]
    %v2048 = vld [vmem:[#allocation8 + $0x830] sm:$0xff]
    %v2049 = vld [vmem:[#allocation8 + $0x838] sm:$0xff]
    %v2050 = vld [vmem:[#allocation8 + $0x840] sm:$0xff]
    %v2051 = vld [vmem:[#allocation8 + $0x848] sm:$0xff]
    %v2052 = vld [vmem:[#allocation8 + $0x850] sm:$0xff]
    %v2053 = vld [vmem:[#allocation8 + $0x858] sm:$0xff]
    %v2054 = vld [vmem:[#allocation8 + $0x860] sm:$0xff]
    %v2055 = vld [vmem:[#allocation8 + $0x868] sm:$0xff]
    %v2056 = vld [vmem:[#allocation8 + $0x870] sm:$0xff]
    %v2057 = vld [vmem:[#allocation8 + $0x878] sm:$0xff]
    %v2058 = vld [vmem:[#allocation8 + $0x880] sm:$0xff]
    %v2059 = vld [vmem:[#allocation8 + $0x888] sm:$0xff]
    %v2060 = vld [vmem:[#allocation8 + $0x890] sm:$0xff]
    %v2061 = vld [vmem:[#allocation8 + $0x898] sm:$0x3]
    %v2062 = vld [vmem:[#allocation8 + $0x8a0] sm:$0x3]
    %v2063 = vld [vmem:[#allocation8 + $0x8a8] sm:$0x3]
    %v2064 = vld [vmem:[#allocation8 + $0x8b0] sm:$0x3]
    %v2065 = vld [vmem:[#allocation8 + $0x8b8] sm:$0x3]
    %v2066 = vld [vmem:[#allocation8 + $0x8c0] sm:$0xff]
    %v2067 = vld [vmem:[#allocation8 + $0x8c8] sm:$0xff]
    %v2068 = vld [vmem:[#allocation8 + $0x8d0] sm:$0xff]
    %v2069 = vld [vmem:[#allocation8 + $0x8d8] sm:$0xff]
    %v2070 = vld [vmem:[#allocation8 + $0x8e0] sm:$0xff]
    %v2071 = vld [vmem:[#allocation8 + $0x8e8] sm:$0xff]
    %v2072 = vld [vmem:[#allocation8 + $0x8f0] sm:$0xff]
    %v2073 = vld [vmem:[#allocation8 + $0x8f8] sm:$0xff]
    %v2074 = vld [vmem:[#allocation8 + $0x900] sm:$0xff]
    %v2075 = vld [vmem:[#allocation8 + $0x908] sm:$0xff]
    %v2076 = vld [vmem:[#allocation8 + $0x910] sm:$0xff]
    %v2077 = vld [vmem:[#allocation8 + $0x918] sm:$0xff]
    %v2078 = vld [vmem:[#allocation8 + $0x920] sm:$0xff]
    %v2079 = vld [vmem:[#allocation8 + $0x928] sm:$0xff]
    %v2080 = vld [vmem:[#allocation8 + $0x930] sm:$0xff]
    %v2081 = vld [vmem:[#allocation8 + $0x938] sm:$0xff]
    %v2082 = vld [vmem:[#allocation8 + $0x940] sm:$0xff]
    %v2083 = vld [vmem:[#allocation8 + $0x948] sm:$0xff]
    %v2084 = vld [vmem:[#allocation8 + $0x950] sm:$0xff]
    %v2085 = vld [vmem:[#allocation8 + $0x958] sm:$0xff]
    %v2086 = vld [vmem:[#allocation8 + $0x960] sm:$0xff]
    %v2087 = vld [vmem:[#allocation8 + $0x968] sm:$0xff]
    %v2088 = vld [vmem:[#allocation8 + $0x970] sm:$0xff]
    %v2089 = vld [vmem:[#allocation8 + $0x978] sm:$0xff]
    %v2090 = vld [vmem:[#allocation8 + $0x980] sm:$0xff]
    %v2091 = vld [vmem:[#allocation8 + $0x988] sm:$0xff]
    %v2092 = vld [vmem:[#allocation8 + $0x990] sm:$0xff]
    %v2093 = vld [vmem:[#allocation8 + $0x998] sm:$0xff]
    %v2094 = vld [vmem:[#allocation8 + $0x9a0] sm:$0xff]
    %v2095 = vld [vmem:[#allocation8 + $0x9a8] sm:$0xff]
    %v2096 = vld [vmem:[#allocation8 + $0x9b0] sm:$0x3]
    %v2097 = vld [vmem:[#allocation8 + $0x9b8] sm:$0x3]
    %v2098 = vld [vmem:[#allocation8 + $0x9c0] sm:$0x3]
    %v2099 = vld [vmem:[#allocation8 + $0x9c8] sm:$0x3]
    %v2100 = vld [vmem:[#allocation8 + $0x9d0] sm:$0x3]
    %v2101 = vld [vmem:[#allocation8 + $0x9d8] sm:$0xff]
    %v2102 = vld [vmem:[#allocation8 + $0x9e0] sm:$0xff]
    %v2103 = vld [vmem:[#allocation8 + $0x9e8] sm:$0xff]
    %v2104 = vld [vmem:[#allocation8 + $0x9f0] sm:$0xff]
    %v2105 = vld [vmem:[#allocation8 + $0x9f8] sm:$0xff]
    %v2106 = vld [vmem:[#allocation8 + $0xa00] sm:$0xff]
    %v2107 = vld [vmem:[#allocation8 + $0xa08] sm:$0xff]
    %v2108 = vld [vmem:[#allocation8 + $0xa10] sm:$0xff]
    %v2109 = vld [vmem:[#allocation8 + $0xa18] sm:$0xff]
    %v2110 = vld [vmem:[#allocation8 + $0xa20] sm:$0xff]
    %v2111 = vld [vmem:[#allocation8 + $0xa28] sm:$0xff]
    %v2112 = vld [vmem:[#allocation8 + $0xa30] sm:$0xff]
    %v2113 = vld [vmem:[#allocation8 + $0xa38] sm:$0xff]
    %v2114 = vld [vmem:[#allocation8 + $0xa40] sm:$0xff]
    %v2115 = vld [vmem:[#allocation8 + $0xa48] sm:$0xff]
    %v2116 = vld [vmem:[#allocation8 + $0xa50] sm:$0xff]
    %v2117 = vld [vmem:[#allocation8 + $0xa58] sm:$0xff]
    %v2118 = vld [vmem:[#allocation8 + $0xa60] sm:$0xff]
    %v2119 = vld [vmem:[#allocation8 + $0xa68] sm:$0xff]
    %v2120 = vld [vmem:[#allocation8 + $0xa70] sm:$0xff]
    %v2121 = vld [vmem:[#allocation8 + $0xa78] sm:$0xff]
    %v2122 = vld [vmem:[#allocation8 + $0xa80] sm:$0xff]
    %v2123 = vld [vmem:[#allocation8 + $0xa88] sm:$0xff]
    %v2124 = vld [vmem:[#allocation8 + $0xa90] sm:$0xff]
    %v2125 = vld [vmem:[#allocation8 + $0xa98] sm:$0xff]
    %v2126 = vld [vmem:[#allocation8 + $0xaa0] sm:$0xff]
    %v2127 = vld [vmem:[#allocation8 + $0xaa8] sm:$0xff]
    %v2128 = vld [vmem:[#allocation8 + $0xab0] sm:$0xff]
    %v2129 = vld [vmem:[#allocation8 + $0xab8] sm:$0xff]
    %v2130 = vld [vmem:[#allocation8 + $0xac0] sm:$0xff]
    %v2131 = vld [vmem:[#allocation8 + $0xac8] sm:$0x3]
    %v2132 = vld [vmem:[#allocation8 + $0xad0] sm:$0x3]
    %v2133 = vld [vmem:[#allocation8 + $0xad8] sm:$0x3]
    %v2134 = vld [vmem:[#allocation8 + $0xae0] sm:$0x3]
    %v2135 = vld [vmem:[#allocation8 + $0xae8] sm:$0x3]
    %v2136 = vld [vmem:[#allocation8 + $0xaf0] sm:$0xff]
    %v2137 = vld [vmem:[#allocation8 + $0xaf8] sm:$0xff]
    %v2138 = vld [vmem:[#allocation8 + $0xb00] sm:$0xff]
    %v2139 = vld [vmem:[#allocation8 + $0xb08] sm:$0xff]
    %v2140 = vld [vmem:[#allocation8 + $0xb10] sm:$0xff]
    %v2141 = vld [vmem:[#allocation8 + $0xb18] sm:$0xff]
    %v2142 = vld [vmem:[#allocation8 + $0xb20] sm:$0xff]
    %v2143 = vld [vmem:[#allocation8 + $0xb28] sm:$0xff]
    %v2144 = vld [vmem:[#allocation8 + $0xb30] sm:$0xff]
    %v2145 = vld [vmem:[#allocation8 + $0xb38] sm:$0xff]
    %v2146 = vld [vmem:[#allocation8 + $0xb40] sm:$0xff]
    %v2147 = vld [vmem:[#allocation8 + $0xb48] sm:$0xff]
    %v2148 = vld [vmem:[#allocation8 + $0xb50] sm:$0xff]
    %v2149 = vld [vmem:[#allocation8 + $0xb58] sm:$0xff]
    %v2150 = vld [vmem:[#allocation8 + $0xb60] sm:$0xff]
    %v2151 = vld [vmem:[#allocation8 + $0xb68] sm:$0xff]
    %v2152 = vld [vmem:[#allocation8 + $0xb70] sm:$0xff]
    %v2153 = vld [vmem:[#allocation8 + $0xb78] sm:$0xff]
    %v2154 = vld [vmem:[#allocation8 + $0xb80] sm:$0xff]
    %v2155 = vld [vmem:[#allocation8 + $0xb88] sm:$0xff]
    %v2156 = vld [vmem:[#allocation8 + $0xb90] sm:$0xff]
    %v2157 = vld [vmem:[#allocation8 + $0xb98] sm:$0xff]
    %v2158 = vld [vmem:[#allocation8 + $0xba0] sm:$0xff]
    %v2159 = vld [vmem:[#allocation8 + $0xba8] sm:$0xff]
    %v2160 = vld [vmem:[#allocation8 + $0xbb0] sm:$0xff]
    %v2161 = vld [vmem:[#allocation8 + $0xbb8] sm:$0xff]
    %v2162 = vld [vmem:[#allocation8 + $0xbc0] sm:$0xff]
    %v2163 = vld [vmem:[#allocation8 + $0xbc8] sm:$0xff]
    %v2164 = vld [vmem:[#allocation8 + $0xbd0] sm:$0xff]
    %v2165 = vld [vmem:[#allocation8 + $0xbd8] sm:$0xff]
    %v2166 = vld [vmem:[#allocation8 + $0xbe0] sm:$0x3]
    %v2167 = vld [vmem:[#allocation8 + $0xbe8] sm:$0x3]
    %v2168 = vld [vmem:[#allocation8 + $0xbf0] sm:$0x3]
    %v2169 = vld [vmem:[#allocation8 + $0xbf8] sm:$0x3]
    %v2170 = vld [vmem:[#allocation8 + $0xc00] sm:$0x3]
    %v2171 = vld [vmem:[#allocation8 + $0xc08] sm:$0xff]
    %v2172 = vld [vmem:[#allocation8 + $0xc10] sm:$0xff]
    %v2173 = vld [vmem:[#allocation8 + $0xc18] sm:$0xff]
    %v2174 = vld [vmem:[#allocation8 + $0xc20] sm:$0xff]
    %v2175 = vld [vmem:[#allocation8 + $0xc28] sm:$0xff]
    %v2176 = vld [vmem:[#allocation8 + $0xc30] sm:$0xff]
    %v2177 = vld [vmem:[#allocation8 + $0xc38] sm:$0xff]
    %v2178 = vld [vmem:[#allocation8 + $0xc40] sm:$0xff]
    %v2179 = vld [vmem:[#allocation8 + $0xc48] sm:$0xff]
    %v2180 = vld [vmem:[#allocation8 + $0xc50] sm:$0xff]
    %v2181 = vld [vmem:[#allocation8 + $0xc58] sm:$0xff]
    %v2182 = vld [vmem:[#allocation8 + $0xc60] sm:$0xff]
    %v2183 = vld [vmem:[#allocation8 + $0xc68] sm:$0xff]
    %v2184 = vld [vmem:[#allocation8 + $0xc70] sm:$0xff]
    %v2185 = vld [vmem:[#allocation8 + $0xc78] sm:$0xff]
    %v2186 = vld [vmem:[#allocation8 + $0xc80] sm:$0xff]
    %v2187 = vld [vmem:[#allocation8 + $0xc88] sm:$0xff]
    %v2188 = vld [vmem:[#allocation8 + $0xc90] sm:$0xff]
    %v2189 = vld [vmem:[#allocation8 + $0xc98] sm:$0xff]
    %v2190 = vld [vmem:[#allocation8 + $0xca0] sm:$0xff]
    %v2191 = vld [vmem:[#allocation8 + $0xca8] sm:$0xff]
    %v2192 = vld [vmem:[#allocation8 + $0xcb0] sm:$0xff]
    %v2193 = vld [vmem:[#allocation8 + $0xcb8] sm:$0xff]
    %v2194 = vld [vmem:[#allocation8 + $0xcc0] sm:$0xff]
    %v2195 = vld [vmem:[#allocation8 + $0xcc8] sm:$0xff]
    %v2196 = vld [vmem:[#allocation8 + $0xcd0] sm:$0xff]
    %v2197 = vld [vmem:[#allocation8 + $0xcd8] sm:$0xff]
    %v2198 = vld [vmem:[#allocation8 + $0xce0] sm:$0xff]
    %v2199 = vld [vmem:[#allocation8 + $0xce8] sm:$0xff]
    %v2200 = vld [vmem:[#allocation8 + $0xcf0] sm:$0xff]
    %v2201 = vld [vmem:[#allocation8 + $0xcf8] sm:$0x3]
    %v2202 = vld [vmem:[#allocation8 + $0xd00] sm:$0x3]
    %v2203 = vld [vmem:[#allocation8 + $0xd08] sm:$0x3]
    %v2204 = vld [vmem:[#allocation8 + $0xd10] sm:$0x3]
    %v2205 = vld [vmem:[#allocation8 + $0xd18] sm:$0x3]
    %v2206 = vld [vmem:[#allocation8 + $0xd20] sm:$0xff]
    %v2207 = vld [vmem:[#allocation8 + $0xd28] sm:$0xff]
    %v2208 = vld [vmem:[#allocation8 + $0xd30] sm:$0xff]
    %v2209 = vld [vmem:[#allocation8 + $0xd38] sm:$0xff]
    %v2210 = vld [vmem:[#allocation8 + $0xd40] sm:$0xff]
    %v2211 = vld [vmem:[#allocation8 + $0xd48] sm:$0xff]
    %v2212 = vld [vmem:[#allocation8 + $0xd50] sm:$0xff]
    %v2213 = vld [vmem:[#allocation8 + $0xd58] sm:$0xff]
    %v2214 = vld [vmem:[#allocation8 + $0xd60] sm:$0xff]
    %v2215 = vld [vmem:[#allocation8 + $0xd68] sm:$0xff]
    %v2216 = vld [vmem:[#allocation8 + $0xd70] sm:$0xff]
    %v2217 = vld [vmem:[#allocation8 + $0xd78] sm:$0xff]
    %v2218 = vld [vmem:[#allocation8 + $0xd80] sm:$0xff]
    %v2219 = vld [vmem:[#allocation8 + $0xd88] sm:$0xff]
    %v2220 = vld [vmem:[#allocation8 + $0xd90] sm:$0xff]
    %v2221 = vld [vmem:[#allocation8 + $0xd98] sm:$0xff]
    %v2222 = vld [vmem:[#allocation8 + $0xda0] sm:$0xff]
    %v2223 = vld [vmem:[#allocation8 + $0xda8] sm:$0xff]
    %v2224 = vld [vmem:[#allocation8 + $0xdb0] sm:$0xff]
    %v2225 = vld [vmem:[#allocation8 + $0xdb8] sm:$0xff]
    %v2226 = vld [vmem:[#allocation8 + $0xdc0] sm:$0xff]
    %v2227 = vld [vmem:[#allocation8 + $0xdc8] sm:$0xff]
    %v2228 = vld [vmem:[#allocation8 + $0xdd0] sm:$0xff]
    %v2229 = vld [vmem:[#allocation8 + $0xdd8] sm:$0xff]
    %v2230 = vld [vmem:[#allocation8 + $0xde0] sm:$0xff]
    %v2231 = vld [vmem:[#allocation8 + $0xde8] sm:$0xff]
    %v2232 = vld [vmem:[#allocation8 + $0xdf0] sm:$0xff]
    %v2233 = vld [vmem:[#allocation8 + $0xdf8] sm:$0xff]
    %v2234 = vld [vmem:[#allocation8 + $0xe00] sm:$0xff]
    %v2235 = vld [vmem:[#allocation8 + $0xe08] sm:$0xff]
    %v2236 = vld [vmem:[#allocation8 + $0xe10] sm:$0x3]
    %v2237 = vld [vmem:[#allocation8 + $0xe18] sm:$0x3]
    %v2238 = vld [vmem:[#allocation8 + $0xe20] sm:$0x3]
    %v2239 = vld [vmem:[#allocation8 + $0xe28] sm:$0x3]
    %v2240 = vld [vmem:[#allocation8 + $0xe30] sm:$0x3]
    %v2241 = vld [vmem:[#allocation8 + $0xe38] sm:$0xff]
    %v2242 = vld [vmem:[#allocation8 + $0xe40] sm:$0xff]
    %v2243 = vld [vmem:[#allocation8 + $0xe48] sm:$0xff]
    %v2244 = vld [vmem:[#allocation8 + $0xe50] sm:$0xff]
    %v2245 = vld [vmem:[#allocation8 + $0xe58] sm:$0xff]
    %v2246 = vld [vmem:[#allocation8 + $0xe60] sm:$0xff]
    %v2247 = vld [vmem:[#allocation8 + $0xe68] sm:$0xff]
    %v2248 = vld [vmem:[#allocation8 + $0xe70] sm:$0xff]
    %v2249 = vld [vmem:[#allocation8 + $0xe78] sm:$0xff]
    %v2250 = vld [vmem:[#allocation8 + $0xe80] sm:$0xff]
    %v2251 = vld [vmem:[#allocation8 + $0xe88] sm:$0xff]
    %v2252 = vld [vmem:[#allocation8 + $0xe90] sm:$0xff]
    %v2253 = vld [vmem:[#allocation8 + $0xe98] sm:$0xff]
    %v2254 = vld [vmem:[#allocation8 + $0xea0] sm:$0xff]
    %v2255 = vld [vmem:[#allocation8 + $0xea8] sm:$0xff]
    %v2256 = vld [vmem:[#allocation8 + $0xeb0] sm:$0xff]
    %v2257 = vld [vmem:[#allocation8 + $0xeb8] sm:$0xff]
    %v2258 = vld [vmem:[#allocation8 + $0xec0] sm:$0xff]
    %v2259 = vld [vmem:[#allocation8 + $0xec8] sm:$0xff]
    %v2260 = vld [vmem:[#allocation8 + $0xed0] sm:$0xff]
    %v2261 = vld [vmem:[#allocation8 + $0xed8] sm:$0xff]
    %v2262 = vld [vmem:[#allocation8 + $0xee0] sm:$0xff]
    %v2263 = vld [vmem:[#allocation8 + $0xee8] sm:$0xff]
    %v2264 = vld [vmem:[#allocation8 + $0xef0] sm:$0xff]
    %v2265 = vld [vmem:[#allocation8 + $0xef8] sm:$0xff]
    %v2266 = vld [vmem:[#allocation8 + $0xf00] sm:$0xff]
    %v2267 = vld [vmem:[#allocation8 + $0xf08] sm:$0xff]
    %v2268 = vld [vmem:[#allocation8 + $0xf10] sm:$0xff]
    %v2269 = vld [vmem:[#allocation8 + $0xf18] sm:$0xff]
    %v2270 = vld [vmem:[#allocation8 + $0xf20] sm:$0xff]
    %v2271 = vld [vmem:[#allocation8 + $0xf28] sm:$0x3]
    %v2272 = vld [vmem:[#allocation8 + $0xf30] sm:$0x3]
    %v2273 = vld [vmem:[#allocation8 + $0xf38] sm:$0x3]
    %v2274 = vld [vmem:[#allocation8 + $0xf40] sm:$0x3]
    %v2275 = vld [vmem:[#allocation8 + $0xf48] sm:$0x3]
    %v2276 = vld [vmem:[#allocation8 + $0xf50] sm:$0xff]
    %v2277 = vld [vmem:[#allocation8 + $0xf58] sm:$0xff]
    %v2278 = vld [vmem:[#allocation8 + $0xf60] sm:$0xff]
    %v2279 = vld [vmem:[#allocation8 + $0xf68] sm:$0xff]
    %v2280 = vld [vmem:[#allocation8 + $0xf70] sm:$0xff]
    %v2281 = vld [vmem:[#allocation8 + $0xf78] sm:$0xff]
    %v2282 = vld [vmem:[#allocation8 + $0xf80] sm:$0xff]
    %v2283 = vld [vmem:[#allocation8 + $0xf88] sm:$0xff]
    %v2284 = vld [vmem:[#allocation8 + $0xf90] sm:$0xff]
    %v2285 = vld [vmem:[#allocation8 + $0xf98] sm:$0xff]
    %v2286 = vld [vmem:[#allocation8 + $0xfa0] sm:$0xff]
    %v2287 = vld [vmem:[#allocation8 + $0xfa8] sm:$0xff]
    %v2288 = vld [vmem:[#allocation8 + $0xfb0] sm:$0xff]
    %v2289 = vld [vmem:[#allocation8 + $0xfb8] sm:$0xff]
    %v2290 = vld [vmem:[#allocation8 + $0xfc0] sm:$0xff]
    %v2291 = vld [vmem:[#allocation8 + $0xfc8] sm:$0xff]
    %v2292 = vld [vmem:[#allocation8 + $0xfd0] sm:$0xff]
    %v2293 = vld [vmem:[#allocation8 + $0xfd8] sm:$0xff]
    %v2294 = vld [vmem:[#allocation8 + $0xfe0] sm:$0xff]
    %v2295 = vld [vmem:[#allocation8 + $0xfe8] sm:$0xff]
    %v2296 = vld [vmem:[#allocation8 + $0xff0] sm:$0xff]
    %v2297 = vld [vmem:[#allocation8 + $0xff8] sm:$0xff]
    %v2298 = vld [vmem:[#allocation8 + $0x1000] sm:$0xff]
    %v2299 = vld [vmem:[#allocation8 + $0x1008] sm:$0xff]
    %v2300 = vld [vmem:[#allocation8 + $0x1010] sm:$0xff]
    %v2301 = vld [vmem:[#allocation8 + $0x1018] sm:$0xff]
    %v2302 = vld [vmem:[#allocation8 + $0x1020] sm:$0xff]
    %v2303 = vld [vmem:[#allocation8 + $0x1028] sm:$0xff]
    %v2304 = vld [vmem:[#allocation8 + $0x1030] sm:$0xff]
    %v2305 = vld [vmem:[#allocation8 + $0x1038] sm:$0xff]
    %v2306 = vld [vmem:[#allocation8 + $0x1040] sm:$0x3]
    %v2307 = vld [vmem:[#allocation8 + $0x1048] sm:$0x3]
    %v2308 = vld [vmem:[#allocation8 + $0x1050] sm:$0x3]
    %v2309 = vld [vmem:[#allocation8 + $0x1058] sm:$0x3]
    %v2310 = vld [vmem:[#allocation8 + $0x1060] sm:$0x3]
    %v2311 = vld [vmem:[#allocation8 + $0x1068] sm:$0xff]
    %v2312 = vld [vmem:[#allocation8 + $0x1070] sm:$0xff]
    %v2313 = vld [vmem:[#allocation8 + $0x1078] sm:$0xff]
    %v2314 = vld [vmem:[#allocation8 + $0x1080] sm:$0xff]
    %v2315 = vld [vmem:[#allocation8 + $0x1088] sm:$0xff]
    %v2316 = vld [vmem:[#allocation8 + $0x1090] sm:$0xff]
    %v2317 = vld [vmem:[#allocation8 + $0x1098] sm:$0xff]
    %v2318 = vld [vmem:[#allocation8 + $0x10a0] sm:$0xff]
    %v2319 = vld [vmem:[#allocation8 + $0x10a8] sm:$0xff]
    %v2320 = vld [vmem:[#allocation8 + $0x10b0] sm:$0xff]
    %v2321 = vld [vmem:[#allocation8 + $0x10b8] sm:$0xff]
    %v2322 = vld [vmem:[#allocation8 + $0x10c0] sm:$0xff]
    %v2323 = vld [vmem:[#allocation8 + $0x10c8] sm:$0xff]
    %v2324 = vld [vmem:[#allocation8 + $0x10d0] sm:$0xff]
    %v2325 = vld [vmem:[#allocation8 + $0x10d8] sm:$0xff]
    %v2326 = vld [vmem:[#allocation8 + $0x10e0] sm:$0xff]
    %v2327 = vld [vmem:[#allocation8 + $0x10e8] sm:$0xff]
    %v2328 = vld [vmem:[#allocation8 + $0x10f0] sm:$0xff]
    %v2329 = vld [vmem:[#allocation8 + $0x10f8] sm:$0xff]
    %v2330 = vld [vmem:[#allocation8 + $0x1100] sm:$0xff]
    %v2331 = vld [vmem:[#allocation8 + $0x1108] sm:$0xff]
    %v2332 = vld [vmem:[#allocation8 + $0x1110] sm:$0xff]
    %v2333 = vld [vmem:[#allocation8 + $0x1118] sm:$0xff]
    %v2334 = vld [vmem:[#allocation8 + $0x1120] sm:$0xff]
    %v2335 = vld [vmem:[#allocation8 + $0x1128] sm:$0xff]
    %v2336 = vld [vmem:[#allocation8 + $0x1130] sm:$0xff]
    %v2337 = vld [vmem:[#allocation8 + $0x1138] sm:$0xff]
    %v2338 = vld [vmem:[#allocation8 + $0x1140] sm:$0xff]
    %v2339 = vld [vmem:[#allocation8 + $0x1148] sm:$0xff]
    %v2340 = vld [vmem:[#allocation8 + $0x1150] sm:$0xff]
    %v2341 = vld [vmem:[#allocation8 + $0x1158] sm:$0x3]
    %v2342 = vld [vmem:[#allocation8 + $0x1160] sm:$0x3]
    %v2343 = vld [vmem:[#allocation8 + $0x1168] sm:$0x3]
    %v2344 = vld [vmem:[#allocation8 + $0x1170] sm:$0x3]
    %v2345 = vld [vmem:[#allocation8 + $0x1178] sm:$0x3]
    %v2346 = vld [vmem:[#allocation8 + $0x1180] sm:$0xff]
    %v2347 = vld [vmem:[#allocation8 + $0x1188] sm:$0xff]
    %v2348 = vld [vmem:[#allocation8 + $0x1190] sm:$0xff]
    %v2349 = vld [vmem:[#allocation8 + $0x1198] sm:$0xff]
    %v2350 = vld [vmem:[#allocation8 + $0x11a0] sm:$0xff]
    %v2351 = vld [vmem:[#allocation8 + $0x11a8] sm:$0xff]
    %v2352 = vld [vmem:[#allocation8 + $0x11b0] sm:$0xff]
    %v2353 = vld [vmem:[#allocation8 + $0x11b8] sm:$0xff]
    %v2354 = vld [vmem:[#allocation8 + $0x11c0] sm:$0xff]
    %v2355 = vld [vmem:[#allocation8 + $0x11c8] sm:$0xff]
    %v2356 = vld [vmem:[#allocation8 + $0x11d0] sm:$0xff]
    %v2357 = vld [vmem:[#allocation8 + $0x11d8] sm:$0xff]
    %v2358 = vld [vmem:[#allocation8 + $0x11e0] sm:$0xff]
    %v2359 = vld [vmem:[#allocation8 + $0x11e8] sm:$0xff]
    %v2360 = vld [vmem:[#allocation8 + $0x11f0] sm:$0xff]
    %v2361 = vld [vmem:[#allocation8 + $0x11f8] sm:$0xff]
    %v2362 = vld [vmem:[#allocation8 + $0x1200] sm:$0xff]
    %v2363 = vld [vmem:[#allocation8 + $0x1208] sm:$0xff]
    %v2364 = vld [vmem:[#allocation8 + $0x1210] sm:$0xff]
    %v2365 = vld [vmem:[#allocation8 + $0x1218] sm:$0xff]
    %v2366 = vld [vmem:[#allocation8 + $0x1220] sm:$0xff]
    %v2367 = vld [vmem:[#allocation8 + $0x1228] sm:$0xff]
    %v2368 = vld [vmem:[#allocation8 + $0x1230] sm:$0xff]
    %v2369 = vld [vmem:[#allocation8 + $0x1238] sm:$0xff]
    %v2370 = vld [vmem:[#allocation8 + $0x1240] sm:$0xff]
    %v2371 = vld [vmem:[#allocation8 + $0x1248] sm:$0xff]
    %v2372 = vld [vmem:[#allocation8 + $0x1250] sm:$0xff]
    %v2373 = vld [vmem:[#allocation8 + $0x1258] sm:$0xff]
    %v2374 = vld [vmem:[#allocation8 + $0x1260] sm:$0xff]
    %v2375 = vld [vmem:[#allocation8 + $0x1268] sm:$0xff]
    %v2376 = vld [vmem:[#allocation8 + $0x1270] sm:$0x3]
    %v2377 = vld [vmem:[#allocation8 + $0x1278] sm:$0x3]
    %v2378 = vld [vmem:[#allocation8 + $0x1280] sm:$0x3]
    %v2379 = vld [vmem:[#allocation8 + $0x1288] sm:$0x3]
    %v2380 = vld [vmem:[#allocation8 + $0x1290] sm:$0x3]
    %v2381 = vld [vmem:[#allocation8 + $0x1298] sm:$0xff]
    %v2382 = vld [vmem:[#allocation8 + $0x12a0] sm:$0xff]
    %v2383 = vld [vmem:[#allocation8 + $0x12a8] sm:$0xff]
    %v2384 = vld [vmem:[#allocation8 + $0x12b0] sm:$0xff]
    %v2385 = vld [vmem:[#allocation8 + $0x12b8] sm:$0xff]
    %v2386 = vld [vmem:[#allocation8 + $0x12c0] sm:$0xff]
    %v2387 = vld [vmem:[#allocation8 + $0x12c8] sm:$0xff]
    %v2388 = vld [vmem:[#allocation8 + $0x12d0] sm:$0xff]
    %v2389 = vld [vmem:[#allocation8 + $0x12d8] sm:$0xff]
    %v2390 = vld [vmem:[#allocation8 + $0x12e0] sm:$0xff]
    %v2391 = vld [vmem:[#allocation8 + $0x12e8] sm:$0xff]
    %v2392 = vld [vmem:[#allocation8 + $0x12f0] sm:$0xff]
    %v2393 = vld [vmem:[#allocation8 + $0x12f8] sm:$0xff]
    %v2394 = vld [vmem:[#allocation8 + $0x1300] sm:$0xff]
    %v2395 = vld [vmem:[#allocation8 + $0x1308] sm:$0xff]
    %v2396 = vld [vmem:[#allocation8 + $0x1310] sm:$0xff]
    %v2397 = vld [vmem:[#allocation8 + $0x1318] sm:$0xff]
    %v2398 = vld [vmem:[#allocation8 + $0x1320] sm:$0xff]
    %v2399 = vld [vmem:[#allocation8 + $0x1328] sm:$0xff]
    %v2400 = vld [vmem:[#allocation8 + $0x1330] sm:$0xff]
    %v2401 = vld [vmem:[#allocation8 + $0x1338] sm:$0xff]
    %v2402 = vld [vmem:[#allocation8 + $0x1340] sm:$0xff]
    %v2403 = vld [vmem:[#allocation8 + $0x1348] sm:$0xff]
    %v2404 = vld [vmem:[#allocation8 + $0x1350] sm:$0xff]
    %v2405 = vld [vmem:[#allocation8 + $0x1358] sm:$0xff]
    %v2406 = vld [vmem:[#allocation8 + $0x1360] sm:$0xff]
    %v2407 = vld [vmem:[#allocation8 + $0x1368] sm:$0xff]
    %v2408 = vld [vmem:[#allocation8 + $0x1370] sm:$0xff]
    %v2409 = vld [vmem:[#allocation8 + $0x1378] sm:$0xff]
    %v2410 = vld [vmem:[#allocation8 + $0x1380] sm:$0xff]
    %v2411 = vld [vmem:[#allocation8 + $0x1388] sm:$0x3]
    %v2412 = vld [vmem:[#allocation8 + $0x1390] sm:$0x3]
    %v2413 = vld [vmem:[#allocation8 + $0x1398] sm:$0x3]
    %v2414 = vld [vmem:[#allocation8 + $0x13a0] sm:$0x3]
    %v2415 = vld [vmem:[#allocation8 + $0x13a8] sm:$0x3]
    %v2416 = vld [vmem:[#allocation8 + $0x13b0] sm:$0xff]
    %v2417 = vld [vmem:[#allocation8 + $0x13b8] sm:$0xff]
    %v2418 = vld [vmem:[#allocation8 + $0x13c0] sm:$0xff]
    %v2419 = vld [vmem:[#allocation8 + $0x13c8] sm:$0xff]
    %v2420 = vld [vmem:[#allocation8 + $0x13d0] sm:$0xff]
    %v2421 = vld [vmem:[#allocation8 + $0x13d8] sm:$0xff]
    %v2422 = vld [vmem:[#allocation8 + $0x13e0] sm:$0xff]
    %v2423 = vld [vmem:[#allocation8 + $0x13e8] sm:$0xff]
    %v2424 = vld [vmem:[#allocation8 + $0x13f0] sm:$0xff]
    %v2425 = vld [vmem:[#allocation8 + $0x13f8] sm:$0xff]
    %v2426 = vld [vmem:[#allocation8 + $0x1400] sm:$0xff]
    %v2427 = vld [vmem:[#allocation8 + $0x1408] sm:$0xff]
    %v2428 = vld [vmem:[#allocation8 + $0x1410] sm:$0xff]
    %v2429 = vld [vmem:[#allocation8 + $0x1418] sm:$0xff]
    %v2430 = vld [vmem:[#allocation8 + $0x1420] sm:$0xff]
    %v2431 = vld [vmem:[#allocation8 + $0x1428] sm:$0xff]
    %v2432 = vld [vmem:[#allocation8 + $0x1430] sm:$0xff]
    %v2433 = vld [vmem:[#allocation8 + $0x1438] sm:$0xff]
    %v2434 = vld [vmem:[#allocation8 + $0x1440] sm:$0xff]
    %v2435 = vld [vmem:[#allocation8 + $0x1448] sm:$0xff]
    %v2436 = vld [vmem:[#allocation8 + $0x1450] sm:$0xff]
    %v2437 = vld [vmem:[#allocation8 + $0x1458] sm:$0xff]
    %v2438 = vld [vmem:[#allocation8 + $0x1460] sm:$0xff]
    %v2439 = vld [vmem:[#allocation8 + $0x1468] sm:$0xff]
    %v2440 = vld [vmem:[#allocation8 + $0x1470] sm:$0xff]
    %v2441 = vld [vmem:[#allocation8 + $0x1478] sm:$0xff]
    %v2442 = vld [vmem:[#allocation8 + $0x1480] sm:$0xff]
    %v2443 = vld [vmem:[#allocation8 + $0x1488] sm:$0xff]
    %v2444 = vld [vmem:[#allocation8 + $0x1490] sm:$0xff]
    %v2445 = vld [vmem:[#allocation8 + $0x1498] sm:$0xff]
    %v2446 = vld [vmem:[#allocation8 + $0x14a0] sm:$0x3]
    %v2447 = vld [vmem:[#allocation8 + $0x14a8] sm:$0x3]
    %v2448 = vld [vmem:[#allocation8 + $0x14b0] sm:$0x3]
    %v2449 = vld [vmem:[#allocation8 + $0x14b8] sm:$0x3]
    %v2450 = vld [vmem:[#allocation8 + $0x14c0] sm:$0x3]
    %v2451 = vld [vmem:[#allocation8 + $0x14c8] sm:$0xff]
    %v2452 = vld [vmem:[#allocation8 + $0x14d0] sm:$0xff]
    %v2453 = vld [vmem:[#allocation8 + $0x14d8] sm:$0xff]
    %v2454 = vld [vmem:[#allocation8 + $0x14e0] sm:$0xff]
    %v2455 = vld [vmem:[#allocation8 + $0x14e8] sm:$0xff]
    %v2456 = vld [vmem:[#allocation8 + $0x14f0] sm:$0xff]
    %v2457 = vld [vmem:[#allocation8 + $0x14f8] sm:$0xff]
    %v2458 = vld [vmem:[#allocation8 + $0x1500] sm:$0xff]
    %v2459 = vld [vmem:[#allocation8 + $0x1508] sm:$0xff]
    %v2460 = vld [vmem:[#allocation8 + $0x1510] sm:$0xff]
    %v2461 = vld [vmem:[#allocation8 + $0x1518] sm:$0xff]
    %v2462 = vld [vmem:[#allocation8 + $0x1520] sm:$0xff]
    %v2463 = vld [vmem:[#allocation8 + $0x1528] sm:$0xff]
    %v2464 = vld [vmem:[#allocation8 + $0x1530] sm:$0xff]
    %v2465 = vld [vmem:[#allocation8 + $0x1538] sm:$0xff]
    %v2466 = vld [vmem:[#allocation8 + $0x1540] sm:$0xff]
    %v2467 = vld [vmem:[#allocation8 + $0x1548] sm:$0xff]
    %v2468 = vld [vmem:[#allocation8 + $0x1550] sm:$0xff]
    %v2469 = vld [vmem:[#allocation8 + $0x1558] sm:$0xff]
    %v2470 = vld [vmem:[#allocation8 + $0x1560] sm:$0xff]
    %v2471 = vld [vmem:[#allocation8 + $0x1568] sm:$0xff]
    %v2472 = vld [vmem:[#allocation8 + $0x1570] sm:$0xff]
    %v2473 = vld [vmem:[#allocation8 + $0x1578] sm:$0xff]
    %v2474 = vld [vmem:[#allocation8 + $0x1580] sm:$0xff]
    %v2475 = vld [vmem:[#allocation8 + $0x1588] sm:$0xff]
    %v2476 = vld [vmem:[#allocation8 + $0x1590] sm:$0xff]
    %v2477 = vld [vmem:[#allocation8 + $0x1598] sm:$0xff]
    %v2478 = vld [vmem:[#allocation8 + $0x15a0] sm:$0xff]
    %v2479 = vld [vmem:[#allocation8 + $0x15a8] sm:$0xff]
    %v2480 = vld [vmem:[#allocation8 + $0x15b0] sm:$0xff]
    %v2481 = vld [vmem:[#allocation8 + $0x15b8] sm:$0x3]
    %v2482 = vld [vmem:[#allocation8 + $0x15c0] sm:$0x3]
    %v2483 = vld [vmem:[#allocation8 + $0x15c8] sm:$0x3]
    %v2484 = vld [vmem:[#allocation8 + $0x15d0] sm:$0x3]
    %v2485 = vld [vmem:[#allocation8 + $0x15d8] sm:$0x3]
    %vm2486 = vcmask 408576
    %v2488 = vsel %vm2486, %v1677, 0
    %v2491 = vsel %vm212, %v1816, 0
    %v2494 = vsel %vm212, %v1817, 0
    %v2497 = vsel %vm212, %v1818, 0
    %v2500 = vsel %vm212, %v1819, 0
    %v2503 = vsel %vm212, %v1820, 0
    %2505 = vmatpush.msra.mxu0 0.0
    %2506 = vmatpush.msra.mxu0 0.0
    %2507 = vmatpush.msra.mxu0 0.0
    %2508 = vmatpush.msra.mxu0 0.0
    %2509 = vmatpush.msra.mxu0 0.0
    %2510 = vmatpush.msra.mxu0 0.0
    %2511 = vmatpush.msra.mxu0 0.0
    %2512 = vmatpush.msra.mxu0 0.0
    %2513 = vmatpush.msra.mxu0 0.0
    %2514 = vmatpush.msra.mxu0 %v2491
    %2515 = vmatpush.msra.mxu0 %v1811
    %2516 = vmatpush.msra.mxu0 %v1806
    %2517 = vmatpush.msra.mxu0 %v1801
    %2518 = vmatpush.msra.mxu0 %v1796
    %2519 = vmatpush.msra.mxu0 %v1791
    %2520 = vmatpush.msra.mxu0 %v1786
    %2521 = vmatmul.f32.gmra.mxu0 %v2488
    %v2522 = vpop.f32.mrf.mxu0
    %v2523 = vadd.f32 0.0, %v2522
    %2524 = vdwg.mxu0
    %2525 = vmatpush.msra.mxu0 0.0
    %2526 = vmatpush.msra.mxu0 0.0
    %2527 = vmatpush.msra.mxu0 0.0
    %2528 = vmatpush.msra.mxu0 0.0
    %2529 = vmatpush.msra.mxu0 0.0
    %2530 = vmatpush.msra.mxu0 0.0
    %2531 = vmatpush.msra.mxu0 0.0
    %2532 = vmatpush.msra.mxu0 0.0
    %2533 = vmatpush.msra.mxu0 0.0
    %2534 = vmatpush.msra.mxu0 %v2494
    %2535 = vmatpush.msra.mxu0 %v1812
    %2536 = vmatpush.msra.mxu0 %v1807
    %2537 = vmatpush.msra.mxu0 %v1802
    %2538 = vmatpush.msra.mxu0 %v1797
    %2539 = vmatpush.msra.mxu0 %v1792
    %2540 = vmatpush.msra.mxu0 %v1787
    %2541 = vmatmul.f32.gmra.mxu0 %v2488
    %v2542 = vpop.f32.mrf.mxu0
    %v2543 = vadd.f32 0.0, %v2542
    %2544 = vdwg.mxu0
    %2545 = vmatpush.msra.mxu0 0.0
    %2546 = vmatpush.msra.mxu0 0.0
    %2547 = vmatpush.msra.mxu0 0.0
    %2548 = vmatpush.msra.mxu0 0.0
    %2549 = vmatpush.msra.mxu0 0.0
    %2550 = vmatpush.msra.mxu0 0.0
    %2551 = vmatpush.msra.mxu0 0.0
    %2552 = vmatpush.msra.mxu0 0.0
    %2553 = vmatpush.msra.mxu0 0.0
    %2554 = vmatpush.msra.mxu0 %v2497
    %2555 = vmatpush.msra.mxu0 %v1813
    %2556 = vmatpush.msra.mxu0 %v1808
    %2557 = vmatpush.msra.mxu0 %v1803
    %2558 = vmatpush.msra.mxu0 %v1798
    %2559 = vmatpush.msra.mxu0 %v1793
    %2560 = vmatpush.msra.mxu0 %v1788
    %2561 = vmatmul.f32.gmra.mxu0 %v2488
    %v2562 = vpop.f32.mrf.mxu0
    %v2563 = vadd.f32 0.0, %v2562
    %2564 = vdwg.mxu0
    %2565 = vmatpush.msra.mxu0 0.0
    %2566 = vmatpush.msra.mxu0 0.0
    %2567 = vmatpush.msra.mxu0 0.0
    %2568 = vmatpush.msra.mxu0 0.0
    %2569 = vmatpush.msra.mxu0 0.0
    %2570 = vmatpush.msra.mxu0 0.0
    %2571 = vmatpush.msra.mxu0 0.0
    %2572 = vmatpush.msra.mxu0 0.0
    %2573 = vmatpush.msra.mxu0 0.0
    %2574 = vmatpush.msra.mxu0 %v2500
    %2575 = vmatpush.msra.mxu0 %v1814
    %2576 = vmatpush.msra.mxu0 %v1809
    %2577 = vmatpush.msra.mxu0 %v1804
    %2578 = vmatpush.msra.mxu0 %v1799
    %2579 = vmatpush.msra.mxu0 %v1794
    %2580 = vmatpush.msra.mxu0 %v1789
    %2581 = vmatmul.f32.gmra.mxu0 %v2488
    %v2582 = vpop.f32.mrf.mxu0
    %v2583 = vadd.f32 0.0, %v2582
    %2584 = vdwg.mxu0
    %2585 = vmatpush.msra.mxu0 0.0
    %2586 = vmatpush.msra.mxu0 0.0
    %2587 = vmatpush.msra.mxu0 0.0
    %2588 = vmatpush.msra.mxu0 0.0
    %2589 = vmatpush.msra.mxu0 0.0
    %2590 = vmatpush.msra.mxu0 0.0
    %2591 = vmatpush.msra.mxu0 0.0
    %2592 = vmatpush.msra.mxu0 0.0
    %2593 = vmatpush.msra.mxu0 0.0
    %2594 = vmatpush.msra.mxu0 %v2503
    %2595 = vmatpush.msra.mxu0 %v1815
    %2596 = vmatpush.msra.mxu0 %v1810
    %2597 = vmatpush.msra.mxu0 %v1805
    %2598 = vmatpush.msra.mxu0 %v1800
    %2599 = vmatpush.msra.mxu0 %v1795
    %2600 = vmatpush.msra.mxu0 %v1790
    %2601 = vmatmul.f32.gmra.mxu0 %v2488
    %v2602 = vpop.f32.mrf.mxu0
    %v2603 = vadd.f32 0.0, %v2602
    %2604 = vdwg.mxu0
    %v2606 = vsel %vm2486, %v1683, 0
    %v2609 = vsel %vm212, %v1851, 0
    %v2612 = vsel %vm212, %v1852, 0
    %v2615 = vsel %vm212, %v1853, 0
    %v2618 = vsel %vm212, %v1854, 0
    %v2621 = vsel %vm212, %v1855, 0
    %2623 = vmatpush.msra.mxu0 0.0
    %2624 = vmatpush.msra.mxu0 0.0
    %2625 = vmatpush.msra.mxu0 0.0
    %2626 = vmatpush.msra.mxu0 0.0
    %2627 = vmatpush.msra.mxu0 0.0
    %2628 = vmatpush.msra.mxu0 0.0
    %2629 = vmatpush.msra.mxu0 0.0
    %2630 = vmatpush.msra.mxu0 0.0
    %2631 = vmatpush.msra.mxu0 0.0
    %2632 = vmatpush.msra.mxu0 %v2609
    %2633 = vmatpush.msra.mxu0 %v1846
    %2634 = vmatpush.msra.mxu0 %v1841
    %2635 = vmatpush.msra.mxu0 %v1836
    %2636 = vmatpush.msra.mxu0 %v1831
    %2637 = vmatpush.msra.mxu0 %v1826
    %2638 = vmatpush.msra.mxu0 %v1821
    %2639 = vmatmul.f32.gmra.mxu0 %v2606
    %v2640 = vpop.f32.mrf.mxu0
    %v2641 = vadd.f32 0.0, %v2640
    %2642 = vdwg.mxu0
    %2643 = vmatpush.msra.mxu0 0.0
    %2644 = vmatpush.msra.mxu0 0.0
    %2645 = vmatpush.msra.mxu0 0.0
    %2646 = vmatpush.msra.mxu0 0.0
    %2647 = vmatpush.msra.mxu0 0.0
    %2648 = vmatpush.msra.mxu0 0.0
    %2649 = vmatpush.msra.mxu0 0.0
    %2650 = vmatpush.msra.mxu0 0.0
    %2651 = vmatpush.msra.mxu0 0.0
    %2652 = vmatpush.msra.mxu0 %v2612
    %2653 = vmatpush.msra.mxu0 %v1847
    %2654 = vmatpush.msra.mxu0 %v1842
    %2655 = vmatpush.msra.mxu0 %v1837
    %2656 = vmatpush.msra.mxu0 %v1832
    %2657 = vmatpush.msra.mxu0 %v1827
    %2658 = vmatpush.msra.mxu0 %v1822
    %2659 = vmatmul.f32.gmra.mxu0 %v2606
    %v2660 = vpop.f32.mrf.mxu0
    %v2661 = vadd.f32 0.0, %v2660
    %2662 = vdwg.mxu0
    %2663 = vmatpush.msra.mxu0 0.0
    %2664 = vmatpush.msra.mxu0 0.0
    %2665 = vmatpush.msra.mxu0 0.0
    %2666 = vmatpush.msra.mxu0 0.0
    %2667 = vmatpush.msra.mxu0 0.0
    %2668 = vmatpush.msra.mxu0 0.0
    %2669 = vmatpush.msra.mxu0 0.0
    %2670 = vmatpush.msra.mxu0 0.0
    %2671 = vmatpush.msra.mxu0 0.0
    %2672 = vmatpush.msra.mxu0 %v2615
    %2673 = vmatpush.msra.mxu0 %v1848
    %2674 = vmatpush.msra.mxu0 %v1843
    %2675 = vmatpush.msra.mxu0 %v1838
    %2676 = vmatpush.msra.mxu0 %v1833
    %2677 = vmatpush.msra.mxu0 %v1828
    %2678 = vmatpush.msra.mxu0 %v1823
    %2679 = vmatmul.f32.gmra.mxu0 %v2606
    %v2680 = vpop.f32.mrf.mxu0
    %v2681 = vadd.f32 0.0, %v2680
    %2682 = vdwg.mxu0
    %2683 = vmatpush.msra.mxu0 0.0
    %2684 = vmatpush.msra.mxu0 0.0
    %2685 = vmatpush.msra.mxu0 0.0
    %2686 = vmatpush.msra.mxu0 0.0
    %2687 = vmatpush.msra.mxu0 0.0
    %2688 = vmatpush.msra.mxu0 0.0
    %2689 = vmatpush.msra.mxu0 0.0
    %2690 = vmatpush.msra.mxu0 0.0
    %2691 = vmatpush.msra.mxu0 0.0
    %2692 = vmatpush.msra.mxu0 %v2618
    %2693 = vmatpush.msra.mxu0 %v1849
    %2694 = vmatpush.msra.mxu0 %v1844
    %2695 = vmatpush.msra.mxu0 %v1839
    %2696 = vmatpush.msra.mxu0 %v1834
    %2697 = vmatpush.msra.mxu0 %v1829
    %2698 = vmatpush.msra.mxu0 %v1824
    %2699 = vmatmul.f32.gmra.mxu0 %v2606
    %v2700 = vpop.f32.mrf.mxu0
    %v2701 = vadd.f32 0.0, %v2700
    %2702 = vdwg.mxu0
    %2703 = vmatpush.msra.mxu0 0.0
    %2704 = vmatpush.msra.mxu0 0.0
    %2705 = vmatpush.msra.mxu0 0.0
    %2706 = vmatpush.msra.mxu0 0.0
    %2707 = vmatpush.msra.mxu0 0.0
    %2708 = vmatpush.msra.mxu0 0.0
    %2709 = vmatpush.msra.mxu0 0.0
    %2710 = vmatpush.msra.mxu0 0.0
    %2711 = vmatpush.msra.mxu0 0.0
    %2712 = vmatpush.msra.mxu0 %v2621
    %2713 = vmatpush.msra.mxu0 %v1850
    %2714 = vmatpush.msra.mxu0 %v1845
    %2715 = vmatpush.msra.mxu0 %v1840
    %2716 = vmatpush.msra.mxu0 %v1835
    %2717 = vmatpush.msra.mxu0 %v1830
    %2718 = vmatpush.msra.mxu0 %v1825
    %2719 = vmatmul.f32.gmra.mxu0 %v2606
    %v2720 = vpop.f32.mrf.mxu0
    %v2721 = vadd.f32 0.0, %v2720
    %2722 = vdwg.mxu0
    %v2724 = vsel %vm2486, %v1681, 0
    %v2727 = vsel %vm212, %v1886, 0
    %v2730 = vsel %vm212, %v1887, 0
    %v2733 = vsel %vm212, %v1888, 0
    %v2736 = vsel %vm212, %v1889, 0
    %v2739 = vsel %vm212, %v1890, 0
    %2741 = vmatpush.msra.mxu0 0.0
    %2742 = vmatpush.msra.mxu0 0.0
    %2743 = vmatpush.msra.mxu0 0.0
    %2744 = vmatpush.msra.mxu0 0.0
    %2745 = vmatpush.msra.mxu0 0.0
    %2746 = vmatpush.msra.mxu0 0.0
    %2747 = vmatpush.msra.mxu0 0.0
    %2748 = vmatpush.msra.mxu0 0.0
    %2749 = vmatpush.msra.mxu0 0.0
    %2750 = vmatpush.msra.mxu0 %v2727
    %2751 = vmatpush.msra.mxu0 %v1881
    %2752 = vmatpush.msra.mxu0 %v1876
    %2753 = vmatpush.msra.mxu0 %v1871
    %2754 = vmatpush.msra.mxu0 %v1866
    %2755 = vmatpush.msra.mxu0 %v1861
    %2756 = vmatpush.msra.mxu0 %v1856
    %2757 = vmatmul.f32.gmra.mxu0 %v2724
    %v2758 = vpop.f32.mrf.mxu0
    %v2759 = vadd.f32 0.0, %v2758
    %2760 = vdwg.mxu0
    %2761 = vmatpush.msra.mxu0 0.0
    %2762 = vmatpush.msra.mxu0 0.0
    %2763 = vmatpush.msra.mxu0 0.0
    %2764 = vmatpush.msra.mxu0 0.0
    %2765 = vmatpush.msra.mxu0 0.0
    %2766 = vmatpush.msra.mxu0 0.0
    %2767 = vmatpush.msra.mxu0 0.0
    %2768 = vmatpush.msra.mxu0 0.0
    %2769 = vmatpush.msra.mxu0 0.0
    %2770 = vmatpush.msra.mxu0 %v2730
    %2771 = vmatpush.msra.mxu0 %v1882
    %2772 = vmatpush.msra.mxu0 %v1877
    %2773 = vmatpush.msra.mxu0 %v1872
    %2774 = vmatpush.msra.mxu0 %v1867
    %2775 = vmatpush.msra.mxu0 %v1862
    %2776 = vmatpush.msra.mxu0 %v1857
    %2777 = vmatmul.f32.gmra.mxu0 %v2724
    %v2778 = vpop.f32.mrf.mxu0
    %v2779 = vadd.f32 0.0, %v2778
    %2780 = vdwg.mxu0
    %2781 = vmatpush.msra.mxu0 0.0
    %2782 = vmatpush.msra.mxu0 0.0
    %2783 = vmatpush.msra.mxu0 0.0
    %2784 = vmatpush.msra.mxu0 0.0
    %2785 = vmatpush.msra.mxu0 0.0
    %2786 = vmatpush.msra.mxu0 0.0
    %2787 = vmatpush.msra.mxu0 0.0
    %2788 = vmatpush.msra.mxu0 0.0
    %2789 = vmatpush.msra.mxu0 0.0
    %2790 = vmatpush.msra.mxu0 %v2733
    %2791 = vmatpush.msra.mxu0 %v1883
    %2792 = vmatpush.msra.mxu0 %v1878
    %2793 = vmatpush.msra.mxu0 %v1873
    %2794 = vmatpush.msra.mxu0 %v1868
    %2795 = vmatpush.msra.mxu0 %v1863
    %2796 = vmatpush.msra.mxu0 %v1858
    %2797 = vmatmul.f32.gmra.mxu0 %v2724
    %v2798 = vpop.f32.mrf.mxu0
    %v2799 = vadd.f32 0.0, %v2798
    %2800 = vdwg.mxu0
    %2801 = vmatpush.msra.mxu0 0.0
    %2802 = vmatpush.msra.mxu0 0.0
    %2803 = vmatpush.msra.mxu0 0.0
    %2804 = vmatpush.msra.mxu0 0.0
    %2805 = vmatpush.msra.mxu0 0.0
    %2806 = vmatpush.msra.mxu0 0.0
    %2807 = vmatpush.msra.mxu0 0.0
    %2808 = vmatpush.msra.mxu0 0.0
    %2809 = vmatpush.msra.mxu0 0.0
    %2810 = vmatpush.msra.mxu0 %v2736
    %2811 = vmatpush.msra.mxu0 %v1884
    %2812 = vmatpush.msra.mxu0 %v1879
    %2813 = vmatpush.msra.mxu0 %v1874
    %2814 = vmatpush.msra.mxu0 %v1869
    %2815 = vmatpush.msra.mxu0 %v1864
    %2816 = vmatpush.msra.mxu0 %v1859
    %2817 = vmatmul.f32.gmra.mxu0 %v2724
    %v2818 = vpop.f32.mrf.mxu0
    %v2819 = vadd.f32 0.0, %v2818
    %2820 = vdwg.mxu0
    %2821 = vmatpush.msra.mxu0 0.0
    %2822 = vmatpush.msra.mxu0 0.0
    %2823 = vmatpush.msra.mxu0 0.0
    %2824 = vmatpush.msra.mxu0 0.0
    %2825 = vmatpush.msra.mxu0 0.0
    %2826 = vmatpush.msra.mxu0 0.0
    %2827 = vmatpush.msra.mxu0 0.0
    %2828 = vmatpush.msra.mxu0 0.0
    %2829 = vmatpush.msra.mxu0 0.0
    %2830 = vmatpush.msra.mxu0 %v2739
    %2831 = vmatpush.msra.mxu0 %v1885
    %2832 = vmatpush.msra.mxu0 %v1880
    %2833 = vmatpush.msra.mxu0 %v1875
    %2834 = vmatpush.msra.mxu0 %v1870
    %2835 = vmatpush.msra.mxu0 %v1865
    %2836 = vmatpush.msra.mxu0 %v1860
    %2837 = vmatmul.f32.gmra.mxu0 %v2724
    %v2838 = vpop.f32.mrf.mxu0
    %v2839 = vadd.f32 0.0, %v2838
    %2840 = vdwg.mxu0
    %v2842 = vsel %vm2486, %v1685, 0
    %v2845 = vsel %vm212, %v1921, 0
    %v2848 = vsel %vm212, %v1922, 0
    %v2851 = vsel %vm212, %v1923, 0
    %v2854 = vsel %vm212, %v1924, 0
    %v2857 = vsel %vm212, %v1925, 0
    %2859 = vmatpush.msra.mxu0 0.0
    %2860 = vmatpush.msra.mxu0 0.0
    %2861 = vmatpush.msra.mxu0 0.0
    %2862 = vmatpush.msra.mxu0 0.0
    %2863 = vmatpush.msra.mxu0 0.0
    %2864 = vmatpush.msra.mxu0 0.0
    %2865 = vmatpush.msra.mxu0 0.0
    %2866 = vmatpush.msra.mxu0 0.0
    %2867 = vmatpush.msra.mxu0 0.0
    %2868 = vmatpush.msra.mxu0 %v2845
    %2869 = vmatpush.msra.mxu0 %v1916
    %2870 = vmatpush.msra.mxu0 %v1911
    %2871 = vmatpush.msra.mxu0 %v1906
    %2872 = vmatpush.msra.mxu0 %v1901
    %2873 = vmatpush.msra.mxu0 %v1896
    %2874 = vmatpush.msra.mxu0 %v1891
    %2875 = vmatmul.f32.gmra.mxu0 %v2842
    %v2876 = vpop.f32.mrf.mxu0
    %v2877 = vadd.f32 0.0, %v2876
    %2878 = vdwg.mxu0
    %2879 = vmatpush.msra.mxu0 0.0
    %2880 = vmatpush.msra.mxu0 0.0
    %2881 = vmatpush.msra.mxu0 0.0
    %2882 = vmatpush.msra.mxu0 0.0
    %2883 = vmatpush.msra.mxu0 0.0
    %2884 = vmatpush.msra.mxu0 0.0
    %2885 = vmatpush.msra.mxu0 0.0
    %2886 = vmatpush.msra.mxu0 0.0
    %2887 = vmatpush.msra.mxu0 0.0
    %2888 = vmatpush.msra.mxu0 %v2848
    %2889 = vmatpush.msra.mxu0 %v1917
    %2890 = vmatpush.msra.mxu0 %v1912
    %2891 = vmatpush.msra.mxu0 %v1907
    %2892 = vmatpush.msra.mxu0 %v1902
    %2893 = vmatpush.msra.mxu0 %v1897
    %2894 = vmatpush.msra.mxu0 %v1892
    %2895 = vmatmul.f32.gmra.mxu0 %v2842
    %v2896 = vpop.f32.mrf.mxu0
    %v2897 = vadd.f32 0.0, %v2896
    %2898 = vdwg.mxu0
    %2899 = vmatpush.msra.mxu0 0.0
    %2900 = vmatpush.msra.mxu0 0.0
    %2901 = vmatpush.msra.mxu0 0.0
    %2902 = vmatpush.msra.mxu0 0.0
    %2903 = vmatpush.msra.mxu0 0.0
    %2904 = vmatpush.msra.mxu0 0.0
    %2905 = vmatpush.msra.mxu0 0.0
    %2906 = vmatpush.msra.mxu0 0.0
    %2907 = vmatpush.msra.mxu0 0.0
    %2908 = vmatpush.msra.mxu0 %v2851
    %2909 = vmatpush.msra.mxu0 %v1918
    %2910 = vmatpush.msra.mxu0 %v1913
    %2911 = vmatpush.msra.mxu0 %v1908
    %2912 = vmatpush.msra.mxu0 %v1903
    %2913 = vmatpush.msra.mxu0 %v1898
    %2914 = vmatpush.msra.mxu0 %v1893
    %2915 = vmatmul.f32.gmra.mxu0 %v2842
    %v2916 = vpop.f32.mrf.mxu0
    %v2917 = vadd.f32 0.0, %v2916
    %2918 = vdwg.mxu0
    %2919 = vmatpush.msra.mxu0 0.0
    %2920 = vmatpush.msra.mxu0 0.0
    %2921 = vmatpush.msra.mxu0 0.0
    %2922 = vmatpush.msra.mxu0 0.0
    %2923 = vmatpush.msra.mxu0 0.0
    %2924 = vmatpush.msra.mxu0 0.0
    %2925 = vmatpush.msra.mxu0 0.0
    %2926 = vmatpush.msra.mxu0 0.0
    %2927 = vmatpush.msra.mxu0 0.0
    %2928 = vmatpush.msra.mxu0 %v2854
    %2929 = vmatpush.msra.mxu0 %v1919
    %2930 = vmatpush.msra.mxu0 %v1914
    %2931 = vmatpush.msra.mxu0 %v1909
    %2932 = vmatpush.msra.mxu0 %v1904
    %2933 = vmatpush.msra.mxu0 %v1899
    %2934 = vmatpush.msra.mxu0 %v1894
    %2935 = vmatmul.f32.gmra.mxu0 %v2842
    %v2936 = vpop.f32.mrf.mxu0
    %v2937 = vadd.f32 0.0, %v2936
    %2938 = vdwg.mxu0
    %2939 = vmatpush.msra.mxu0 0.0
    %2940 = vmatpush.msra.mxu0 0.0
    %2941 = vmatpush.msra.mxu0 0.0
    %2942 = vmatpush.msra.mxu0 0.0
    %2943 = vmatpush.msra.mxu0 0.0
    %2944 = vmatpush.msra.mxu0 0.0
    %2945 = vmatpush.msra.mxu0 0.0
    %2946 = vmatpush.msra.mxu0 0.0
    %2947 = vmatpush.msra.mxu0 0.0
    %2948 = vmatpush.msra.mxu0 %v2857
    %2949 = vmatpush.msra.mxu0 %v1920
    %2950 = vmatpush.msra.mxu0 %v1915
    %2951 = vmatpush.msra.mxu0 %v1910
    %2952 = vmatpush.msra.mxu0 %v1905
    %2953 = vmatpush.msra.mxu0 %v1900
    %2954 = vmatpush.msra.mxu0 %v1895
    %2955 = vmatmul.f32.gmra.mxu0 %v2842
    %v2956 = vpop.f32.mrf.mxu0
    %v2957 = vadd.f32 0.0, %v2956
    %2958 = vdwg.mxu0
    %v2960 = vsel %vm2486, %v1702, 0
    %v2963 = vsel %vm212, %v1956, 0
    %v2966 = vsel %vm212, %v1957, 0
    %v2969 = vsel %vm212, %v1958, 0
    %v2972 = vsel %vm212, %v1959, 0
    %v2975 = vsel %vm212, %v1960, 0
    %2977 = vmatpush.msra.mxu0 0.0
    %2978 = vmatpush.msra.mxu0 0.0
    %2979 = vmatpush.msra.mxu0 0.0
    %2980 = vmatpush.msra.mxu0 0.0
    %2981 = vmatpush.msra.mxu0 0.0
    %2982 = vmatpush.msra.mxu0 0.0
    %2983 = vmatpush.msra.mxu0 0.0
    %2984 = vmatpush.msra.mxu0 0.0
    %2985 = vmatpush.msra.mxu0 0.0
    %2986 = vmatpush.msra.mxu0 %v2963
    %2987 = vmatpush.msra.mxu0 %v1951
    %2988 = vmatpush.msra.mxu0 %v1946
    %2989 = vmatpush.msra.mxu0 %v1941
    %2990 = vmatpush.msra.mxu0 %v1936
    %2991 = vmatpush.msra.mxu0 %v1931
    %2992 = vmatpush.msra.mxu0 %v1926
    %2993 = vmatmul.f32.gmra.mxu0 %v2960
    %v2994 = vpop.f32.mrf.mxu0
    %v2995 = vadd.f32 0.0, %v2994
    %2996 = vdwg.mxu0
    %2997 = vmatpush.msra.mxu0 0.0
    %2998 = vmatpush.msra.mxu0 0.0
    %2999 = vmatpush.msra.mxu0 0.0
    %3000 = vmatpush.msra.mxu0 0.0
    %3001 = vmatpush.msra.mxu0 0.0
    %3002 = vmatpush.msra.mxu0 0.0
    %3003 = vmatpush.msra.mxu0 0.0
    %3004 = vmatpush.msra.mxu0 0.0
    %3005 = vmatpush.msra.mxu0 0.0
    %3006 = vmatpush.msra.mxu0 %v2966
    %3007 = vmatpush.msra.mxu0 %v1952
    %3008 = vmatpush.msra.mxu0 %v1947
    %3009 = vmatpush.msra.mxu0 %v1942
    %3010 = vmatpush.msra.mxu0 %v1937
    %3011 = vmatpush.msra.mxu0 %v1932
    %3012 = vmatpush.msra.mxu0 %v1927
    %3013 = vmatmul.f32.gmra.mxu0 %v2960
    %v3014 = vpop.f32.mrf.mxu0
    %v3015 = vadd.f32 0.0, %v3014
    %3016 = vdwg.mxu0
    %3017 = vmatpush.msra.mxu0 0.0
    %3018 = vmatpush.msra.mxu0 0.0
    %3019 = vmatpush.msra.mxu0 0.0
    %3020 = vmatpush.msra.mxu0 0.0
    %3021 = vmatpush.msra.mxu0 0.0
    %3022 = vmatpush.msra.mxu0 0.0
    %3023 = vmatpush.msra.mxu0 0.0
    %3024 = vmatpush.msra.mxu0 0.0
    %3025 = vmatpush.msra.mxu0 0.0
    %3026 = vmatpush.msra.mxu0 %v2969
    %3027 = vmatpush.msra.mxu0 %v1953
    %3028 = vmatpush.msra.mxu0 %v1948
    %3029 = vmatpush.msra.mxu0 %v1943
    %3030 = vmatpush.msra.mxu0 %v1938
    %3031 = vmatpush.msra.mxu0 %v1933
    %3032 = vmatpush.msra.mxu0 %v1928
    %3033 = vmatmul.f32.gmra.mxu0 %v2960
    %v3034 = vpop.f32.mrf.mxu0
    %v3035 = vadd.f32 0.0, %v3034
    %3036 = vdwg.mxu0
    %3037 = vmatpush.msra.mxu0 0.0
    %3038 = vmatpush.msra.mxu0 0.0
    %3039 = vmatpush.msra.mxu0 0.0
    %3040 = vmatpush.msra.mxu0 0.0
    %3041 = vmatpush.msra.mxu0 0.0
    %3042 = vmatpush.msra.mxu0 0.0
    %3043 = vmatpush.msra.mxu0 0.0
    %3044 = vmatpush.msra.mxu0 0.0
    %3045 = vmatpush.msra.mxu0 0.0
    %3046 = vmatpush.msra.mxu0 %v2972
    %3047 = vmatpush.msra.mxu0 %v1954
    %3048 = vmatpush.msra.mxu0 %v1949
    %3049 = vmatpush.msra.mxu0 %v1944
    %3050 = vmatpush.msra.mxu0 %v1939
    %3051 = vmatpush.msra.mxu0 %v1934
    %3052 = vmatpush.msra.mxu0 %v1929
    %3053 = vmatmul.f32.gmra.mxu0 %v2960
    %v3054 = vpop.f32.mrf.mxu0
    %v3055 = vadd.f32 0.0, %v3054
    %3056 = vdwg.mxu0
    %3057 = vmatpush.msra.mxu0 0.0
    %3058 = vmatpush.msra.mxu0 0.0
    %3059 = vmatpush.msra.mxu0 0.0
    %3060 = vmatpush.msra.mxu0 0.0
    %3061 = vmatpush.msra.mxu0 0.0
    %3062 = vmatpush.msra.mxu0 0.0
    %3063 = vmatpush.msra.mxu0 0.0
    %3064 = vmatpush.msra.mxu0 0.0
    %3065 = vmatpush.msra.mxu0 0.0
    %3066 = vmatpush.msra.mxu0 %v2975
    %3067 = vmatpush.msra.mxu0 %v1955
    %3068 = vmatpush.msra.mxu0 %v1950
    %3069 = vmatpush.msra.mxu0 %v1945
    %3070 = vmatpush.msra.mxu0 %v1940
    %3071 = vmatpush.msra.mxu0 %v1935
    %3072 = vmatpush.msra.mxu0 %v1930
    %3073 = vmatmul.f32.gmra.mxu0 %v2960
    %v3074 = vpop.f32.mrf.mxu0
    %v3075 = vadd.f32 0.0, %v3074
    %3076 = vdwg.mxu0
    %v3078 = vsel %vm2486, %v1708, 0
    %v3081 = vsel %vm212, %v1991, 0
    %v3084 = vsel %vm212, %v1992, 0
    %v3087 = vsel %vm212, %v1993, 0
    %v3090 = vsel %vm212, %v1994, 0
    %v3093 = vsel %vm212, %v1995, 0
    %3095 = vmatpush.msra.mxu0 0.0
    %3096 = vmatpush.msra.mxu0 0.0
    %3097 = vmatpush.msra.mxu0 0.0
    %3098 = vmatpush.msra.mxu0 0.0
    %3099 = vmatpush.msra.mxu0 0.0
    %3100 = vmatpush.msra.mxu0 0.0
    %3101 = vmatpush.msra.mxu0 0.0
    %3102 = vmatpush.msra.mxu0 0.0
    %3103 = vmatpush.msra.mxu0 0.0
    %3104 = vmatpush.msra.mxu0 %v3081
    %3105 = vmatpush.msra.mxu0 %v1986
    %3106 = vmatpush.msra.mxu0 %v1981
    %3107 = vmatpush.msra.mxu0 %v1976
    %3108 = vmatpush.msra.mxu0 %v1971
    %3109 = vmatpush.msra.mxu0 %v1966
    %3110 = vmatpush.msra.mxu0 %v1961
    %3111 = vmatmul.f32.gmra.mxu0 %v3078
    %v3112 = vpop.f32.mrf.mxu0
    %v3113 = vadd.f32 0.0, %v3112
    %3114 = vdwg.mxu0
    %3115 = vmatpush.msra.mxu0 0.0
    %3116 = vmatpush.msra.mxu0 0.0
    %3117 = vmatpush.msra.mxu0 0.0
    %3118 = vmatpush.msra.mxu0 0.0
    %3119 = vmatpush.msra.mxu0 0.0
    %3120 = vmatpush.msra.mxu0 0.0
    %3121 = vmatpush.msra.mxu0 0.0
    %3122 = vmatpush.msra.mxu0 0.0
    %3123 = vmatpush.msra.mxu0 0.0
    %3124 = vmatpush.msra.mxu0 %v3084
    %3125 = vmatpush.msra.mxu0 %v1987
    %3126 = vmatpush.msra.mxu0 %v1982
    %3127 = vmatpush.msra.mxu0 %v1977
    %3128 = vmatpush.msra.mxu0 %v1972
    %3129 = vmatpush.msra.mxu0 %v1967
    %3130 = vmatpush.msra.mxu0 %v1962
    %3131 = vmatmul.f32.gmra.mxu0 %v3078
    %v3132 = vpop.f32.mrf.mxu0
    %v3133 = vadd.f32 0.0, %v3132
    %3134 = vdwg.mxu0
    %3135 = vmatpush.msra.mxu0 0.0
    %3136 = vmatpush.msra.mxu0 0.0
    %3137 = vmatpush.msra.mxu0 0.0
    %3138 = vmatpush.msra.mxu0 0.0
    %3139 = vmatpush.msra.mxu0 0.0
    %3140 = vmatpush.msra.mxu0 0.0
    %3141 = vmatpush.msra.mxu0 0.0
    %3142 = vmatpush.msra.mxu0 0.0
    %3143 = vmatpush.msra.mxu0 0.0
    %3144 = vmatpush.msra.mxu0 %v3087
    %3145 = vmatpush.msra.mxu0 %v1988
    %3146 = vmatpush.msra.mxu0 %v1983
    %3147 = vmatpush.msra.mxu0 %v1978
    %3148 = vmatpush.msra.mxu0 %v1973
    %3149 = vmatpush.msra.mxu0 %v1968
    %3150 = vmatpush.msra.mxu0 %v1963
    %3151 = vmatmul.f32.gmra.mxu0 %v3078
    %v3152 = vpop.f32.mrf.mxu0
    %v3153 = vadd.f32 0.0, %v3152
    %3154 = vdwg.mxu0
    %3155 = vmatpush.msra.mxu0 0.0
    %3156 = vmatpush.msra.mxu0 0.0
    %3157 = vmatpush.msra.mxu0 0.0
    %3158 = vmatpush.msra.mxu0 0.0
    %3159 = vmatpush.msra.mxu0 0.0
    %3160 = vmatpush.msra.mxu0 0.0
    %3161 = vmatpush.msra.mxu0 0.0
    %3162 = vmatpush.msra.mxu0 0.0
    %3163 = vmatpush.msra.mxu0 0.0
    %3164 = vmatpush.msra.mxu0 %v3090
    %3165 = vmatpush.msra.mxu0 %v1989
    %3166 = vmatpush.msra.mxu0 %v1984
    %3167 = vmatpush.msra.mxu0 %v1979
    %3168 = vmatpush.msra.mxu0 %v1974
    %3169 = vmatpush.msra.mxu0 %v1969
    %3170 = vmatpush.msra.mxu0 %v1964
    %3171 = vmatmul.f32.gmra.mxu0 %v3078
    %v3172 = vpop.f32.mrf.mxu0
    %v3173 = vadd.f32 0.0, %v3172
    %3174 = vdwg.mxu0
    %3175 = vmatpush.msra.mxu0 0.0
    %3176 = vmatpush.msra.mxu0 0.0
    %3177 = vmatpush.msra.mxu0 0.0
    %3178 = vmatpush.msra.mxu0 0.0
    %3179 = vmatpush.msra.mxu0 0.0
    %3180 = vmatpush.msra.mxu0 0.0
    %3181 = vmatpush.msra.mxu0 0.0
    %3182 = vmatpush.msra.mxu0 0.0
    %3183 = vmatpush.msra.mxu0 0.0
    %3184 = vmatpush.msra.mxu0 %v3093
    %3185 = vmatpush.msra.mxu0 %v1990
    %3186 = vmatpush.msra.mxu0 %v1985
    %3187 = vmatpush.msra.mxu0 %v1980
    %3188 = vmatpush.msra.mxu0 %v1975
    %3189 = vmatpush.msra.mxu0 %v1970
    %3190 = vmatpush.msra.mxu0 %v1965
    %3191 = vmatmul.f32.gmra.mxu0 %v3078
    %v3192 = vpop.f32.mrf.mxu0
    %v3193 = vadd.f32 0.0, %v3192
    %3194 = vdwg.mxu0
    %v3196 = vsel %vm2486, %v1706, 0
    %v3199 = vsel %vm212, %v2026, 0
    %v3202 = vsel %vm212, %v2027, 0
    %v3205 = vsel %vm212, %v2028, 0
    %v3208 = vsel %vm212, %v2029, 0
    %v3211 = vsel %vm212, %v2030, 0
    %3213 = vmatpush.msra.mxu0 0.0
    %3214 = vmatpush.msra.mxu0 0.0
    %3215 = vmatpush.msra.mxu0 0.0
    %3216 = vmatpush.msra.mxu0 0.0
    %3217 = vmatpush.msra.mxu0 0.0
    %3218 = vmatpush.msra.mxu0 0.0
    %3219 = vmatpush.msra.mxu0 0.0
    %3220 = vmatpush.msra.mxu0 0.0
    %3221 = vmatpush.msra.mxu0 0.0
    %3222 = vmatpush.msra.mxu0 %v3199
    %3223 = vmatpush.msra.mxu0 %v2021
    %3224 = vmatpush.msra.mxu0 %v2016
    %3225 = vmatpush.msra.mxu0 %v2011
    %3226 = vmatpush.msra.mxu0 %v2006
    %3227 = vmatpush.msra.mxu0 %v2001
    %3228 = vmatpush.msra.mxu0 %v1996
    %3229 = vmatmul.f32.gmra.mxu0 %v3196
    %v3230 = vpop.f32.mrf.mxu0
    %v3231 = vadd.f32 0.0, %v3230
    %3232 = vdwg.mxu0
    %3233 = vmatpush.msra.mxu0 0.0
    %3234 = vmatpush.msra.mxu0 0.0
    %3235 = vmatpush.msra.mxu0 0.0
    %3236 = vmatpush.msra.mxu0 0.0
    %3237 = vmatpush.msra.mxu0 0.0
    %3238 = vmatpush.msra.mxu0 0.0
    %3239 = vmatpush.msra.mxu0 0.0
    %3240 = vmatpush.msra.mxu0 0.0
    %3241 = vmatpush.msra.mxu0 0.0
    %3242 = vmatpush.msra.mxu0 %v3202
    %3243 = vmatpush.msra.mxu0 %v2022
    %3244 = vmatpush.msra.mxu0 %v2017
    %3245 = vmatpush.msra.mxu0 %v2012
    %3246 = vmatpush.msra.mxu0 %v2007
    %3247 = vmatpush.msra.mxu0 %v2002
    %3248 = vmatpush.msra.mxu0 %v1997
    %3249 = vmatmul.f32.gmra.mxu0 %v3196
    %v3250 = vpop.f32.mrf.mxu0
    %v3251 = vadd.f32 0.0, %v3250
    %3252 = vdwg.mxu0
    %3253 = vmatpush.msra.mxu0 0.0
    %3254 = vmatpush.msra.mxu0 0.0
    %3255 = vmatpush.msra.mxu0 0.0
    %3256 = vmatpush.msra.mxu0 0.0
    %3257 = vmatpush.msra.mxu0 0.0
    %3258 = vmatpush.msra.mxu0 0.0
    %3259 = vmatpush.msra.mxu0 0.0
    %3260 = vmatpush.msra.mxu0 0.0
    %3261 = vmatpush.msra.mxu0 0.0
    %3262 = vmatpush.msra.mxu0 %v3205
    %3263 = vmatpush.msra.mxu0 %v2023
    %3264 = vmatpush.msra.mxu0 %v2018
    %3265 = vmatpush.msra.mxu0 %v2013
    %3266 = vmatpush.msra.mxu0 %v2008
    %3267 = vmatpush.msra.mxu0 %v2003
    %3268 = vmatpush.msra.mxu0 %v1998
    %3269 = vmatmul.f32.gmra.mxu0 %v3196
    %v3270 = vpop.f32.mrf.mxu0
    %v3271 = vadd.f32 0.0, %v3270
    %3272 = vdwg.mxu0
    %3273 = vmatpush.msra.mxu0 0.0
    %3274 = vmatpush.msra.mxu0 0.0
    %3275 = vmatpush.msra.mxu0 0.0
    %3276 = vmatpush.msra.mxu0 0.0
    %3277 = vmatpush.msra.mxu0 0.0
    %3278 = vmatpush.msra.mxu0 0.0
    %3279 = vmatpush.msra.mxu0 0.0
    %3280 = vmatpush.msra.mxu0 0.0
    %3281 = vmatpush.msra.mxu0 0.0
    %3282 = vmatpush.msra.mxu0 %v3208
    %3283 = vmatpush.msra.mxu0 %v2024
    %3284 = vmatpush.msra.mxu0 %v2019
    %3285 = vmatpush.msra.mxu0 %v2014
    %3286 = vmatpush.msra.mxu0 %v2009
    %3287 = vmatpush.msra.mxu0 %v2004
    %3288 = vmatpush.msra.mxu0 %v1999
    %3289 = vmatmul.f32.gmra.mxu0 %v3196
    %v3290 = vpop.f32.mrf.mxu0
    %v3291 = vadd.f32 0.0, %v3290
    %3292 = vdwg.mxu0
    %3293 = vmatpush.msra.mxu0 0.0
    %3294 = vmatpush.msra.mxu0 0.0
    %3295 = vmatpush.msra.mxu0 0.0
    %3296 = vmatpush.msra.mxu0 0.0
    %3297 = vmatpush.msra.mxu0 0.0
    %3298 = vmatpush.msra.mxu0 0.0
    %3299 = vmatpush.msra.mxu0 0.0
    %3300 = vmatpush.msra.mxu0 0.0
    %3301 = vmatpush.msra.mxu0 0.0
    %3302 = vmatpush.msra.mxu0 %v3211
    %3303 = vmatpush.msra.mxu0 %v2025
    %3304 = vmatpush.msra.mxu0 %v2020
    %3305 = vmatpush.msra.mxu0 %v2015
    %3306 = vmatpush.msra.mxu0 %v2010
    %3307 = vmatpush.msra.mxu0 %v2005
    %3308 = vmatpush.msra.mxu0 %v2000
    %3309 = vmatmul.f32.gmra.mxu0 %v3196
    %v3310 = vpop.f32.mrf.mxu0
    %v3311 = vadd.f32 0.0, %v3310
    %3312 = vdwg.mxu0
    %v3314 = vsel %vm2486, %v1710, 0
    %v3317 = vsel %vm212, %v2061, 0
    %v3320 = vsel %vm212, %v2062, 0
    %v3323 = vsel %vm212, %v2063, 0
    %v3326 = vsel %vm212, %v2064, 0
    %v3329 = vsel %vm212, %v2065, 0
    %3331 = vmatpush.msra.mxu0 0.0
    %3332 = vmatpush.msra.mxu0 0.0
    %3333 = vmatpush.msra.mxu0 0.0
    %3334 = vmatpush.msra.mxu0 0.0
    %3335 = vmatpush.msra.mxu0 0.0
    %3336 = vmatpush.msra.mxu0 0.0
    %3337 = vmatpush.msra.mxu0 0.0
    %3338 = vmatpush.msra.mxu0 0.0
    %3339 = vmatpush.msra.mxu0 0.0
    %3340 = vmatpush.msra.mxu0 %v3317
    %3341 = vmatpush.msra.mxu0 %v2056
    %3342 = vmatpush.msra.mxu0 %v2051
    %3343 = vmatpush.msra.mxu0 %v2046
    %3344 = vmatpush.msra.mxu0 %v2041
    %3345 = vmatpush.msra.mxu0 %v2036
    %3346 = vmatpush.msra.mxu0 %v2031
    %3347 = vmatmul.f32.gmra.mxu0 %v3314
    %v3348 = vpop.f32.mrf.mxu0
    %v3349 = vadd.f32 0.0, %v3348
    %3350 = vdwg.mxu0
    %3351 = vmatpush.msra.mxu0 0.0
    %3352 = vmatpush.msra.mxu0 0.0
    %3353 = vmatpush.msra.mxu0 0.0
    %3354 = vmatpush.msra.mxu0 0.0
    %3355 = vmatpush.msra.mxu0 0.0
    %3356 = vmatpush.msra.mxu0 0.0
    %3357 = vmatpush.msra.mxu0 0.0
    %3358 = vmatpush.msra.mxu0 0.0
    %3359 = vmatpush.msra.mxu0 0.0
    %3360 = vmatpush.msra.mxu0 %v3320
    %3361 = vmatpush.msra.mxu0 %v2057
    %3362 = vmatpush.msra.mxu0 %v2052
    %3363 = vmatpush.msra.mxu0 %v2047
    %3364 = vmatpush.msra.mxu0 %v2042
    %3365 = vmatpush.msra.mxu0 %v2037
    %3366 = vmatpush.msra.mxu0 %v2032
    %3367 = vmatmul.f32.gmra.mxu0 %v3314
    %v3368 = vpop.f32.mrf.mxu0
    %v3369 = vadd.f32 0.0, %v3368
    %3370 = vdwg.mxu0
    %3371 = vmatpush.msra.mxu0 0.0
    %3372 = vmatpush.msra.mxu0 0.0
    %3373 = vmatpush.msra.mxu0 0.0
    %3374 = vmatpush.msra.mxu0 0.0
    %3375 = vmatpush.msra.mxu0 0.0
    %3376 = vmatpush.msra.mxu0 0.0
    %3377 = vmatpush.msra.mxu0 0.0
    %3378 = vmatpush.msra.mxu0 0.0
    %3379 = vmatpush.msra.mxu0 0.0
    %3380 = vmatpush.msra.mxu0 %v3323
    %3381 = vmatpush.msra.mxu0 %v2058
    %3382 = vmatpush.msra.mxu0 %v2053
    %3383 = vmatpush.msra.mxu0 %v2048
    %3384 = vmatpush.msra.mxu0 %v2043
    %3385 = vmatpush.msra.mxu0 %v2038
    %3386 = vmatpush.msra.mxu0 %v2033
    %3387 = vmatmul.f32.gmra.mxu0 %v3314
    %v3388 = vpop.f32.mrf.mxu0
    %v3389 = vadd.f32 0.0, %v3388
    %3390 = vdwg.mxu0
    %3391 = vmatpush.msra.mxu0 0.0
    %3392 = vmatpush.msra.mxu0 0.0
    %3393 = vmatpush.msra.mxu0 0.0
    %3394 = vmatpush.msra.mxu0 0.0
    %3395 = vmatpush.msra.mxu0 0.0
    %3396 = vmatpush.msra.mxu0 0.0
    %3397 = vmatpush.msra.mxu0 0.0
    %3398 = vmatpush.msra.mxu0 0.0
    %3399 = vmatpush.msra.mxu0 0.0
    %3400 = vmatpush.msra.mxu0 %v3326
    %3401 = vmatpush.msra.mxu0 %v2059
    %3402 = vmatpush.msra.mxu0 %v2054
    %3403 = vmatpush.msra.mxu0 %v2049
    %3404 = vmatpush.msra.mxu0 %v2044
    %3405 = vmatpush.msra.mxu0 %v2039
    %3406 = vmatpush.msra.mxu0 %v2034
    %3407 = vmatmul.f32.gmra.mxu0 %v3314
    %v3408 = vpop.f32.mrf.mxu0
    %v3409 = vadd.f32 0.0, %v3408
    %3410 = vdwg.mxu0
    %3411 = vmatpush.msra.mxu0 0.0
    %3412 = vmatpush.msra.mxu0 0.0
    %3413 = vmatpush.msra.mxu0 0.0
    %3414 = vmatpush.msra.mxu0 0.0
    %3415 = vmatpush.msra.mxu0 0.0
    %3416 = vmatpush.msra.mxu0 0.0
    %3417 = vmatpush.msra.mxu0 0.0
    %3418 = vmatpush.msra.mxu0 0.0
    %3419 = vmatpush.msra.mxu0 0.0
    %3420 = vmatpush.msra.mxu0 %v3329
    %3421 = vmatpush.msra.mxu0 %v2060
    %3422 = vmatpush.msra.mxu0 %v2055
    %3423 = vmatpush.msra.mxu0 %v2050
    %3424 = vmatpush.msra.mxu0 %v2045
    %3425 = vmatpush.msra.mxu0 %v2040
    %3426 = vmatpush.msra.mxu0 %v2035
    %3427 = vmatmul.f32.gmra.mxu0 %v3314
    %v3428 = vpop.f32.mrf.mxu0
    %v3429 = vadd.f32 0.0, %v3428
    %3430 = vdwg.mxu0
    %v3432 = vsel %vm2486, %v1727, 0
    %v3435 = vsel %vm212, %v2096, 0
    %v3438 = vsel %vm212, %v2097, 0
    %v3441 = vsel %vm212, %v2098, 0
    %v3444 = vsel %vm212, %v2099, 0
    %v3447 = vsel %vm212, %v2100, 0
    %3449 = vmatpush.msra.mxu0 0.0
    %3450 = vmatpush.msra.mxu0 0.0
    %3451 = vmatpush.msra.mxu0 0.0
    %3452 = vmatpush.msra.mxu0 0.0
    %3453 = vmatpush.msra.mxu0 0.0
    %3454 = vmatpush.msra.mxu0 0.0
    %3455 = vmatpush.msra.mxu0 0.0
    %3456 = vmatpush.msra.mxu0 0.0
    %3457 = vmatpush.msra.mxu0 0.0
    %3458 = vmatpush.msra.mxu0 %v3435
    %3459 = vmatpush.msra.mxu0 %v2091
    %3460 = vmatpush.msra.mxu0 %v2086
    %3461 = vmatpush.msra.mxu0 %v2081
    %3462 = vmatpush.msra.mxu0 %v2076
    %3463 = vmatpush.msra.mxu0 %v2071
    %3464 = vmatpush.msra.mxu0 %v2066
    %3465 = vmatmul.f32.gmra.mxu0 %v3432
    %v3466 = vpop.f32.mrf.mxu0
    %v3467 = vadd.f32 0.0, %v3466
    %3468 = vdwg.mxu0
    %3469 = vmatpush.msra.mxu0 0.0
    %3470 = vmatpush.msra.mxu0 0.0
    %3471 = vmatpush.msra.mxu0 0.0
    %3472 = vmatpush.msra.mxu0 0.0
    %3473 = vmatpush.msra.mxu0 0.0
    %3474 = vmatpush.msra.mxu0 0.0
    %3475 = vmatpush.msra.mxu0 0.0
    %3476 = vmatpush.msra.mxu0 0.0
    %3477 = vmatpush.msra.mxu0 0.0
    %3478 = vmatpush.msra.mxu0 %v3438
    %3479 = vmatpush.msra.mxu0 %v2092
    %3480 = vmatpush.msra.mxu0 %v2087
    %3481 = vmatpush.msra.mxu0 %v2082
    %3482 = vmatpush.msra.mxu0 %v2077
    %3483 = vmatpush.msra.mxu0 %v2072
    %3484 = vmatpush.msra.mxu0 %v2067
    %3485 = vmatmul.f32.gmra.mxu0 %v3432
    %v3486 = vpop.f32.mrf.mxu0
    %v3487 = vadd.f32 0.0, %v3486
    %3488 = vdwg.mxu0
    %3489 = vmatpush.msra.mxu0 0.0
    %3490 = vmatpush.msra.mxu0 0.0
    %3491 = vmatpush.msra.mxu0 0.0
    %3492 = vmatpush.msra.mxu0 0.0
    %3493 = vmatpush.msra.mxu0 0.0
    %3494 = vmatpush.msra.mxu0 0.0
    %3495 = vmatpush.msra.mxu0 0.0
    %3496 = vmatpush.msra.mxu0 0.0
    %3497 = vmatpush.msra.mxu0 0.0
    %3498 = vmatpush.msra.mxu0 %v3441
    %3499 = vmatpush.msra.mxu0 %v2093
    %3500 = vmatpush.msra.mxu0 %v2088
    %3501 = vmatpush.msra.mxu0 %v2083
    %3502 = vmatpush.msra.mxu0 %v2078
    %3503 = vmatpush.msra.mxu0 %v2073
    %3504 = vmatpush.msra.mxu0 %v2068
    %3505 = vmatmul.f32.gmra.mxu0 %v3432
    %v3506 = vpop.f32.mrf.mxu0
    %v3507 = vadd.f32 0.0, %v3506
    %3508 = vdwg.mxu0
    %3509 = vmatpush.msra.mxu0 0.0
    %3510 = vmatpush.msra.mxu0 0.0
    %3511 = vmatpush.msra.mxu0 0.0
    %3512 = vmatpush.msra.mxu0 0.0
    %3513 = vmatpush.msra.mxu0 0.0
    %3514 = vmatpush.msra.mxu0 0.0
    %3515 = vmatpush.msra.mxu0 0.0
    %3516 = vmatpush.msra.mxu0 0.0
    %3517 = vmatpush.msra.mxu0 0.0
    %3518 = vmatpush.msra.mxu0 %v3444
    %3519 = vmatpush.msra.mxu0 %v2094
    %3520 = vmatpush.msra.mxu0 %v2089
    %3521 = vmatpush.msra.mxu0 %v2084
    %3522 = vmatpush.msra.mxu0 %v2079
    %3523 = vmatpush.msra.mxu0 %v2074
    %3524 = vmatpush.msra.mxu0 %v2069
    %3525 = vmatmul.f32.gmra.mxu0 %v3432
    %v3526 = vpop.f32.mrf.mxu0
    %v3527 = vadd.f32 0.0, %v3526
    %3528 = vdwg.mxu0
    %3529 = vmatpush.msra.mxu0 0.0
    %3530 = vmatpush.msra.mxu0 0.0
    %3531 = vmatpush.msra.mxu0 0.0
    %3532 = vmatpush.msra.mxu0 0.0
    %3533 = vmatpush.msra.mxu0 0.0
    %3534 = vmatpush.msra.mxu0 0.0
    %3535 = vmatpush.msra.mxu0 0.0
    %3536 = vmatpush.msra.mxu0 0.0
    %3537 = vmatpush.msra.mxu0 0.0
    %3538 = vmatpush.msra.mxu0 %v3447
    %3539 = vmatpush.msra.mxu0 %v2095
    %3540 = vmatpush.msra.mxu0 %v2090
    %3541 = vmatpush.msra.mxu0 %v2085
    %3542 = vmatpush.msra.mxu0 %v2080
    %3543 = vmatpush.msra.mxu0 %v2075
    %3544 = vmatpush.msra.mxu0 %v2070
    %3545 = vmatmul.f32.gmra.mxu0 %v3432
    %v3546 = vpop.f32.mrf.mxu0
    %v3547 = vadd.f32 0.0, %v3546
    %3548 = vdwg.mxu0
    %v3550 = vsel %vm2486, %v1733, 0
    %v3553 = vsel %vm212, %v2131, 0
    %v3556 = vsel %vm212, %v2132, 0
    %v3559 = vsel %vm212, %v2133, 0
    %v3562 = vsel %vm212, %v2134, 0
    %v3565 = vsel %vm212, %v2135, 0
    %3567 = vmatpush.msra.mxu0 0.0
    %3568 = vmatpush.msra.mxu0 0.0
    %3569 = vmatpush.msra.mxu0 0.0
    %3570 = vmatpush.msra.mxu0 0.0
    %3571 = vmatpush.msra.mxu0 0.0
    %3572 = vmatpush.msra.mxu0 0.0
    %3573 = vmatpush.msra.mxu0 0.0
    %3574 = vmatpush.msra.mxu0 0.0
    %3575 = vmatpush.msra.mxu0 0.0
    %3576 = vmatpush.msra.mxu0 %v3553
    %3577 = vmatpush.msra.mxu0 %v2126
    %3578 = vmatpush.msra.mxu0 %v2121
    %3579 = vmatpush.msra.mxu0 %v2116
    %3580 = vmatpush.msra.mxu0 %v2111
    %3581 = vmatpush.msra.mxu0 %v2106
    %3582 = vmatpush.msra.mxu0 %v2101
    %3583 = vmatmul.f32.gmra.mxu0 %v3550
    %v3584 = vpop.f32.mrf.mxu0
    %v3585 = vadd.f32 0.0, %v3584
    %3586 = vdwg.mxu0
    %3587 = vmatpush.msra.mxu0 0.0
    %3588 = vmatpush.msra.mxu0 0.0
    %3589 = vmatpush.msra.mxu0 0.0
    %3590 = vmatpush.msra.mxu0 0.0
    %3591 = vmatpush.msra.mxu0 0.0
    %3592 = vmatpush.msra.mxu0 0.0
    %3593 = vmatpush.msra.mxu0 0.0
    %3594 = vmatpush.msra.mxu0 0.0
    %3595 = vmatpush.msra.mxu0 0.0
    %3596 = vmatpush.msra.mxu0 %v3556
    %3597 = vmatpush.msra.mxu0 %v2127
    %3598 = vmatpush.msra.mxu0 %v2122
    %3599 = vmatpush.msra.mxu0 %v2117
    %3600 = vmatpush.msra.mxu0 %v2112
    %3601 = vmatpush.msra.mxu0 %v2107
    %3602 = vmatpush.msra.mxu0 %v2102
    %3603 = vmatmul.f32.gmra.mxu0 %v3550
    %v3604 = vpop.f32.mrf.mxu0
    %v3605 = vadd.f32 0.0, %v3604
    %3606 = vdwg.mxu0
    %3607 = vmatpush.msra.mxu0 0.0
    %3608 = vmatpush.msra.mxu0 0.0
    %3609 = vmatpush.msra.mxu0 0.0
    %3610 = vmatpush.msra.mxu0 0.0
    %3611 = vmatpush.msra.mxu0 0.0
    %3612 = vmatpush.msra.mxu0 0.0
    %3613 = vmatpush.msra.mxu0 0.0
    %3614 = vmatpush.msra.mxu0 0.0
    %3615 = vmatpush.msra.mxu0 0.0
    %3616 = vmatpush.msra.mxu0 %v3559
    %3617 = vmatpush.msra.mxu0 %v2128
    %3618 = vmatpush.msra.mxu0 %v2123
    %3619 = vmatpush.msra.mxu0 %v2118
    %3620 = vmatpush.msra.mxu0 %v2113
    %3621 = vmatpush.msra.mxu0 %v2108
    %3622 = vmatpush.msra.mxu0 %v2103
    %3623 = vmatmul.f32.gmra.mxu0 %v3550
    %v3624 = vpop.f32.mrf.mxu0
    %v3625 = vadd.f32 0.0, %v3624
    %3626 = vdwg.mxu0
    %3627 = vmatpush.msra.mxu0 0.0
    %3628 = vmatpush.msra.mxu0 0.0
    %3629 = vmatpush.msra.mxu0 0.0
    %3630 = vmatpush.msra.mxu0 0.0
    %3631 = vmatpush.msra.mxu0 0.0
    %3632 = vmatpush.msra.mxu0 0.0
    %3633 = vmatpush.msra.mxu0 0.0
    %3634 = vmatpush.msra.mxu0 0.0
    %3635 = vmatpush.msra.mxu0 0.0
    %3636 = vmatpush.msra.mxu0 %v3562
    %3637 = vmatpush.msra.mxu0 %v2129
    %3638 = vmatpush.msra.mxu0 %v2124
    %3639 = vmatpush.msra.mxu0 %v2119
    %3640 = vmatpush.msra.mxu0 %v2114
    %3641 = vmatpush.msra.mxu0 %v2109
    %3642 = vmatpush.msra.mxu0 %v2104
    %3643 = vmatmul.f32.gmra.mxu0 %v3550
    %v3644 = vpop.f32.mrf.mxu0
    %v3645 = vadd.f32 0.0, %v3644
    %3646 = vdwg.mxu0
    %3647 = vmatpush.msra.mxu0 0.0
    %3648 = vmatpush.msra.mxu0 0.0
    %3649 = vmatpush.msra.mxu0 0.0
    %3650 = vmatpush.msra.mxu0 0.0
    %3651 = vmatpush.msra.mxu0 0.0
    %3652 = vmatpush.msra.mxu0 0.0
    %3653 = vmatpush.msra.mxu0 0.0
    %3654 = vmatpush.msra.mxu0 0.0
    %3655 = vmatpush.msra.mxu0 0.0
    %3656 = vmatpush.msra.mxu0 %v3565
    %3657 = vmatpush.msra.mxu0 %v2130
    %3658 = vmatpush.msra.mxu0 %v2125
    %3659 = vmatpush.msra.mxu0 %v2120
    %3660 = vmatpush.msra.mxu0 %v2115
    %3661 = vmatpush.msra.mxu0 %v2110
    %3662 = vmatpush.msra.mxu0 %v2105
    %3663 = vmatmul.f32.gmra.mxu0 %v3550
    %v3664 = vpop.f32.mrf.mxu0
    %v3665 = vadd.f32 0.0, %v3664
    %3666 = vdwg.mxu0
    %v3668 = vsel %vm2486, %v1731, 0
    %v3671 = vsel %vm212, %v2166, 0
    %v3674 = vsel %vm212, %v2167, 0
    %v3677 = vsel %vm212, %v2168, 0
    %v3680 = vsel %vm212, %v2169, 0
    %v3683 = vsel %vm212, %v2170, 0
    %3685 = vmatpush.msra.mxu0 0.0
    %3686 = vmatpush.msra.mxu0 0.0
    %3687 = vmatpush.msra.mxu0 0.0
    %3688 = vmatpush.msra.mxu0 0.0
    %3689 = vmatpush.msra.mxu0 0.0
    %3690 = vmatpush.msra.mxu0 0.0
    %3691 = vmatpush.msra.mxu0 0.0
    %3692 = vmatpush.msra.mxu0 0.0
    %3693 = vmatpush.msra.mxu0 0.0
    %3694 = vmatpush.msra.mxu0 %v3671
    %3695 = vmatpush.msra.mxu0 %v2161
    %3696 = vmatpush.msra.mxu0 %v2156
    %3697 = vmatpush.msra.mxu0 %v2151
    %3698 = vmatpush.msra.mxu0 %v2146
    %3699 = vmatpush.msra.mxu0 %v2141
    %3700 = vmatpush.msra.mxu0 %v2136
    %3701 = vmatmul.f32.gmra.mxu0 %v3668
    %v3702 = vpop.f32.mrf.mxu0
    %v3703 = vadd.f32 0.0, %v3702
    %3704 = vdwg.mxu0
    %3705 = vmatpush.msra.mxu0 0.0
    %3706 = vmatpush.msra.mxu0 0.0
    %3707 = vmatpush.msra.mxu0 0.0
    %3708 = vmatpush.msra.mxu0 0.0
    %3709 = vmatpush.msra.mxu0 0.0
    %3710 = vmatpush.msra.mxu0 0.0
    %3711 = vmatpush.msra.mxu0 0.0
    %3712 = vmatpush.msra.mxu0 0.0
    %3713 = vmatpush.msra.mxu0 0.0
    %3714 = vmatpush.msra.mxu0 %v3674
    %3715 = vmatpush.msra.mxu0 %v2162
    %3716 = vmatpush.msra.mxu0 %v2157
    %3717 = vmatpush.msra.mxu0 %v2152
    %3718 = vmatpush.msra.mxu0 %v2147
    %3719 = vmatpush.msra.mxu0 %v2142
    %3720 = vmatpush.msra.mxu0 %v2137
    %3721 = vmatmul.f32.gmra.mxu0 %v3668
    %v3722 = vpop.f32.mrf.mxu0
    %v3723 = vadd.f32 0.0, %v3722
    %3724 = vdwg.mxu0
    %3725 = vmatpush.msra.mxu0 0.0
    %3726 = vmatpush.msra.mxu0 0.0
    %3727 = vmatpush.msra.mxu0 0.0
    %3728 = vmatpush.msra.mxu0 0.0
    %3729 = vmatpush.msra.mxu0 0.0
    %3730 = vmatpush.msra.mxu0 0.0
    %3731 = vmatpush.msra.mxu0 0.0
    %3732 = vmatpush.msra.mxu0 0.0
    %3733 = vmatpush.msra.mxu0 0.0
    %3734 = vmatpush.msra.mxu0 %v3677
    %3735 = vmatpush.msra.mxu0 %v2163
    %3736 = vmatpush.msra.mxu0 %v2158
    %3737 = vmatpush.msra.mxu0 %v2153
    %3738 = vmatpush.msra.mxu0 %v2148
    %3739 = vmatpush.msra.mxu0 %v2143
    %3740 = vmatpush.msra.mxu0 %v2138
    %3741 = vmatmul.f32.gmra.mxu0 %v3668
    %v3742 = vpop.f32.mrf.mxu0
    %v3743 = vadd.f32 0.0, %v3742
    %3744 = vdwg.mxu0
    %3745 = vmatpush.msra.mxu0 0.0
    %3746 = vmatpush.msra.mxu0 0.0
    %3747 = vmatpush.msra.mxu0 0.0
    %3748 = vmatpush.msra.mxu0 0.0
    %3749 = vmatpush.msra.mxu0 0.0
    %3750 = vmatpush.msra.mxu0 0.0
    %3751 = vmatpush.msra.mxu0 0.0
    %3752 = vmatpush.msra.mxu0 0.0
    %3753 = vmatpush.msra.mxu0 0.0
    %3754 = vmatpush.msra.mxu0 %v3680
    %3755 = vmatpush.msra.mxu0 %v2164
    %3756 = vmatpush.msra.mxu0 %v2159
    %3757 = vmatpush.msra.mxu0 %v2154
    %3758 = vmatpush.msra.mxu0 %v2149
    %3759 = vmatpush.msra.mxu0 %v2144
    %3760 = vmatpush.msra.mxu0 %v2139
    %3761 = vmatmul.f32.gmra.mxu0 %v3668
    %v3762 = vpop.f32.mrf.mxu0
    %v3763 = vadd.f32 0.0, %v3762
    %3764 = vdwg.mxu0
    %3765 = vmatpush.msra.mxu0 0.0
    %3766 = vmatpush.msra.mxu0 0.0
    %3767 = vmatpush.msra.mxu0 0.0
    %3768 = vmatpush.msra.mxu0 0.0
    %3769 = vmatpush.msra.mxu0 0.0
    %3770 = vmatpush.msra.mxu0 0.0
    %3771 = vmatpush.msra.mxu0 0.0
    %3772 = vmatpush.msra.mxu0 0.0
    %3773 = vmatpush.msra.mxu0 0.0
    %3774 = vmatpush.msra.mxu0 %v3683
    %3775 = vmatpush.msra.mxu0 %v2165
    %3776 = vmatpush.msra.mxu0 %v2160
    %3777 = vmatpush.msra.mxu0 %v2155
    %3778 = vmatpush.msra.mxu0 %v2150
    %3779 = vmatpush.msra.mxu0 %v2145
    %3780 = vmatpush.msra.mxu0 %v2140
    %3781 = vmatmul.f32.gmra.mxu0 %v3668
    %v3782 = vpop.f32.mrf.mxu0
    %v3783 = vadd.f32 0.0, %v3782
    %3784 = vdwg.mxu0
    %v3786 = vsel %vm2486, %v1735, 0
    %v3789 = vsel %vm212, %v2201, 0
    %v3792 = vsel %vm212, %v2202, 0
    %v3795 = vsel %vm212, %v2203, 0
    %v3798 = vsel %vm212, %v2204, 0
    %v3801 = vsel %vm212, %v2205, 0
    %3803 = vmatpush.msra.mxu0 0.0
    %3804 = vmatpush.msra.mxu0 0.0
    %3805 = vmatpush.msra.mxu0 0.0
    %3806 = vmatpush.msra.mxu0 0.0
    %3807 = vmatpush.msra.mxu0 0.0
    %3808 = vmatpush.msra.mxu0 0.0
    %3809 = vmatpush.msra.mxu0 0.0
    %3810 = vmatpush.msra.mxu0 0.0
    %3811 = vmatpush.msra.mxu0 0.0
    %3812 = vmatpush.msra.mxu0 %v3789
    %3813 = vmatpush.msra.mxu0 %v2196
    %3814 = vmatpush.msra.mxu0 %v2191
    %3815 = vmatpush.msra.mxu0 %v2186
    %3816 = vmatpush.msra.mxu0 %v2181
    %3817 = vmatpush.msra.mxu0 %v2176
    %3818 = vmatpush.msra.mxu0 %v2171
    %3819 = vmatmul.f32.gmra.mxu0 %v3786
    %v3820 = vpop.f32.mrf.mxu0
    %v3821 = vadd.f32 0.0, %v3820
    %3822 = vdwg.mxu0
    %3823 = vmatpush.msra.mxu0 0.0
    %3824 = vmatpush.msra.mxu0 0.0
    %3825 = vmatpush.msra.mxu0 0.0
    %3826 = vmatpush.msra.mxu0 0.0
    %3827 = vmatpush.msra.mxu0 0.0
    %3828 = vmatpush.msra.mxu0 0.0
    %3829 = vmatpush.msra.mxu0 0.0
    %3830 = vmatpush.msra.mxu0 0.0
    %3831 = vmatpush.msra.mxu0 0.0
    %3832 = vmatpush.msra.mxu0 %v3792
    %3833 = vmatpush.msra.mxu0 %v2197
    %3834 = vmatpush.msra.mxu0 %v2192
    %3835 = vmatpush.msra.mxu0 %v2187
    %3836 = vmatpush.msra.mxu0 %v2182
    %3837 = vmatpush.msra.mxu0 %v2177
    %3838 = vmatpush.msra.mxu0 %v2172
    %3839 = vmatmul.f32.gmra.mxu0 %v3786
    %v3840 = vpop.f32.mrf.mxu0
    %v3841 = vadd.f32 0.0, %v3840
    %3842 = vdwg.mxu0
    %3843 = vmatpush.msra.mxu0 0.0
    %3844 = vmatpush.msra.mxu0 0.0
    %3845 = vmatpush.msra.mxu0 0.0
    %3846 = vmatpush.msra.mxu0 0.0
    %3847 = vmatpush.msra.mxu0 0.0
    %3848 = vmatpush.msra.mxu0 0.0
    %3849 = vmatpush.msra.mxu0 0.0
    %3850 = vmatpush.msra.mxu0 0.0
    %3851 = vmatpush.msra.mxu0 0.0
    %3852 = vmatpush.msra.mxu0 %v3795
    %3853 = vmatpush.msra.mxu0 %v2198
    %3854 = vmatpush.msra.mxu0 %v2193
    %3855 = vmatpush.msra.mxu0 %v2188
    %3856 = vmatpush.msra.mxu0 %v2183
    %3857 = vmatpush.msra.mxu0 %v2178
    %3858 = vmatpush.msra.mxu0 %v2173
    %3859 = vmatmul.f32.gmra.mxu0 %v3786
    %v3860 = vpop.f32.mrf.mxu0
    %v3861 = vadd.f32 0.0, %v3860
    %3862 = vdwg.mxu0
    %3863 = vmatpush.msra.mxu0 0.0
    %3864 = vmatpush.msra.mxu0 0.0
    %3865 = vmatpush.msra.mxu0 0.0
    %3866 = vmatpush.msra.mxu0 0.0
    %3867 = vmatpush.msra.mxu0 0.0
    %3868 = vmatpush.msra.mxu0 0.0
    %3869 = vmatpush.msra.mxu0 0.0
    %3870 = vmatpush.msra.mxu0 0.0
    %3871 = vmatpush.msra.mxu0 0.0
    %3872 = vmatpush.msra.mxu0 %v3798
    %3873 = vmatpush.msra.mxu0 %v2199
    %3874 = vmatpush.msra.mxu0 %v2194
    %3875 = vmatpush.msra.mxu0 %v2189
    %3876 = vmatpush.msra.mxu0 %v2184
    %3877 = vmatpush.msra.mxu0 %v2179
    %3878 = vmatpush.msra.mxu0 %v2174
    %3879 = vmatmul.f32.gmra.mxu0 %v3786
    %v3880 = vpop.f32.mrf.mxu0
    %v3881 = vadd.f32 0.0, %v3880
    %3882 = vdwg.mxu0
    %3883 = vmatpush.msra.mxu0 0.0
    %3884 = vmatpush.msra.mxu0 0.0
    %3885 = vmatpush.msra.mxu0 0.0
    %3886 = vmatpush.msra.mxu0 0.0
    %3887 = vmatpush.msra.mxu0 0.0
    %3888 = vmatpush.msra.mxu0 0.0
    %3889 = vmatpush.msra.mxu0 0.0
    %3890 = vmatpush.msra.mxu0 0.0
    %3891 = vmatpush.msra.mxu0 0.0
    %3892 = vmatpush.msra.mxu0 %v3801
    %3893 = vmatpush.msra.mxu0 %v2200
    %3894 = vmatpush.msra.mxu0 %v2195
    %3895 = vmatpush.msra.mxu0 %v2190
    %3896 = vmatpush.msra.mxu0 %v2185
    %3897 = vmatpush.msra.mxu0 %v2180
    %3898 = vmatpush.msra.mxu0 %v2175
    %3899 = vmatmul.f32.gmra.mxu0 %v3786
    %v3900 = vpop.f32.mrf.mxu0
    %v3901 = vadd.f32 0.0, %v3900
    %3902 = vdwg.mxu0
    %v3904 = vsel %vm2486, %v1752, 0
    %v3907 = vsel %vm212, %v2236, 0
    %v3910 = vsel %vm212, %v2237, 0
    %v3913 = vsel %vm212, %v2238, 0
    %v3916 = vsel %vm212, %v2239, 0
    %v3919 = vsel %vm212, %v2240, 0
    %3921 = vmatpush.msra.mxu0 0.0
    %3922 = vmatpush.msra.mxu0 0.0
    %3923 = vmatpush.msra.mxu0 0.0
    %3924 = vmatpush.msra.mxu0 0.0
    %3925 = vmatpush.msra.mxu0 0.0
    %3926 = vmatpush.msra.mxu0 0.0
    %3927 = vmatpush.msra.mxu0 0.0
    %3928 = vmatpush.msra.mxu0 0.0
    %3929 = vmatpush.msra.mxu0 0.0
    %3930 = vmatpush.msra.mxu0 %v3907
    %3931 = vmatpush.msra.mxu0 %v2231
    %3932 = vmatpush.msra.mxu0 %v2226
    %3933 = vmatpush.msra.mxu0 %v2221
    %3934 = vmatpush.msra.mxu0 %v2216
    %3935 = vmatpush.msra.mxu0 %v2211
    %3936 = vmatpush.msra.mxu0 %v2206
    %3937 = vmatmul.f32.gmra.mxu0 %v3904
    %v3938 = vpop.f32.mrf.mxu0
    %v3939 = vadd.f32 0.0, %v3938
    %3940 = vdwg.mxu0
    %3941 = vmatpush.msra.mxu0 0.0
    %3942 = vmatpush.msra.mxu0 0.0
    %3943 = vmatpush.msra.mxu0 0.0
    %3944 = vmatpush.msra.mxu0 0.0
    %3945 = vmatpush.msra.mxu0 0.0
    %3946 = vmatpush.msra.mxu0 0.0
    %3947 = vmatpush.msra.mxu0 0.0
    %3948 = vmatpush.msra.mxu0 0.0
    %3949 = vmatpush.msra.mxu0 0.0
    %3950 = vmatpush.msra.mxu0 %v3910
    %3951 = vmatpush.msra.mxu0 %v2232
    %3952 = vmatpush.msra.mxu0 %v2227
    %3953 = vmatpush.msra.mxu0 %v2222
    %3954 = vmatpush.msra.mxu0 %v2217
    %3955 = vmatpush.msra.mxu0 %v2212
    %3956 = vmatpush.msra.mxu0 %v2207
    %3957 = vmatmul.f32.gmra.mxu0 %v3904
    %v3958 = vpop.f32.mrf.mxu0
    %v3959 = vadd.f32 0.0, %v3958
    %3960 = vdwg.mxu0
    %3961 = vmatpush.msra.mxu0 0.0
    %3962 = vmatpush.msra.mxu0 0.0
    %3963 = vmatpush.msra.mxu0 0.0
    %3964 = vmatpush.msra.mxu0 0.0
    %3965 = vmatpush.msra.mxu0 0.0
    %3966 = vmatpush.msra.mxu0 0.0
    %3967 = vmatpush.msra.mxu0 0.0
    %3968 = vmatpush.msra.mxu0 0.0
    %3969 = vmatpush.msra.mxu0 0.0
    %3970 = vmatpush.msra.mxu0 %v3913
    %3971 = vmatpush.msra.mxu0 %v2233
    %3972 = vmatpush.msra.mxu0 %v2228
    %3973 = vmatpush.msra.mxu0 %v2223
    %3974 = vmatpush.msra.mxu0 %v2218
    %3975 = vmatpush.msra.mxu0 %v2213
    %3976 = vmatpush.msra.mxu0 %v2208
    %3977 = vmatmul.f32.gmra.mxu0 %v3904
    %v3978 = vpop.f32.mrf.mxu0
    %v3979 = vadd.f32 0.0, %v3978
    %3980 = vdwg.mxu0
    %3981 = vmatpush.msra.mxu0 0.0
    %3982 = vmatpush.msra.mxu0 0.0
    %3983 = vmatpush.msra.mxu0 0.0
    %3984 = vmatpush.msra.mxu0 0.0
    %3985 = vmatpush.msra.mxu0 0.0
    %3986 = vmatpush.msra.mxu0 0.0
    %3987 = vmatpush.msra.mxu0 0.0
    %3988 = vmatpush.msra.mxu0 0.0
    %3989 = vmatpush.msra.mxu0 0.0
    %3990 = vmatpush.msra.mxu0 %v3916
    %3991 = vmatpush.msra.mxu0 %v2234
    %3992 = vmatpush.msra.mxu0 %v2229
    %3993 = vmatpush.msra.mxu0 %v2224
    %3994 = vmatpush.msra.mxu0 %v2219
    %3995 = vmatpush.msra.mxu0 %v2214
    %3996 = vmatpush.msra.mxu0 %v2209
    %3997 = vmatmul.f32.gmra.mxu0 %v3904
    %v3998 = vpop.f32.mrf.mxu0
    %v3999 = vadd.f32 0.0, %v3998
    %4000 = vdwg.mxu0
    %4001 = vmatpush.msra.mxu0 0.0
    %4002 = vmatpush.msra.mxu0 0.0
    %4003 = vmatpush.msra.mxu0 0.0
    %4004 = vmatpush.msra.mxu0 0.0
    %4005 = vmatpush.msra.mxu0 0.0
    %4006 = vmatpush.msra.mxu0 0.0
    %4007 = vmatpush.msra.mxu0 0.0
    %4008 = vmatpush.msra.mxu0 0.0
    %4009 = vmatpush.msra.mxu0 0.0
    %4010 = vmatpush.msra.mxu0 %v3919
    %4011 = vmatpush.msra.mxu0 %v2235
    %4012 = vmatpush.msra.mxu0 %v2230
    %4013 = vmatpush.msra.mxu0 %v2225
    %4014 = vmatpush.msra.mxu0 %v2220
    %4015 = vmatpush.msra.mxu0 %v2215
    %4016 = vmatpush.msra.mxu0 %v2210
    %4017 = vmatmul.f32.gmra.mxu0 %v3904
    %v4018 = vpop.f32.mrf.mxu0
    %v4019 = vadd.f32 0.0, %v4018
    %4020 = vdwg.mxu0
    %v4022 = vsel %vm2486, %v1758, 0
    %v4025 = vsel %vm212, %v2271, 0
    %v4028 = vsel %vm212, %v2272, 0
    %v4031 = vsel %vm212, %v2273, 0
    %v4034 = vsel %vm212, %v2274, 0
    %v4037 = vsel %vm212, %v2275, 0
    %4039 = vmatpush.msra.mxu0 0.0
    %4040 = vmatpush.msra.mxu0 0.0
    %4041 = vmatpush.msra.mxu0 0.0
    %4042 = vmatpush.msra.mxu0 0.0
    %4043 = vmatpush.msra.mxu0 0.0
    %4044 = vmatpush.msra.mxu0 0.0
    %4045 = vmatpush.msra.mxu0 0.0
    %4046 = vmatpush.msra.mxu0 0.0
    %4047 = vmatpush.msra.mxu0 0.0
    %4048 = vmatpush.msra.mxu0 %v4025
    %4049 = vmatpush.msra.mxu0 %v2266
    %4050 = vmatpush.msra.mxu0 %v2261
    %4051 = vmatpush.msra.mxu0 %v2256
    %4052 = vmatpush.msra.mxu0 %v2251
    %4053 = vmatpush.msra.mxu0 %v2246
    %4054 = vmatpush.msra.mxu0 %v2241
    %4055 = vmatmul.f32.gmra.mxu0 %v4022
    %v4056 = vpop.f32.mrf.mxu0
    %v4057 = vadd.f32 0.0, %v4056
    %4058 = vdwg.mxu0
    %4059 = vmatpush.msra.mxu0 0.0
    %4060 = vmatpush.msra.mxu0 0.0
    %4061 = vmatpush.msra.mxu0 0.0
    %4062 = vmatpush.msra.mxu0 0.0
    %4063 = vmatpush.msra.mxu0 0.0
    %4064 = vmatpush.msra.mxu0 0.0
    %4065 = vmatpush.msra.mxu0 0.0
    %4066 = vmatpush.msra.mxu0 0.0
    %4067 = vmatpush.msra.mxu0 0.0
    %4068 = vmatpush.msra.mxu0 %v4028
    %4069 = vmatpush.msra.mxu0 %v2267
    %4070 = vmatpush.msra.mxu0 %v2262
    %4071 = vmatpush.msra.mxu0 %v2257
    %4072 = vmatpush.msra.mxu0 %v2252
    %4073 = vmatpush.msra.mxu0 %v2247
    %4074 = vmatpush.msra.mxu0 %v2242
    %4075 = vmatmul.f32.gmra.mxu0 %v4022
    %v4076 = vpop.f32.mrf.mxu0
    %v4077 = vadd.f32 0.0, %v4076
    %4078 = vdwg.mxu0
    %4079 = vmatpush.msra.mxu0 0.0
    %4080 = vmatpush.msra.mxu0 0.0
    %4081 = vmatpush.msra.mxu0 0.0
    %4082 = vmatpush.msra.mxu0 0.0
    %4083 = vmatpush.msra.mxu0 0.0
    %4084 = vmatpush.msra.mxu0 0.0
    %4085 = vmatpush.msra.mxu0 0.0
    %4086 = vmatpush.msra.mxu0 0.0
    %4087 = vmatpush.msra.mxu0 0.0
    %4088 = vmatpush.msra.mxu0 %v4031
    %4089 = vmatpush.msra.mxu0 %v2268
    %4090 = vmatpush.msra.mxu0 %v2263
    %4091 = vmatpush.msra.mxu0 %v2258
    %4092 = vmatpush.msra.mxu0 %v2253
    %4093 = vmatpush.msra.mxu0 %v2248
    %4094 = vmatpush.msra.mxu0 %v2243
    %4095 = vmatmul.f32.gmra.mxu0 %v4022
    %v4096 = vpop.f32.mrf.mxu0
    %v4097 = vadd.f32 0.0, %v4096
    %4098 = vdwg.mxu0
    %4099 = vmatpush.msra.mxu0 0.0
    %4100 = vmatpush.msra.mxu0 0.0
    %4101 = vmatpush.msra.mxu0 0.0
    %4102 = vmatpush.msra.mxu0 0.0
    %4103 = vmatpush.msra.mxu0 0.0
    %4104 = vmatpush.msra.mxu0 0.0
    %4105 = vmatpush.msra.mxu0 0.0
    %4106 = vmatpush.msra.mxu0 0.0
    %4107 = vmatpush.msra.mxu0 0.0
    %4108 = vmatpush.msra.mxu0 %v4034
    %4109 = vmatpush.msra.mxu0 %v2269
    %4110 = vmatpush.msra.mxu0 %v2264
    %4111 = vmatpush.msra.mxu0 %v2259
    %4112 = vmatpush.msra.mxu0 %v2254
    %4113 = vmatpush.msra.mxu0 %v2249
    %4114 = vmatpush.msra.mxu0 %v2244
    %4115 = vmatmul.f32.gmra.mxu0 %v4022
    %v4116 = vpop.f32.mrf.mxu0
    %v4117 = vadd.f32 0.0, %v4116
    %4118 = vdwg.mxu0
    %4119 = vmatpush.msra.mxu0 0.0
    %4120 = vmatpush.msra.mxu0 0.0
    %4121 = vmatpush.msra.mxu0 0.0
    %4122 = vmatpush.msra.mxu0 0.0
    %4123 = vmatpush.msra.mxu0 0.0
    %4124 = vmatpush.msra.mxu0 0.0
    %4125 = vmatpush.msra.mxu0 0.0
    %4126 = vmatpush.msra.mxu0 0.0
    %4127 = vmatpush.msra.mxu0 0.0
    %4128 = vmatpush.msra.mxu0 %v4037
    %4129 = vmatpush.msra.mxu0 %v2270
    %4130 = vmatpush.msra.mxu0 %v2265
    %4131 = vmatpush.msra.mxu0 %v2260
    %4132 = vmatpush.msra.mxu0 %v2255
    %4133 = vmatpush.msra.mxu0 %v2250
    %4134 = vmatpush.msra.mxu0 %v2245
    %4135 = vmatmul.f32.gmra.mxu0 %v4022
    %v4136 = vpop.f32.mrf.mxu0
    %v4137 = vadd.f32 0.0, %v4136
    %4138 = vdwg.mxu0
    %v4140 = vsel %vm2486, %v1756, 0
    %v4143 = vsel %vm212, %v2306, 0
    %v4146 = vsel %vm212, %v2307, 0
    %v4149 = vsel %vm212, %v2308, 0
    %v4152 = vsel %vm212, %v2309, 0
    %v4155 = vsel %vm212, %v2310, 0
    %4157 = vmatpush.msra.mxu0 0.0
    %4158 = vmatpush.msra.mxu0 0.0
    %4159 = vmatpush.msra.mxu0 0.0
    %4160 = vmatpush.msra.mxu0 0.0
    %4161 = vmatpush.msra.mxu0 0.0
    %4162 = vmatpush.msra.mxu0 0.0
    %4163 = vmatpush.msra.mxu0 0.0
    %4164 = vmatpush.msra.mxu0 0.0
    %4165 = vmatpush.msra.mxu0 0.0
    %4166 = vmatpush.msra.mxu0 %v4143
    %4167 = vmatpush.msra.mxu0 %v2301
    %4168 = vmatpush.msra.mxu0 %v2296
    %4169 = vmatpush.msra.mxu0 %v2291
    %4170 = vmatpush.msra.mxu0 %v2286
    %4171 = vmatpush.msra.mxu0 %v2281
    %4172 = vmatpush.msra.mxu0 %v2276
    %4173 = vmatmul.f32.gmra.mxu0 %v4140
    %v4174 = vpop.f32.mrf.mxu0
    %v4175 = vadd.f32 0.0, %v4174
    %4176 = vdwg.mxu0
    %4177 = vmatpush.msra.mxu0 0.0
    %4178 = vmatpush.msra.mxu0 0.0
    %4179 = vmatpush.msra.mxu0 0.0
    %4180 = vmatpush.msra.mxu0 0.0
    %4181 = vmatpush.msra.mxu0 0.0
    %4182 = vmatpush.msra.mxu0 0.0
    %4183 = vmatpush.msra.mxu0 0.0
    %4184 = vmatpush.msra.mxu0 0.0
    %4185 = vmatpush.msra.mxu0 0.0
    %4186 = vmatpush.msra.mxu0 %v4146
    %4187 = vmatpush.msra.mxu0 %v2302
    %4188 = vmatpush.msra.mxu0 %v2297
    %4189 = vmatpush.msra.mxu0 %v2292
    %4190 = vmatpush.msra.mxu0 %v2287
    %4191 = vmatpush.msra.mxu0 %v2282
    %4192 = vmatpush.msra.mxu0 %v2277
    %4193 = vmatmul.f32.gmra.mxu0 %v4140
    %v4194 = vpop.f32.mrf.mxu0
    %v4195 = vadd.f32 0.0, %v4194
    %4196 = vdwg.mxu0
    %4197 = vmatpush.msra.mxu0 0.0
    %4198 = vmatpush.msra.mxu0 0.0
    %4199 = vmatpush.msra.mxu0 0.0
    %4200 = vmatpush.msra.mxu0 0.0
    %4201 = vmatpush.msra.mxu0 0.0
    %4202 = vmatpush.msra.mxu0 0.0
    %4203 = vmatpush.msra.mxu0 0.0
    %4204 = vmatpush.msra.mxu0 0.0
    %4205 = vmatpush.msra.mxu0 0.0
    %4206 = vmatpush.msra.mxu0 %v4149
    %4207 = vmatpush.msra.mxu0 %v2303
    %4208 = vmatpush.msra.mxu0 %v2298
    %4209 = vmatpush.msra.mxu0 %v2293
    %4210 = vmatpush.msra.mxu0 %v2288
    %4211 = vmatpush.msra.mxu0 %v2283
    %4212 = vmatpush.msra.mxu0 %v2278
    %4213 = vmatmul.f32.gmra.mxu0 %v4140
    %v4214 = vpop.f32.mrf.mxu0
    %v4215 = vadd.f32 0.0, %v4214
    %4216 = vdwg.mxu0
    %4217 = vmatpush.msra.mxu0 0.0
    %4218 = vmatpush.msra.mxu0 0.0
    %4219 = vmatpush.msra.mxu0 0.0
    %4220 = vmatpush.msra.mxu0 0.0
    %4221 = vmatpush.msra.mxu0 0.0
    %4222 = vmatpush.msra.mxu0 0.0
    %4223 = vmatpush.msra.mxu0 0.0
    %4224 = vmatpush.msra.mxu0 0.0
    %4225 = vmatpush.msra.mxu0 0.0
    %4226 = vmatpush.msra.mxu0 %v4152
    %4227 = vmatpush.msra.mxu0 %v2304
    %4228 = vmatpush.msra.mxu0 %v2299
    %4229 = vmatpush.msra.mxu0 %v2294
    %4230 = vmatpush.msra.mxu0 %v2289
    %4231 = vmatpush.msra.mxu0 %v2284
    %4232 = vmatpush.msra.mxu0 %v2279
    %4233 = vmatmul.f32.gmra.mxu0 %v4140
    %v4234 = vpop.f32.mrf.mxu0
    %v4235 = vadd.f32 0.0, %v4234
    %4236 = vdwg.mxu0
    %4237 = vmatpush.msra.mxu0 0.0
    %4238 = vmatpush.msra.mxu0 0.0
    %4239 = vmatpush.msra.mxu0 0.0
    %4240 = vmatpush.msra.mxu0 0.0
    %4241 = vmatpush.msra.mxu0 0.0
    %4242 = vmatpush.msra.mxu0 0.0
    %4243 = vmatpush.msra.mxu0 0.0
    %4244 = vmatpush.msra.mxu0 0.0
    %4245 = vmatpush.msra.mxu0 0.0
    %4246 = vmatpush.msra.mxu0 %v4155
    %4247 = vmatpush.msra.mxu0 %v2305
    %4248 = vmatpush.msra.mxu0 %v2300
    %4249 = vmatpush.msra.mxu0 %v2295
    %4250 = vmatpush.msra.mxu0 %v2290
    %4251 = vmatpush.msra.mxu0 %v2285
    %4252 = vmatpush.msra.mxu0 %v2280
    %4253 = vmatmul.f32.gmra.mxu0 %v4140
    %v4254 = vpop.f32.mrf.mxu0
    %v4255 = vadd.f32 0.0, %v4254
    %4256 = vdwg.mxu0
    %v4258 = vsel %vm2486, %v1760, 0
    %v4261 = vsel %vm212, %v2341, 0
    %v4264 = vsel %vm212, %v2342, 0
    %v4267 = vsel %vm212, %v2343, 0
    %v4270 = vsel %vm212, %v2344, 0
    %v4273 = vsel %vm212, %v2345, 0
    %4275 = vmatpush.msra.mxu0 0.0
    %4276 = vmatpush.msra.mxu0 0.0
    %4277 = vmatpush.msra.mxu0 0.0
    %4278 = vmatpush.msra.mxu0 0.0
    %4279 = vmatpush.msra.mxu0 0.0
    %4280 = vmatpush.msra.mxu0 0.0
    %4281 = vmatpush.msra.mxu0 0.0
    %4282 = vmatpush.msra.mxu0 0.0
    %4283 = vmatpush.msra.mxu0 0.0
    %4284 = vmatpush.msra.mxu0 %v4261
    %4285 = vmatpush.msra.mxu0 %v2336
    %4286 = vmatpush.msra.mxu0 %v2331
    %4287 = vmatpush.msra.mxu0 %v2326
    %4288 = vmatpush.msra.mxu0 %v2321
    %4289 = vmatpush.msra.mxu0 %v2316
    %4290 = vmatpush.msra.mxu0 %v2311
    %4291 = vmatmul.f32.gmra.mxu0 %v4258
    %v4292 = vpop.f32.mrf.mxu0
    %v4293 = vadd.f32 0.0, %v4292
    %4294 = vdwg.mxu0
    %4295 = vmatpush.msra.mxu0 0.0
    %4296 = vmatpush.msra.mxu0 0.0
    %4297 = vmatpush.msra.mxu0 0.0
    %4298 = vmatpush.msra.mxu0 0.0
    %4299 = vmatpush.msra.mxu0 0.0
    %4300 = vmatpush.msra.mxu0 0.0
    %4301 = vmatpush.msra.mxu0 0.0
    %4302 = vmatpush.msra.mxu0 0.0
    %4303 = vmatpush.msra.mxu0 0.0
    %4304 = vmatpush.msra.mxu0 %v4264
    %4305 = vmatpush.msra.mxu0 %v2337
    %4306 = vmatpush.msra.mxu0 %v2332
    %4307 = vmatpush.msra.mxu0 %v2327
    %4308 = vmatpush.msra.mxu0 %v2322
    %4309 = vmatpush.msra.mxu0 %v2317
    %4310 = vmatpush.msra.mxu0 %v2312
    %4311 = vmatmul.f32.gmra.mxu0 %v4258
    %v4312 = vpop.f32.mrf.mxu0
    %v4313 = vadd.f32 0.0, %v4312
    %4314 = vdwg.mxu0
    %4315 = vmatpush.msra.mxu0 0.0
    %4316 = vmatpush.msra.mxu0 0.0
    %4317 = vmatpush.msra.mxu0 0.0
    %4318 = vmatpush.msra.mxu0 0.0
    %4319 = vmatpush.msra.mxu0 0.0
    %4320 = vmatpush.msra.mxu0 0.0
    %4321 = vmatpush.msra.mxu0 0.0
    %4322 = vmatpush.msra.mxu0 0.0
    %4323 = vmatpush.msra.mxu0 0.0
    %4324 = vmatpush.msra.mxu0 %v4267
    %4325 = vmatpush.msra.mxu0 %v2338
    %4326 = vmatpush.msra.mxu0 %v2333
    %4327 = vmatpush.msra.mxu0 %v2328
    %4328 = vmatpush.msra.mxu0 %v2323
    %4329 = vmatpush.msra.mxu0 %v2318
    %4330 = vmatpush.msra.mxu0 %v2313
    %4331 = vmatmul.f32.gmra.mxu0 %v4258
    %v4332 = vpop.f32.mrf.mxu0
    %v4333 = vadd.f32 0.0, %v4332
    %4334 = vdwg.mxu0
    %4335 = vmatpush.msra.mxu0 0.0
    %4336 = vmatpush.msra.mxu0 0.0
    %4337 = vmatpush.msra.mxu0 0.0
    %4338 = vmatpush.msra.mxu0 0.0
    %4339 = vmatpush.msra.mxu0 0.0
    %4340 = vmatpush.msra.mxu0 0.0
    %4341 = vmatpush.msra.mxu0 0.0
    %4342 = vmatpush.msra.mxu0 0.0
    %4343 = vmatpush.msra.mxu0 0.0
    %4344 = vmatpush.msra.mxu0 %v4270
    %4345 = vmatpush.msra.mxu0 %v2339
    %4346 = vmatpush.msra.mxu0 %v2334
    %4347 = vmatpush.msra.mxu0 %v2329
    %4348 = vmatpush.msra.mxu0 %v2324
    %4349 = vmatpush.msra.mxu0 %v2319
    %4350 = vmatpush.msra.mxu0 %v2314
    %4351 = vmatmul.f32.gmra.mxu0 %v4258
    %v4352 = vpop.f32.mrf.mxu0
    %v4353 = vadd.f32 0.0, %v4352
    %4354 = vdwg.mxu0
    %4355 = vmatpush.msra.mxu0 0.0
    %4356 = vmatpush.msra.mxu0 0.0
    %4357 = vmatpush.msra.mxu0 0.0
    %4358 = vmatpush.msra.mxu0 0.0
    %4359 = vmatpush.msra.mxu0 0.0
    %4360 = vmatpush.msra.mxu0 0.0
    %4361 = vmatpush.msra.mxu0 0.0
    %4362 = vmatpush.msra.mxu0 0.0
    %4363 = vmatpush.msra.mxu0 0.0
    %4364 = vmatpush.msra.mxu0 %v4273
    %4365 = vmatpush.msra.mxu0 %v2340
    %4366 = vmatpush.msra.mxu0 %v2335
    %4367 = vmatpush.msra.mxu0 %v2330
    %4368 = vmatpush.msra.mxu0 %v2325
    %4369 = vmatpush.msra.mxu0 %v2320
    %4370 = vmatpush.msra.mxu0 %v2315
    %4371 = vmatmul.f32.gmra.mxu0 %v4258
    %v4372 = vpop.f32.mrf.mxu0
    %v4373 = vadd.f32 0.0, %v4372
    %4374 = vdwg.mxu0
    %v4376 = vsel %vm2486, %v1777, 0
    %v4379 = vsel %vm212, %v2376, 0
    %v4382 = vsel %vm212, %v2377, 0
    %v4385 = vsel %vm212, %v2378, 0
    %v4388 = vsel %vm212, %v2379, 0
    %v4391 = vsel %vm212, %v2380, 0
    %4393 = vmatpush.msra.mxu0 0.0
    %4394 = vmatpush.msra.mxu0 0.0
    %4395 = vmatpush.msra.mxu0 0.0
    %4396 = vmatpush.msra.mxu0 0.0
    %4397 = vmatpush.msra.mxu0 0.0
    %4398 = vmatpush.msra.mxu0 0.0
    %4399 = vmatpush.msra.mxu0 0.0
    %4400 = vmatpush.msra.mxu0 0.0
    %4401 = vmatpush.msra.mxu0 0.0
    %4402 = vmatpush.msra.mxu0 %v4379
    %4403 = vmatpush.msra.mxu0 %v2371
    %4404 = vmatpush.msra.mxu0 %v2366
    %4405 = vmatpush.msra.mxu0 %v2361
    %4406 = vmatpush.msra.mxu0 %v2356
    %4407 = vmatpush.msra.mxu0 %v2351
    %4408 = vmatpush.msra.mxu0 %v2346
    %4409 = vmatmul.f32.gmra.mxu0 %v4376
    %v4410 = vpop.f32.mrf.mxu0
    %v4411 = vadd.f32 0.0, %v4410
    %4412 = vdwg.mxu0
    %4413 = vmatpush.msra.mxu0 0.0
    %4414 = vmatpush.msra.mxu0 0.0
    %4415 = vmatpush.msra.mxu0 0.0
    %4416 = vmatpush.msra.mxu0 0.0
    %4417 = vmatpush.msra.mxu0 0.0
    %4418 = vmatpush.msra.mxu0 0.0
    %4419 = vmatpush.msra.mxu0 0.0
    %4420 = vmatpush.msra.mxu0 0.0
    %4421 = vmatpush.msra.mxu0 0.0
    %4422 = vmatpush.msra.mxu0 %v4382
    %4423 = vmatpush.msra.mxu0 %v2372
    %4424 = vmatpush.msra.mxu0 %v2367
    %4425 = vmatpush.msra.mxu0 %v2362
    %4426 = vmatpush.msra.mxu0 %v2357
    %4427 = vmatpush.msra.mxu0 %v2352
    %4428 = vmatpush.msra.mxu0 %v2347
    %4429 = vmatmul.f32.gmra.mxu0 %v4376
    %v4430 = vpop.f32.mrf.mxu0
    %v4431 = vadd.f32 0.0, %v4430
    %4432 = vdwg.mxu0
    %4433 = vmatpush.msra.mxu0 0.0
    %4434 = vmatpush.msra.mxu0 0.0
    %4435 = vmatpush.msra.mxu0 0.0
    %4436 = vmatpush.msra.mxu0 0.0
    %4437 = vmatpush.msra.mxu0 0.0
    %4438 = vmatpush.msra.mxu0 0.0
    %4439 = vmatpush.msra.mxu0 0.0
    %4440 = vmatpush.msra.mxu0 0.0
    %4441 = vmatpush.msra.mxu0 0.0
    %4442 = vmatpush.msra.mxu0 %v4385
    %4443 = vmatpush.msra.mxu0 %v2373
    %4444 = vmatpush.msra.mxu0 %v2368
    %4445 = vmatpush.msra.mxu0 %v2363
    %4446 = vmatpush.msra.mxu0 %v2358
    %4447 = vmatpush.msra.mxu0 %v2353
    %4448 = vmatpush.msra.mxu0 %v2348
    %4449 = vmatmul.f32.gmra.mxu0 %v4376
    %v4450 = vpop.f32.mrf.mxu0
    %v4451 = vadd.f32 0.0, %v4450
    %4452 = vdwg.mxu0
    %4453 = vmatpush.msra.mxu0 0.0
    %4454 = vmatpush.msra.mxu0 0.0
    %4455 = vmatpush.msra.mxu0 0.0
    %4456 = vmatpush.msra.mxu0 0.0
    %4457 = vmatpush.msra.mxu0 0.0
    %4458 = vmatpush.msra.mxu0 0.0
    %4459 = vmatpush.msra.mxu0 0.0
    %4460 = vmatpush.msra.mxu0 0.0
    %4461 = vmatpush.msra.mxu0 0.0
    %4462 = vmatpush.msra.mxu0 %v4388
    %4463 = vmatpush.msra.mxu0 %v2374
    %4464 = vmatpush.msra.mxu0 %v2369
    %4465 = vmatpush.msra.mxu0 %v2364
    %4466 = vmatpush.msra.mxu0 %v2359
    %4467 = vmatpush.msra.mxu0 %v2354
    %4468 = vmatpush.msra.mxu0 %v2349
    %4469 = vmatmul.f32.gmra.mxu0 %v4376
    %v4470 = vpop.f32.mrf.mxu0
    %v4471 = vadd.f32 0.0, %v4470
    %4472 = vdwg.mxu0
    %4473 = vmatpush.msra.mxu0 0.0
    %4474 = vmatpush.msra.mxu0 0.0
    %4475 = vmatpush.msra.mxu0 0.0
    %4476 = vmatpush.msra.mxu0 0.0
    %4477 = vmatpush.msra.mxu0 0.0
    %4478 = vmatpush.msra.mxu0 0.0
    %4479 = vmatpush.msra.mxu0 0.0
    %4480 = vmatpush.msra.mxu0 0.0
    %4481 = vmatpush.msra.mxu0 0.0
    %4482 = vmatpush.msra.mxu0 %v4391
    %4483 = vmatpush.msra.mxu0 %v2375
    %4484 = vmatpush.msra.mxu0 %v2370
    %4485 = vmatpush.msra.mxu0 %v2365
    %4486 = vmatpush.msra.mxu0 %v2360
    %4487 = vmatpush.msra.mxu0 %v2355
    %4488 = vmatpush.msra.mxu0 %v2350
    %4489 = vmatmul.f32.gmra.mxu0 %v4376
    %v4490 = vpop.f32.mrf.mxu0
    %v4491 = vadd.f32 0.0, %v4490
    %4492 = vdwg.mxu0
    %v4494 = vsel %vm2486, %v1783, 0
    %v4497 = vsel %vm212, %v2411, 0
    %v4500 = vsel %vm212, %v2412, 0
    %v4503 = vsel %vm212, %v2413, 0
    %v4506 = vsel %vm212, %v2414, 0
    %v4509 = vsel %vm212, %v2415, 0
    %4511 = vmatpush.msra.mxu0 0.0
    %4512 = vmatpush.msra.mxu0 0.0
    %4513 = vmatpush.msra.mxu0 0.0
    %4514 = vmatpush.msra.mxu0 0.0
    %4515 = vmatpush.msra.mxu0 0.0
    %4516 = vmatpush.msra.mxu0 0.0
    %4517 = vmatpush.msra.mxu0 0.0
    %4518 = vmatpush.msra.mxu0 0.0
    %4519 = vmatpush.msra.mxu0 0.0
    %4520 = vmatpush.msra.mxu0 %v4497
    %4521 = vmatpush.msra.mxu0 %v2406
    %4522 = vmatpush.msra.mxu0 %v2401
    %4523 = vmatpush.msra.mxu0 %v2396
    %4524 = vmatpush.msra.mxu0 %v2391
    %4525 = vmatpush.msra.mxu0 %v2386
    %4526 = vmatpush.msra.mxu0 %v2381
    %4527 = vmatmul.f32.gmra.mxu0 %v4494
    %v4528 = vpop.f32.mrf.mxu0
    %v4529 = vadd.f32 0.0, %v4528
    %4530 = vdwg.mxu0
    %4531 = vmatpush.msra.mxu0 0.0
    %4532 = vmatpush.msra.mxu0 0.0
    %4533 = vmatpush.msra.mxu0 0.0
    %4534 = vmatpush.msra.mxu0 0.0
    %4535 = vmatpush.msra.mxu0 0.0
    %4536 = vmatpush.msra.mxu0 0.0
    %4537 = vmatpush.msra.mxu0 0.0
    %4538 = vmatpush.msra.mxu0 0.0
    %4539 = vmatpush.msra.mxu0 0.0
    %4540 = vmatpush.msra.mxu0 %v4500
    %4541 = vmatpush.msra.mxu0 %v2407
    %4542 = vmatpush.msra.mxu0 %v2402
    %4543 = vmatpush.msra.mxu0 %v2397
    %4544 = vmatpush.msra.mxu0 %v2392
    %4545 = vmatpush.msra.mxu0 %v2387
    %4546 = vmatpush.msra.mxu0 %v2382
    %4547 = vmatmul.f32.gmra.mxu0 %v4494
    %v4548 = vpop.f32.mrf.mxu0
    %v4549 = vadd.f32 0.0, %v4548
    %4550 = vdwg.mxu0
    %4551 = vmatpush.msra.mxu0 0.0
    %4552 = vmatpush.msra.mxu0 0.0
    %4553 = vmatpush.msra.mxu0 0.0
    %4554 = vmatpush.msra.mxu0 0.0
    %4555 = vmatpush.msra.mxu0 0.0
    %4556 = vmatpush.msra.mxu0 0.0
    %4557 = vmatpush.msra.mxu0 0.0
    %4558 = vmatpush.msra.mxu0 0.0
    %4559 = vmatpush.msra.mxu0 0.0
    %4560 = vmatpush.msra.mxu0 %v4503
    %4561 = vmatpush.msra.mxu0 %v2408
    %4562 = vmatpush.msra.mxu0 %v2403
    %4563 = vmatpush.msra.mxu0 %v2398
    %4564 = vmatpush.msra.mxu0 %v2393
    %4565 = vmatpush.msra.mxu0 %v2388
    %4566 = vmatpush.msra.mxu0 %v2383
    %4567 = vmatmul.f32.gmra.mxu0 %v4494
    %v4568 = vpop.f32.mrf.mxu0
    %v4569 = vadd.f32 0.0, %v4568
    %4570 = vdwg.mxu0
    %4571 = vmatpush.msra.mxu0 0.0
    %4572 = vmatpush.msra.mxu0 0.0
    %4573 = vmatpush.msra.mxu0 0.0
    %4574 = vmatpush.msra.mxu0 0.0
    %4575 = vmatpush.msra.mxu0 0.0
    %4576 = vmatpush.msra.mxu0 0.0
    %4577 = vmatpush.msra.mxu0 0.0
    %4578 = vmatpush.msra.mxu0 0.0
    %4579 = vmatpush.msra.mxu0 0.0
    %4580 = vmatpush.msra.mxu0 %v4506
    %4581 = vmatpush.msra.mxu0 %v2409
    %4582 = vmatpush.msra.mxu0 %v2404
    %4583 = vmatpush.msra.mxu0 %v2399
    %4584 = vmatpush.msra.mxu0 %v2394
    %4585 = vmatpush.msra.mxu0 %v2389
    %4586 = vmatpush.msra.mxu0 %v2384
    %4587 = vmatmul.f32.gmra.mxu0 %v4494
    %v4588 = vpop.f32.mrf.mxu0
    %v4589 = vadd.f32 0.0, %v4588
    %4590 = vdwg.mxu0
    %4591 = vmatpush.msra.mxu0 0.0
    %4592 = vmatpush.msra.mxu0 0.0
    %4593 = vmatpush.msra.mxu0 0.0
    %4594 = vmatpush.msra.mxu0 0.0
    %4595 = vmatpush.msra.mxu0 0.0
    %4596 = vmatpush.msra.mxu0 0.0
    %4597 = vmatpush.msra.mxu0 0.0
    %4598 = vmatpush.msra.mxu0 0.0
    %4599 = vmatpush.msra.mxu0 0.0
    %4600 = vmatpush.msra.mxu0 %v4509
    %4601 = vmatpush.msra.mxu0 %v2410
    %4602 = vmatpush.msra.mxu0 %v2405
    %4603 = vmatpush.msra.mxu0 %v2400
    %4604 = vmatpush.msra.mxu0 %v2395
    %4605 = vmatpush.msra.mxu0 %v2390
    %4606 = vmatpush.msra.mxu0 %v2385
    %4607 = vmatmul.f32.gmra.mxu0 %v4494
    %v4608 = vpop.f32.mrf.mxu0
    %v4609 = vadd.f32 0.0, %v4608
    %4610 = vdwg.mxu0
    %v4612 = vsel %vm2486, %v1781, 0
    %v4615 = vsel %vm212, %v2446, 0
    %v4618 = vsel %vm212, %v2447, 0
    %v4621 = vsel %vm212, %v2448, 0
    %v4624 = vsel %vm212, %v2449, 0
    %v4627 = vsel %vm212, %v2450, 0
    %4629 = vmatpush.msra.mxu0 0.0
    %4630 = vmatpush.msra.mxu0 0.0
    %4631 = vmatpush.msra.mxu0 0.0
    %4632 = vmatpush.msra.mxu0 0.0
    %4633 = vmatpush.msra.mxu0 0.0
    %4634 = vmatpush.msra.mxu0 0.0
    %4635 = vmatpush.msra.mxu0 0.0
    %4636 = vmatpush.msra.mxu0 0.0
    %4637 = vmatpush.msra.mxu0 0.0
    %4638 = vmatpush.msra.mxu0 %v4615
    %4639 = vmatpush.msra.mxu0 %v2441
    %4640 = vmatpush.msra.mxu0 %v2436
    %4641 = vmatpush.msra.mxu0 %v2431
    %4642 = vmatpush.msra.mxu0 %v2426
    %4643 = vmatpush.msra.mxu0 %v2421
    %4644 = vmatpush.msra.mxu0 %v2416
    %4645 = vmatmul.f32.gmra.mxu0 %v4612
    %v4646 = vpop.f32.mrf.mxu0
    %v4647 = vadd.f32 0.0, %v4646
    %4648 = vdwg.mxu0
    %4649 = vmatpush.msra.mxu0 0.0
    %4650 = vmatpush.msra.mxu0 0.0
    %4651 = vmatpush.msra.mxu0 0.0
    %4652 = vmatpush.msra.mxu0 0.0
    %4653 = vmatpush.msra.mxu0 0.0
    %4654 = vmatpush.msra.mxu0 0.0
    %4655 = vmatpush.msra.mxu0 0.0
    %4656 = vmatpush.msra.mxu0 0.0
    %4657 = vmatpush.msra.mxu0 0.0
    %4658 = vmatpush.msra.mxu0 %v4618
    %4659 = vmatpush.msra.mxu0 %v2442
    %4660 = vmatpush.msra.mxu0 %v2437
    %4661 = vmatpush.msra.mxu0 %v2432
    %4662 = vmatpush.msra.mxu0 %v2427
    %4663 = vmatpush.msra.mxu0 %v2422
    %4664 = vmatpush.msra.mxu0 %v2417
    %4665 = vmatmul.f32.gmra.mxu0 %v4612
    %v4666 = vpop.f32.mrf.mxu0
    %v4667 = vadd.f32 0.0, %v4666
    %4668 = vdwg.mxu0
    %4669 = vmatpush.msra.mxu0 0.0
    %4670 = vmatpush.msra.mxu0 0.0
    %4671 = vmatpush.msra.mxu0 0.0
    %4672 = vmatpush.msra.mxu0 0.0
    %4673 = vmatpush.msra.mxu0 0.0
    %4674 = vmatpush.msra.mxu0 0.0
    %4675 = vmatpush.msra.mxu0 0.0
    %4676 = vmatpush.msra.mxu0 0.0
    %4677 = vmatpush.msra.mxu0 0.0
    %4678 = vmatpush.msra.mxu0 %v4621
    %4679 = vmatpush.msra.mxu0 %v2443
    %4680 = vmatpush.msra.mxu0 %v2438
    %4681 = vmatpush.msra.mxu0 %v2433
    %4682 = vmatpush.msra.mxu0 %v2428
    %4683 = vmatpush.msra.mxu0 %v2423
    %4684 = vmatpush.msra.mxu0 %v2418
    %4685 = vmatmul.f32.gmra.mxu0 %v4612
    %v4686 = vpop.f32.mrf.mxu0
    %v4687 = vadd.f32 0.0, %v4686
    %4688 = vdwg.mxu0
    %4689 = vmatpush.msra.mxu0 0.0
    %4690 = vmatpush.msra.mxu0 0.0
    %4691 = vmatpush.msra.mxu0 0.0
    %4692 = vmatpush.msra.mxu0 0.0
    %4693 = vmatpush.msra.mxu0 0.0
    %4694 = vmatpush.msra.mxu0 0.0
    %4695 = vmatpush.msra.mxu0 0.0
    %4696 = vmatpush.msra.mxu0 0.0
    %4697 = vmatpush.msra.mxu0 0.0
    %4698 = vmatpush.msra.mxu0 %v4624
    %4699 = vmatpush.msra.mxu0 %v2444
    %4700 = vmatpush.msra.mxu0 %v2439
    %4701 = vmatpush.msra.mxu0 %v2434
    %4702 = vmatpush.msra.mxu0 %v2429
    %4703 = vmatpush.msra.mxu0 %v2424
    %4704 = vmatpush.msra.mxu0 %v2419
    %4705 = vmatmul.f32.gmra.mxu0 %v4612
    %v4706 = vpop.f32.mrf.mxu0
    %v4707 = vadd.f32 0.0, %v4706
    %4708 = vdwg.mxu0
    %4709 = vmatpush.msra.mxu0 0.0
    %4710 = vmatpush.msra.mxu0 0.0
    %4711 = vmatpush.msra.mxu0 0.0
    %4712 = vmatpush.msra.mxu0 0.0
    %4713 = vmatpush.msra.mxu0 0.0
    %4714 = vmatpush.msra.mxu0 0.0
    %4715 = vmatpush.msra.mxu0 0.0
    %4716 = vmatpush.msra.mxu0 0.0
    %4717 = vmatpush.msra.mxu0 0.0
    %4718 = vmatpush.msra.mxu0 %v4627
    %4719 = vmatpush.msra.mxu0 %v2445
    %4720 = vmatpush.msra.mxu0 %v2440
    %4721 = vmatpush.msra.mxu0 %v2435
    %4722 = vmatpush.msra.mxu0 %v2430
    %4723 = vmatpush.msra.mxu0 %v2425
    %4724 = vmatpush.msra.mxu0 %v2420
    %4725 = vmatmul.f32.gmra.mxu0 %v4612
    %v4726 = vpop.f32.mrf.mxu0
    %v4727 = vadd.f32 0.0, %v4726
    %4728 = vdwg.mxu0
    %v4730 = vsel %vm2486, %v1785, 0
    %v4733 = vsel %vm212, %v2481, 0
    %v4736 = vsel %vm212, %v2482, 0
    %v4739 = vsel %vm212, %v2483, 0
    %v4742 = vsel %vm212, %v2484, 0
    %v4745 = vsel %vm212, %v2485, 0
    %4747 = vmatpush.msra.mxu0 0.0
    %4748 = vmatpush.msra.mxu0 0.0
    %4749 = vmatpush.msra.mxu0 0.0
    %4750 = vmatpush.msra.mxu0 0.0
    %4751 = vmatpush.msra.mxu0 0.0
    %4752 = vmatpush.msra.mxu0 0.0
    %4753 = vmatpush.msra.mxu0 0.0
    %4754 = vmatpush.msra.mxu0 0.0
    %4755 = vmatpush.msra.mxu0 0.0
    %4756 = vmatpush.msra.mxu0 %v4733
    %4757 = vmatpush.msra.mxu0 %v2476
    %4758 = vmatpush.msra.mxu0 %v2471
    %4759 = vmatpush.msra.mxu0 %v2466
    %4760 = vmatpush.msra.mxu0 %v2461
    %4761 = vmatpush.msra.mxu0 %v2456
    %4762 = vmatpush.msra.mxu0 %v2451
    %4763 = vmatmul.f32.gmra.mxu0 %v4730
    %v4764 = vpop.f32.mrf.mxu0
    %v4765 = vadd.f32 0.0, %v4764
    %4766 = vdwg.mxu0
    %4767 = vmatpush.msra.mxu0 0.0
    %4768 = vmatpush.msra.mxu0 0.0
    %4769 = vmatpush.msra.mxu0 0.0
    %4770 = vmatpush.msra.mxu0 0.0
    %4771 = vmatpush.msra.mxu0 0.0
    %4772 = vmatpush.msra.mxu0 0.0
    %4773 = vmatpush.msra.mxu0 0.0
    %4774 = vmatpush.msra.mxu0 0.0
    %4775 = vmatpush.msra.mxu0 0.0
    %4776 = vmatpush.msra.mxu0 %v4736
    %4777 = vmatpush.msra.mxu0 %v2477
    %4778 = vmatpush.msra.mxu0 %v2472
    %4779 = vmatpush.msra.mxu0 %v2467
    %4780 = vmatpush.msra.mxu0 %v2462
    %4781 = vmatpush.msra.mxu0 %v2457
    %4782 = vmatpush.msra.mxu0 %v2452
    %4783 = vmatmul.f32.gmra.mxu0 %v4730
    %v4784 = vpop.f32.mrf.mxu0
    %v4785 = vadd.f32 0.0, %v4784
    %4786 = vdwg.mxu0
    %4787 = vmatpush.msra.mxu0 0.0
    %4788 = vmatpush.msra.mxu0 0.0
    %4789 = vmatpush.msra.mxu0 0.0
    %4790 = vmatpush.msra.mxu0 0.0
    %4791 = vmatpush.msra.mxu0 0.0
    %4792 = vmatpush.msra.mxu0 0.0
    %4793 = vmatpush.msra.mxu0 0.0
    %4794 = vmatpush.msra.mxu0 0.0
    %4795 = vmatpush.msra.mxu0 0.0
    %4796 = vmatpush.msra.mxu0 %v4739
    %4797 = vmatpush.msra.mxu0 %v2478
    %4798 = vmatpush.msra.mxu0 %v2473
    %4799 = vmatpush.msra.mxu0 %v2468
    %4800 = vmatpush.msra.mxu0 %v2463
    %4801 = vmatpush.msra.mxu0 %v2458
    %4802 = vmatpush.msra.mxu0 %v2453
    %4803 = vmatmul.f32.gmra.mxu0 %v4730
    %v4804 = vpop.f32.mrf.mxu0
    %v4805 = vadd.f32 0.0, %v4804
    %4806 = vdwg.mxu0
    %4807 = vmatpush.msra.mxu0 0.0
    %4808 = vmatpush.msra.mxu0 0.0
    %4809 = vmatpush.msra.mxu0 0.0
    %4810 = vmatpush.msra.mxu0 0.0
    %4811 = vmatpush.msra.mxu0 0.0
    %4812 = vmatpush.msra.mxu0 0.0
    %4813 = vmatpush.msra.mxu0 0.0
    %4814 = vmatpush.msra.mxu0 0.0
    %4815 = vmatpush.msra.mxu0 0.0
    %4816 = vmatpush.msra.mxu0 %v4742
    %4817 = vmatpush.msra.mxu0 %v2479
    %4818 = vmatpush.msra.mxu0 %v2474
    %4819 = vmatpush.msra.mxu0 %v2469
    %4820 = vmatpush.msra.mxu0 %v2464
    %4821 = vmatpush.msra.mxu0 %v2459
    %4822 = vmatpush.msra.mxu0 %v2454
    %4823 = vmatmul.f32.gmra.mxu0 %v4730
    %v4824 = vpop.f32.mrf.mxu0
    %v4825 = vadd.f32 0.0, %v4824
    %4826 = vdwg.mxu0
    %4827 = vmatpush.msra.mxu0 0.0
    %4828 = vmatpush.msra.mxu0 0.0
    %4829 = vmatpush.msra.mxu0 0.0
    %4830 = vmatpush.msra.mxu0 0.0
    %4831 = vmatpush.msra.mxu0 0.0
    %4832 = vmatpush.msra.mxu0 0.0
    %4833 = vmatpush.msra.mxu0 0.0
    %4834 = vmatpush.msra.mxu0 0.0
    %4835 = vmatpush.msra.mxu0 0.0
    %4836 = vmatpush.msra.mxu0 %v4745
    %4837 = vmatpush.msra.mxu0 %v2480
    %4838 = vmatpush.msra.mxu0 %v2475
    %4839 = vmatpush.msra.mxu0 %v2470
    %4840 = vmatpush.msra.mxu0 %v2465
    %4841 = vmatpush.msra.mxu0 %v2460
    %4842 = vmatpush.msra.mxu0 %v2455
    %4843 = vmatmul.f32.gmra.mxu0 %v4730
    %v4844 = vpop.f32.mrf.mxu0
    %v4845 = vadd.f32 0.0, %v4844
    %4846 = vdwg.mxu0
    %v4847 = vsel %vm212, %v2523, 0.0
    %v4848 = vsel %vm212, %v2641, 0.0
    %v4849 = vadd.f32 %v4847, %v4848
    %v4850 = vsel %vm212, %v2759, 0.0
    %v4851 = vadd.f32 %v4849, %v4850
    %v4852 = vsel %vm212, %v2877, 0.0
    %v4853 = vadd.f32 %v4851, %v4852
    %v4854 = vsel %vm212, %v2995, 0.0
    %v4855 = vadd.f32 %v4853, %v4854
    %v4856 = vsel %vm212, %v3113, 0.0
    %v4857 = vadd.f32 %v4855, %v4856
    %v4858 = vsel %vm212, %v3231, 0.0
    %v4859 = vadd.f32 %v4857, %v4858
    %v4860 = vsel %vm212, %v3349, 0.0
    %v4861 = vadd.f32 %v4859, %v4860
    %v4862 = vsel %vm212, %v3467, 0.0
    %v4863 = vadd.f32 %v4861, %v4862
    %v4864 = vsel %vm212, %v3585, 0.0
    %v4865 = vadd.f32 %v4863, %v4864
    %v4866 = vsel %vm212, %v3703, 0.0
    %v4867 = vadd.f32 %v4865, %v4866
    %v4868 = vsel %vm212, %v3821, 0.0
    %v4869 = vadd.f32 %v4867, %v4868
    %v4870 = vsel %vm212, %v3939, 0.0
    %v4871 = vadd.f32 %v4869, %v4870
    %v4872 = vsel %vm212, %v4057, 0.0
    %v4873 = vadd.f32 %v4871, %v4872
    %v4874 = vsel %vm212, %v4175, 0.0
    %v4875 = vadd.f32 %v4873, %v4874
    %v4876 = vsel %vm212, %v4293, 0.0
    %v4877 = vadd.f32 %v4875, %v4876
    %v4878 = vsel %vm212, %v4411, 0.0
    %v4879 = vadd.f32 %v4877, %v4878
    %v4880 = vsel %vm212, %v4529, 0.0
    %v4881 = vadd.f32 %v4879, %v4880
    %v4882 = vsel %vm212, %v4647, 0.0
    %v4883 = vadd.f32 %v4881, %v4882
    %v4884 = vsel %vm212, %v4765, 0.0
    %v4885 = vadd.f32 %v4883, %v4884
    %v4886 = vsel %vm212, %v2543, 0.0
    %v4887 = vsel %vm212, %v2661, 0.0
    %v4888 = vadd.f32 %v4886, %v4887
    %v4889 = vsel %vm212, %v2779, 0.0
    %v4890 = vadd.f32 %v4888, %v4889
    %v4891 = vsel %vm212, %v2897, 0.0
    %v4892 = vadd.f32 %v4890, %v4891
    %v4893 = vsel %vm212, %v3015, 0.0
    %v4894 = vadd.f32 %v4892, %v4893
    %v4895 = vsel %vm212, %v3133, 0.0
    %v4896 = vadd.f32 %v4894, %v4895
    %v4897 = vsel %vm212, %v3251, 0.0
    %v4898 = vadd.f32 %v4896, %v4897
    %v4899 = vsel %vm212, %v3369, 0.0
    %v4900 = vadd.f32 %v4898, %v4899
    %v4901 = vsel %vm212, %v3487, 0.0
    %v4902 = vadd.f32 %v4900, %v4901
    %v4903 = vsel %vm212, %v3605, 0.0
    %v4904 = vadd.f32 %v4902, %v4903
    %v4905 = vsel %vm212, %v3723, 0.0
    %v4906 = vadd.f32 %v4904, %v4905
    %v4907 = vsel %vm212, %v3841, 0.0
    %v4908 = vadd.f32 %v4906, %v4907
    %v4909 = vsel %vm212, %v3959, 0.0
    %v4910 = vadd.f32 %v4908, %v4909
    %v4911 = vsel %vm212, %v4077, 0.0
    %v4912 = vadd.f32 %v4910, %v4911
    %v4913 = vsel %vm212, %v4195, 0.0
    %v4914 = vadd.f32 %v4912, %v4913
    %v4915 = vsel %vm212, %v4313, 0.0
    %v4916 = vadd.f32 %v4914, %v4915
    %v4917 = vsel %vm212, %v4431, 0.0
    %v4918 = vadd.f32 %v4916, %v4917
    %v4919 = vsel %vm212, %v4549, 0.0
    %v4920 = vadd.f32 %v4918, %v4919
    %v4921 = vsel %vm212, %v4667, 0.0
    %v4922 = vadd.f32 %v4920, %v4921
    %v4923 = vsel %vm212, %v4785, 0.0
    %v4924 = vadd.f32 %v4922, %v4923
    %v4925 = vsel %vm212, %v2563, 0.0
    %v4926 = vsel %vm212, %v2681, 0.0
    %v4927 = vadd.f32 %v4925, %v4926
    %v4928 = vsel %vm212, %v2799, 0.0
    %v4929 = vadd.f32 %v4927, %v4928
    %v4930 = vsel %vm212, %v2917, 0.0
    %v4931 = vadd.f32 %v4929, %v4930
    %v4932 = vsel %vm212, %v3035, 0.0
    %v4933 = vadd.f32 %v4931, %v4932
    %v4934 = vsel %vm212, %v3153, 0.0
    %v4935 = vadd.f32 %v4933, %v4934
    %v4936 = vsel %vm212, %v3271, 0.0
    %v4937 = vadd.f32 %v4935, %v4936
    %v4938 = vsel %vm212, %v3389, 0.0
    %v4939 = vadd.f32 %v4937, %v4938
    %v4940 = vsel %vm212, %v3507, 0.0
    %v4941 = vadd.f32 %v4939, %v4940
    %v4942 = vsel %vm212, %v3625, 0.0
    %v4943 = vadd.f32 %v4941, %v4942
    %v4944 = vsel %vm212, %v3743, 0.0
    %v4945 = vadd.f32 %v4943, %v4944
    %v4946 = vsel %vm212, %v3861, 0.0
    %v4947 = vadd.f32 %v4945, %v4946
    %v4948 = vsel %vm212, %v3979, 0.0
    %v4949 = vadd.f32 %v4947, %v4948
    %v4950 = vsel %vm212, %v4097, 0.0
    %v4951 = vadd.f32 %v4949, %v4950
    %v4952 = vsel %vm212, %v4215, 0.0
    %v4953 = vadd.f32 %v4951, %v4952
    %v4954 = vsel %vm212, %v4333, 0.0
    %v4955 = vadd.f32 %v4953, %v4954
    %v4956 = vsel %vm212, %v4451, 0.0
    %v4957 = vadd.f32 %v4955, %v4956
    %v4958 = vsel %vm212, %v4569, 0.0
    %v4959 = vadd.f32 %v4957, %v4958
    %v4960 = vsel %vm212, %v4687, 0.0
    %v4961 = vadd.f32 %v4959, %v4960
    %v4962 = vsel %vm212, %v4805, 0.0
    %v4963 = vadd.f32 %v4961, %v4962
    %v4964 = vsel %vm212, %v2583, 0.0
    %v4965 = vsel %vm212, %v2701, 0.0
    %v4966 = vadd.f32 %v4964, %v4965
    %v4967 = vsel %vm212, %v2819, 0.0
    %v4968 = vadd.f32 %v4966, %v4967
    %v4969 = vsel %vm212, %v2937, 0.0
    %v4970 = vadd.f32 %v4968, %v4969
    %v4971 = vsel %vm212, %v3055, 0.0
    %v4972 = vadd.f32 %v4970, %v4971
    %v4973 = vsel %vm212, %v3173, 0.0
    %v4974 = vadd.f32 %v4972, %v4973
    %v4975 = vsel %vm212, %v3291, 0.0
    %v4976 = vadd.f32 %v4974, %v4975
    %v4977 = vsel %vm212, %v3409, 0.0
    %v4978 = vadd.f32 %v4976, %v4977
    %v4979 = vsel %vm212, %v3527, 0.0
    %v4980 = vadd.f32 %v4978, %v4979
    %v4981 = vsel %vm212, %v3645, 0.0
    %v4982 = vadd.f32 %v4980, %v4981
    %v4983 = vsel %vm212, %v3763, 0.0
    %v4984 = vadd.f32 %v4982, %v4983
    %v4985 = vsel %vm212, %v3881, 0.0
    %v4986 = vadd.f32 %v4984, %v4985
    %v4987 = vsel %vm212, %v3999, 0.0
    %v4988 = vadd.f32 %v4986, %v4987
    %v4989 = vsel %vm212, %v4117, 0.0
    %v4990 = vadd.f32 %v4988, %v4989
    %v4991 = vsel %vm212, %v4235, 0.0
    %v4992 = vadd.f32 %v4990, %v4991
    %v4993 = vsel %vm212, %v4353, 0.0
    %v4994 = vadd.f32 %v4992, %v4993
    %v4995 = vsel %vm212, %v4471, 0.0
    %v4996 = vadd.f32 %v4994, %v4995
    %v4997 = vsel %vm212, %v4589, 0.0
    %v4998 = vadd.f32 %v4996, %v4997
    %v4999 = vsel %vm212, %v4707, 0.0
    %v5000 = vadd.f32 %v4998, %v4999
    %v5001 = vsel %vm212, %v4825, 0.0
    %v5002 = vadd.f32 %v5000, %v5001
    %vm5003 = vcmask 713728
    %v5004 = vsel %vm5003, %v2603, 0.0
    %v5005 = vsel %vm5003, %v2721, 0.0
    %v5006 = vadd.f32 %v5004, %v5005
    %v5007 = vsel %vm5003, %v2839, 0.0
    %v5008 = vadd.f32 %v5006, %v5007
    %v5009 = vsel %vm5003, %v2957, 0.0
    %v5010 = vadd.f32 %v5008, %v5009
    %v5011 = vsel %vm5003, %v3075, 0.0
    %v5012 = vadd.f32 %v5010, %v5011
    %v5013 = vsel %vm5003, %v3193, 0.0
    %v5014 = vadd.f32 %v5012, %v5013
    %v5015 = vsel %vm5003, %v3311, 0.0
    %v5016 = vadd.f32 %v5014, %v5015
    %v5017 = vsel %vm5003, %v3429, 0.0
    %v5018 = vadd.f32 %v5016, %v5017
    %v5019 = vsel %vm5003, %v3547, 0.0
    %v5020 = vadd.f32 %v5018, %v5019
    %v5021 = vsel %vm5003, %v3665, 0.0
    %v5022 = vadd.f32 %v5020, %v5021
    %v5023 = vsel %vm5003, %v3783, 0.0
    %v5024 = vadd.f32 %v5022, %v5023
    %v5025 = vsel %vm5003, %v3901, 0.0
    %v5026 = vadd.f32 %v5024, %v5025
    %v5027 = vsel %vm5003, %v4019, 0.0
    %v5028 = vadd.f32 %v5026, %v5027
    %v5029 = vsel %vm5003, %v4137, 0.0
    %v5030 = vadd.f32 %v5028, %v5029
    %v5031 = vsel %vm5003, %v4255, 0.0
    %v5032 = vadd.f32 %v5030, %v5031
    %v5033 = vsel %vm5003, %v4373, 0.0
    %v5034 = vadd.f32 %v5032, %v5033
    %v5035 = vsel %vm5003, %v4491, 0.0
    %v5036 = vadd.f32 %v5034, %v5035
    %v5037 = vsel %vm5003, %v4609, 0.0
    %v5038 = vadd.f32 %v5036, %v5037
    %v5039 = vsel %vm5003, %v4727, 0.0
    %v5040 = vadd.f32 %v5038, %v5039
    %v5041 = vsel %vm5003, %v4845, 0.0
    %v5042 = vadd.f32 %v5040, %v5041
    %v5043 = vld [vmem:[#allocation10] sm:$0x1f]
    %v5045 = vperm.slane %v5043, 0
    %v5046 = vperm.slane %v5043, 1
    %v5047 = vperm.slane %v5043, 2
    %v5048 = vperm.slane %v5043, 3
    %v5049 = vperm.slane %v5043, 4
    %v5055 = vadd.f32 %v4885, %v5045
    %v5056 = vadd.f32 %v4924, %v5046
    %v5057 = vadd.f32 %v4963, %v5047
    %v5058 = vadd.f32 %v5002, %v5048
    %v5059 = vadd.f32 %v5042, %v5049
    %v5060 = vtanh.pop %v5055
    %v5061 = vtanh.pop %v5056
    %v5062 = vtanh.pop %v5057
    %v5063 = vtanh.pop %v5058
    %v5064 = vtanh.pop %v5059
    %v5065 = vld [vmem:[#allocation11] sm:$0x1f]
    %v5067 = vperm.slane %v5065, 0
    %v5068 = vperm.slane %v5065, 1
    %v5069 = vperm.slane %v5065, 2
    %v5070 = vperm.slane %v5065, 3
    %v5071 = vperm.slane %v5065, 4
    %v5077 = vmul.f32 %v5060, %v5067
    %v5078 = vmul.f32 %v5061, %v5068
    %v5079 = vmul.f32 %v5062, %v5069
    %v5080 = vmul.f32 %v5063, %v5070
    %v5081 = vmul.f32 %v5064, %v5071
    %v5082 = vsel %vm212, %v5077, 0.0
    %v5083 = vsel %vm212, %v5078, 0.0
    %v5084 = vadd.f32 %v5082, %v5083
    %v5085 = vsel %vm212, %v5079, 0.0
    %v5086 = vadd.f32 %v5084, %v5085
    %v5087 = vsel %vm212, %v5080, 0.0
    %v5088 = vadd.f32 %v5086, %v5087
    %v5089 = vsel %vm5003, %v5081, 0.0
    %v5090 = vadd.f32 %v5088, %v5089
    %5091 = vadd.xlane.f32.xlu0 %v5090
    %v5092 = vpop.xlane.xlu0 %5091
    %v5093 = vld [vmem:[#allocation2] sm:$0x1]
    %v5095 = vperm.slane %v5093, 0
    %v5097 = vadd.f32 %v5092, %v5095
    %vm5098 = vcmask 1024
    %5099 = vst.msk [vmem:[%s15] sm:$0x3] %vm5098, %v5097
    // Predicated region
    $region86: #{cnn_1d_forward.1} parent=1 // pred_check
      _
    $region87: #{cnn_1d_forward.1} parent=1 // pred_check_branch
      %5101 = sbr.rel (0) target = $region89
    $region88: #{cnn_1d_forward.1} parent=1 // pred_region
      _
    $region89: #{cnn_1d_forward.1} parent=1 // pred_fallthru
      _
    // Predicated region
    $region90: #{cnn_1d_forward.1} parent=1 // pred_check
      _
    $region91: #{cnn_1d_forward.1} parent=1 // pred_check_branch
      %5103 = sbr.rel (0) target = $region93
    $region92: #{cnn_1d_forward.1} parent=1 // pred_region
      _
    $region93: #{cnn_1d_forward.1} parent=1 // pred_fallthru
      _
    %5104 = vsyncpa [#allocation4], 1
    %5105 = vsyncpa [#allocation6], 1
    %5106 = vsyncpa [#allocation9], 1
    %5107 = vsyncpa [#allocation12], 1

</llo_original>
